<compile_context>
chip_gen: v5e
topology: v5e:2x2
jax: 0.10.0
libtpu: 0.0.40
codegen_flags: <defaults>
</compile_context>

<pallas_src>
import jax
import jax.numpy as jnp
import numpy as np
from jax.experimental import pallas as pl
from jax.experimental.pallas import tpu as pltpu


# ----------------------------- hyper-parameters ------------------------------
SOURCE_DICT_SIZE = 64
TARGET_DICT_SIZE = 32          # also the output vocab / logits width
EMBED_DIM = 16
WINDOW_SIZE = 2
N_SRC_TOK = 2 * WINDOW_SIZE + 1   # 5 source-context tokens
N_TGT_TOK = WINDOW_SIZE           # 2 target-history tokens
HIDDEN_DIM_1 = 32
HIDDEN_DIM_2 = 64
SRC_IN = EMBED_DIM * N_SRC_TOK    # 80
TGT_IN = EMBED_DIM * N_TGT_TOK    # 32
BN_EPS = 1e-5

N_IDS = 8                          # 5 src + 2 tgt + 1 pad column (one id DMA)
GATHER_K = N_SRC_TOK * SOURCE_DICT_SIZE + N_TGT_TOK * TARGET_DICT_SIZE + 1  # 385
GATHER_N = 2 * HIDDEN_DIM_1 + 1    # 65  (src 0:32 | tgt 32:64 | const-1 lane)
FC1_N = HIDDEN_DIM_2 + 1           # 65
FC2_N = TARGET_DICT_SIZE + 1       # 33
PAD_V = 128                        # lane-dense padded logits width

BATCH = 512                        # example batch


# --------------------------------- kernel ------------------------------------
def basicnet_kernel(ids_ref, gconst_ref, wg_ref, w1_ref, w2_ref, wo_ref, out_ref):
    f32 = jnp.float32
    relu = lambda x: jnp.maximum(x, 0.0)

    # ---- fused embedding gather + fc_source/fc_target (+BN, +bias) ----------
    # A tiny K=8 matmul broadcasts each token id to its 64/32-lane group, one
    # compare against the per-lane local index builds the combined
    # block-diagonal one-hot; lane 384 is an always-1 bias carrier.
    ids_f = ids_ref[...].astype(f32)                            # (TB, 8)
    pattern = gconst_ref[0:N_IDS, :]                            # (8, 385)
    lane_local = gconst_ref[N_IDS:N_IDS + 1, :]                 # (1, 385)
    bcast = jnp.dot(ids_f, pattern, preferred_element_type=f32)  # (TB, 385)
    onehot = (bcast == lane_local).astype(f32)                  # (TB, 385)

    # gather matmul == concat(relu(src_fc), relu(tgt_fc)) plus const-1 lane
    a0 = relu(jnp.dot(onehot, wg_ref[...], preferred_element_type=f32))   # (TB,65)
    # fc1 / fc2 / output; all biases ride on the const-1 lane of each input
    h1 = relu(jnp.dot(a0, w1_ref[...], preferred_element_type=f32))       # (TB,65)
    h2 = relu(jnp.dot(h1, w2_ref[...], preferred_element_type=f32))       # (TB,33)
    logits = jnp.dot(h2, wo_ref[...], preferred_element_type=f32)         # (TB,128)

    # eval-mode log_softmax over the 32 real columns only; store the full
    # lane-dense 128-wide slab (pad lanes are junk, wrapper slices them off).
    real = logits[:, 0:TARGET_DICT_SIZE]
    m = jnp.max(real, axis=1, keepdims=True)
    lse = jnp.log(jnp.sum(jnp.exp(real - m), axis=1, keepdims=True))
    out_ref[...] = logits - (m + lse)


# --------------------------------- wrapper ------------------------------------
def _num_tensorcores():
    """2 TensorCores per chip on v7x, 1 on v5e/v6e (best-effort sniff)."""
    try:
        kind = jax.devices()[0].device_kind.lower()
    except Exception:
        return 1
    return 2 if "v7" in kind else 1


def _pick_tile_b(B):
    """Largest tile (<=512 rows, multiple of 8) such that each TensorCore gets
    whole grid steps; >=2 steps/core once the batch is large enough."""
    nc = _num_tensorcores()
    b8 = max(8, ((B + 7) // 8) * 8)
    steps = nc if b8 <= 512 * nc else 2 * nc
    tile = (b8 + steps - 1) // steps
    return min(512, max(8, ((tile + 7) // 8) * 8))


def basicnet_forward(S, T, fused, tile_b=None):
    """S: (B, 5) int32 source tokens, T: (B, 2) int32 target tokens -> (B, V)."""
    B = S.shape[0]
    ids = jnp.concatenate(
        [S.astype(jnp.int32), T.astype(jnp.int32),
         jnp.zeros((B, N_IDS - N_SRC_TOK - N_TGT_TOK), jnp.int32)], axis=1)

    if tile_b is None:
        tile_b = _pick_tile_b(B)
    Bp = ((B + tile_b - 1) // tile_b) * tile_b
    if Bp != B:
        ids = jnp.pad(ids, ((0, Bp - B), (0, 0)))     # pad rows use valid id 0

    full = lambda shape: pl.BlockSpec(shape, lambda i: (0,) * len(shape))
    out = pl.pallas_call(
        basicnet_kernel,
        out_shape=jax.ShapeDtypeStruct((Bp, PAD_V), jnp.float32),
        grid=(Bp // tile_b,),
        in_specs=[
            pl.BlockSpec((tile_b, N_IDS), lambda i: (i, 0)),
            full((N_IDS + 1, GATHER_K)),
            full((GATHER_K, GATHER_N)),
            full((GATHER_N, FC1_N)),
            full((FC1_N, FC2_N)),
            full((FC2_N, PAD_V)),
        ],
        out_specs=pl.BlockSpec((tile_b, PAD_V), lambda i: (i, 0)),
        compiler_params=pltpu.CompilerParams(
            dimension_semantics=("parallel",)),
    )(ids, fused["gconst"], fused["wg"], fused["w1"], fused["w2"], fused["wo"])
    return out[:B, :TARGET_DICT_SIZE]


# -------------------------- deterministic parameters --------------------------
def make_params(key):
    keys = jax.random.split(key, 32)
    k = iter(keys)

    def linear(fan_in, fan_out):
        bound = 1.0 / np.sqrt(fan_in)
        w = jax.random.uniform(next(k), (fan_in, fan_out), jnp.float32, -bound, bound)
        b = jax.random.uniform(next(k), (1, fan_out), jnp.float32, -bound, bound)
        return w, b

    def batchnorm(dim):
        gamma = 1.0 + 0.1 * jax.random.normal(next(k), (1, dim), jnp.float32)
        beta = 0.1 * jax.random.normal(next(k), (1, dim), jnp.float32)
        r_mean = 0.05 * jax.random.normal(next(k), (1, dim), jnp.float32)
        r_var = 1.0 + 0.1 * jax.random.uniform(next(k), (1, dim), jnp.float32)
        scale = gamma / jnp.sqrt(r_var + BN_EPS)
        shift = beta - r_mean * scale
        return scale, shift

    p = {}
    p["src_emb"] = 0.1 * jax.random.normal(next(k), (SOURCE_DICT_SIZE, EMBED_DIM),
                                           jnp.float32)
    p["tgt_emb"] = 0.1 * jax.random.normal(next(k), (TARGET_DICT_SIZE, EMBED_DIM),
                                           jnp.float32)
    p["w_src"], p["b_src"] = linear(SRC_IN, HIDDEN_DIM_1)
    p["s_src"], p["sh_src"] = batchnorm(HIDDEN_DIM_1)
    p["w_tgt"], p["b_tgt"] = linear(TGT_IN, HIDDEN_DIM_1)
    p["s_tgt"], p["sh_tgt"] = batchnorm(HIDDEN_DIM_1)
    p["w1"], p["b1"] = linear(2 * HIDDEN_DIM_1, HIDDEN_DIM_2)
    p["s1"], p["sh1"] = batchnorm(HIDDEN_DIM_2)
    p["w2"], p["b2"] = linear(HIDDEN_DIM_2, TARGET_DICT_SIZE)
    p["s2"], p["sh2"] = batchnorm(TARGET_DICT_SIZE)
    p["w_out"], p["b_out"] = linear(TARGET_DICT_SIZE, TARGET_DICT_SIZE)
    return p


def fuse_params(p):
    """Fold eval-mode BN into the linear weights, fold the embeddings into one
    block-diagonal gather weight, fold every bias into its matmul via an
    always-1 lane, lane-pad the output head to 128 and build gather constants."""
    f32 = jnp.float32
    E, H1, H2, V = EMBED_DIM, HIDDEN_DIM_1, HIDDEN_DIM_2, TARGET_DICT_SIZE
    src_off = N_SRC_TOK * SOURCE_DICT_SIZE                 # 320

    # BN (eval) folded into the preceding linear layer
    w_src = p["w_src"] * p["s_src"]
    b_src = (p["b_src"] * p["s_src"] + p["sh_src"])[0]
    w_tgt = p["w_tgt"] * p["s_tgt"]
    b_tgt = (p["b_tgt"] * p["s_tgt"] + p["sh_tgt"])[0]
    w1 = p["w1"] * p["s1"]
    b1 = (p["b1"] * p["s1"] + p["sh1"])[0]
    w2 = p["w2"] * p["s2"]
    b2 = (p["b2"] * p["s2"] + p["sh2"])[0]

    # Block-diagonal gather weight: rows = (token position, token id) pairs,
    # cols 0:32 src head, 32:64 tgt head, col 64 const-1 carrier; the last row
    # (always-1 one-hot lane) carries the fused biases.
    wg = jnp.zeros((GATHER_K, GATHER_N), f32)
    for t in range(N_SRC_TOK):
        blk = p["src_emb"] @ w_src[t * E:(t + 1) * E, :]                  # (64,32)
        wg = wg.at[t * SOURCE_DICT_SIZE:(t + 1) * SOURCE_DICT_SIZE, 0:H1].set(blk)
    for t in range(N_TGT_TOK):
        blk = p["tgt_emb"] @ w_tgt[t * E:(t + 1) * E, :]                  # (32,32)
        lo = src_off + t * TARGET_DICT_SIZE
        wg = wg.at[lo:lo + TARGET_DICT_SIZE, H1:2 * H1].set(blk)
    wg = wg.at[GATHER_K - 1, 0:H1].set(b_src)
    wg = wg.at[GATHER_K - 1, H1:2 * H1].set(b_tgt)
    wg = wg.at[GATHER_K - 1, 2 * H1].set(1.0)

    # fc1 / fc2 with bias row + const-1 propagation column
    w1_aug = jnp.zeros((GATHER_N, FC1_N), f32)
    w1_aug = w1_aug.at[0:2 * H1, 0:H2].set(w1)
    w1_aug = w1_aug.at[2 * H1, 0:H2].set(b1)
    w1_aug = w1_aug.at[2 * H1, H2].set(1.0)

    w2_aug = jnp.zeros((FC1_N, FC2_N), f32)
    w2_aug = w2_aug.at[0:H2, 0:V].set(w2)
    w2_aug = w2_aug.at[H2, 0:V].set(b2)
    w2_aug = w2_aug.at[H2, V].set(1.0)

    # output head, lane-padded to 128 (pad columns stay 0: the log_softmax
    # only reads the first 32 columns, the wrapper slices the rest off)
    wo_aug = jnp.zeros((FC2_N, PAD_V), f32)
    wo_aug = wo_aug.at[0:V, 0:V].set(p["w_out"])
    wo_aug = wo_aug.at[V, 0:V].set(p["b_out"][0])

    # Gather constants: rows 0:8 = 0/1 group-broadcast pattern (one row per
    # packed id column, pad column all-zero), row 8 = per-lane local token-id.
    # Lane 384 has pattern 0 and local 0 -> its one-hot is always 1.
    pattern = np.zeros((N_IDS, GATHER_K), np.float32)
    lane_local = np.zeros((1, GATHER_K), np.float32)
    for t in range(N_SRC_TOK):
        lo = t * SOURCE_DICT_SIZE
        pattern[t, lo:lo + SOURCE_DICT_SIZE] = 1.0
        lane_local[0, lo:lo + SOURCE_DICT_SIZE] = np.arange(SOURCE_DICT_SIZE)
    for t in range(N_TGT_TOK):
        lo = src_off + t * TARGET_DICT_SIZE
        pattern[N_SRC_TOK + t, lo:lo + TARGET_DICT_SIZE] = 1.0
        lane_local[0, lo:lo + TARGET_DICT_SIZE] = np.arange(TARGET_DICT_SIZE)
    gconst = jnp.asarray(np.concatenate([pattern, lane_local], axis=0))   # (9,385)

    # TODO(synk): optional bf16 weight cast (2-3x MXU throughput) is skipped to
    # keep the 1e-4 reference tolerance and f32-only VPU/EUP support on v5e.
    return dict(gconst=gconst, wg=wg, w1=w1_aug, w2=w2_aug, wo=wo_aug)


# ------------------------------ pure-JAX reference -----------------------------
def reference_forward(S, T, p):
    """Mirrors the PyTorch module's eval-mode forward exactly (unfused)."""
    relu = lambda x: jnp.maximum(x, 0.0)
    src_flat = jnp.take(p["src_emb"], S, axis=0).reshape(S.shape[0], SRC_IN)
    tgt_flat = jnp.take(p["tgt_emb"], T, axis=0).reshape(T.shape[0], TGT_IN)
    src = relu((src_flat @ p["w_src"] + p["b_src"]) * p["s_src"] + p["sh_src"])
    tgt = relu((tgt_flat @ p["w_tgt"] + p["b_tgt"]) * p["s_tgt"] + p["sh_tgt"])
    concat = relu(jnp.concatenate([src, tgt], axis=1))
    h1 = relu((concat @ p["w1"] + p["b1"]) * p["s1"] + p["sh1"])
    h2 = relu((h1 @ p["w2"] + p["b2"]) * p["s2"] + p["sh2"])
    logits = h2 @ p["w_out"] + p["b_out"]
    return jax.nn.log_softmax(logits, axis=1)


# ----------------------------------- main -------------------------------------
if __name__ == "__main__":
    key = jax.random.PRNGKey(0)
    k_params, k_s, k_t = jax.random.split(key, 3)
    params = make_params(k_params)
    fused = fuse_params(params)

    S = jax.random.randint(k_s, (BATCH, N_SRC_TOK), 0, SOURCE_DICT_SIZE,
                           dtype=jnp.int32)
    T = jax.random.randint(k_t, (BATCH, N_TGT_TOK), 0, TARGET_DICT_SIZE,
                           dtype=jnp.int32)

    out = basicnet_forward(S, T, fused)
    out = jax.block_until_ready(out)

    ref = reference_forward(S, T, params)
    assert out.shape == (BATCH, TARGET_DICT_SIZE)
    np.testing.assert_allclose(np.asarray(out), np.asarray(ref),
                               rtol=1e-4, atol=1e-4)
    # TODO(synk): training-mode BatchNorm (batch statistics) and compute_loss
    # (CrossEntropyLoss) are not part of this eval-mode forward kernel.
    print("KERNEL_OK")
</pallas_src>

<mosaic_0001>
module attributes {stable_mosaic.version = 11 : i64} {
  func.func @basicnet_kernel(%arg0: i32, %arg1: memref<512x8xi32, #tpu.memory_space<vmem>>, %arg2: memref<9x385xf32, #tpu.memory_space<vmem>>, %arg3: memref<385x65xf32, #tpu.memory_space<vmem>>, %arg4: memref<65x65xf32, #tpu.memory_space<vmem>>, %arg5: memref<65x33xf32, #tpu.memory_space<vmem>>, %arg6: memref<33x128xf32, #tpu.memory_space<vmem>>, %arg7: memref<512x128xf32, #tpu.memory_space<vmem>>) attributes {dimension_semantics = [#tpu.dimension_semantics<parallel>], iteration_bounds = array<i64: 1>, scalar_prefetch = 0 : i64, scratch_operands = 0 : i64, tpu.core_type = #tpu.core_type<tc>, window_params = [{transform_indices = @transform_0, window_bounds = array<i64: 512, 8>}, {pipeline_mode = #tpu.pipeline_mode<synchronous>, transform_indices = @transform_1, window_bounds = array<i64: 9, 385>}, {pipeline_mode = #tpu.pipeline_mode<synchronous>, transform_indices = @transform_2, window_bounds = array<i64: 385, 65>}, {pipeline_mode = #tpu.pipeline_mode<synchronous>, transform_indices = @transform_3, window_bounds = array<i64: 65, 65>}, {pipeline_mode = #tpu.pipeline_mode<synchronous>, transform_indices = @transform_4, window_bounds = array<i64: 65, 33>}, {pipeline_mode = #tpu.pipeline_mode<synchronous>, transform_indices = @transform_5, window_bounds = array<i64: 33, 128>}, {transform_indices = @transform_6, window_bounds = array<i64: 512, 128>}]} {
    %c0 = arith.constant 0 : index
    %c0_0 = arith.constant 0 : index
    %0 = vector.load %arg1[%c0, %c0_0] : memref<512x8xi32, #tpu.memory_space<vmem>>, vector<512x8xi32>
    %1 = arith.sitofp %0 : vector<512x8xi32> to vector<512x8xf32>
    %c0_1 = arith.constant 0 : index
    %c0_2 = arith.constant 0 : index
    %2 = vector.load %arg2[%c0_1, %c0_2] : memref<9x385xf32, #tpu.memory_space<vmem>>, vector<8x385xf32>
    %c8 = arith.constant 8 : index
    %c0_3 = arith.constant 0 : index
    %3 = vector.load %arg2[%c8, %c0_3] : memref<9x385xf32, #tpu.memory_space<vmem>>, vector<1x385xf32>
    %cst = arith.constant dense<0.000000e+00> : vector<512x385xf32>
    %4 = tpu.matmul %1, %2, %cst {dimension_numbers = #tpu.dot_dimension_numbers<[1], [0], [0], [1], [0, 0, 1, 1], [], []>} : vector<512x8xf32>, vector<8x385xf32>, vector<512x385xf32> -> vector<512x385xf32>
    %5 = vector.broadcast %3 : vector<1x385xf32> to vector<512x385xf32>
    %6 = arith.cmpf oeq, %4, %5 : vector<512x385xf32>
    %7 = arith.extui %6 : vector<512x385xi1> to vector<512x385xi32>
    %8 = arith.sitofp %7 : vector<512x385xi32> to vector<512x385xf32>
    %c0_4 = arith.constant 0 : index
    %c0_5 = arith.constant 0 : index
    %9 = vector.load %arg3[%c0_4, %c0_5] : memref<385x65xf32, #tpu.memory_space<vmem>>, vector<385x65xf32>
    %cst_6 = arith.constant dense<0.000000e+00> : vector<512x65xf32>
    %10 = tpu.matmul %8, %9, %cst_6 {dimension_numbers = #tpu.dot_dimension_numbers<[1], [0], [0], [1], [0, 0, 1, 1], [], []>} : vector<512x385xf32>, vector<385x65xf32>, vector<512x65xf32> -> vector<512x65xf32>
    %cst_7 = arith.constant 0.000000e+00 : f32
    %11 = vector.broadcast %cst_7 : f32 to vector<512x65xf32>
    %12 = arith.maximumf %10, %11 : vector<512x65xf32>
    %c0_8 = arith.constant 0 : index
    %c0_9 = arith.constant 0 : index
    %13 = vector.load %arg4[%c0_8, %c0_9] : memref<65x65xf32, #tpu.memory_space<vmem>>, vector<65x65xf32>
    %cst_10 = arith.constant dense<0.000000e+00> : vector<512x65xf32>
    %14 = tpu.matmul %12, %13, %cst_10 {dimension_numbers = #tpu.dot_dimension_numbers<[1], [0], [0], [1], [0, 0, 1, 1], [], []>} : vector<512x65xf32>, vector<65x65xf32>, vector<512x65xf32> -> vector<512x65xf32>
    %cst_11 = arith.constant 0.000000e+00 : f32
    %15 = vector.broadcast %cst_11 : f32 to vector<512x65xf32>
    %16 = arith.maximumf %14, %15 : vector<512x65xf32>
    %c0_12 = arith.constant 0 : index
    %c0_13 = arith.constant 0 : index
    %17 = vector.load %arg5[%c0_12, %c0_13] : memref<65x33xf32, #tpu.memory_space<vmem>>, vector<65x33xf32>
    %cst_14 = arith.constant dense<0.000000e+00> : vector<512x33xf32>
    %18 = tpu.matmul %16, %17, %cst_14 {dimension_numbers = #tpu.dot_dimension_numbers<[1], [0], [0], [1], [0, 0, 1, 1], [], []>} : vector<512x65xf32>, vector<65x33xf32>, vector<512x33xf32> -> vector<512x33xf32>
    %cst_15 = arith.constant 0.000000e+00 : f32
    %19 = vector.broadcast %cst_15 : f32 to vector<512x33xf32>
    %20 = arith.maximumf %18, %19 : vector<512x33xf32>
    %c0_16 = arith.constant 0 : index
    %c0_17 = arith.constant 0 : index
    %21 = vector.load %arg6[%c0_16, %c0_17] : memref<33x128xf32, #tpu.memory_space<vmem>>, vector<33x128xf32>
    %cst_18 = arith.constant dense<0.000000e+00> : vector<512x128xf32>
    %22 = tpu.matmul %20, %21, %cst_18 {dimension_numbers = #tpu.dot_dimension_numbers<[1], [0], [0], [1], [0, 0, 1, 1], [], []>} : vector<512x33xf32>, vector<33x128xf32>, vector<512x128xf32> -> vector<512x128xf32>
    %23 = vector.extract_strided_slice %22 {offsets = [0, 0], sizes = [512, 32], strides = [1, 1]} : vector<512x128xf32> to vector<512x32xf32>
    %cst_19 = arith.constant dense<0xFF800000> : vector<512xf32>
    %24 = vector.multi_reduction <maximumf>, %23, %cst_19 [1] : vector<512x32xf32> to vector<512xf32>
    %25 = vector.shape_cast %24 : vector<512xf32> to vector<512x1xf32>
    %26 = vector.broadcast %25 : vector<512x1xf32> to vector<512x32xf32>
    %27 = arith.subf %23, %26 : vector<512x32xf32>
    %28 = math.exp %27 : vector<512x32xf32>
    %cst_20 = arith.constant dense<0.000000e+00> : vector<512xf32>
    %29 = vector.multi_reduction <add>, %28, %cst_20 [1] : vector<512x32xf32> to vector<512xf32>
    %30 = vector.shape_cast %29 : vector<512xf32> to vector<512x1xf32>
    %31 = math.log %30 : vector<512x1xf32>
    %32 = arith.addf %25, %31 : vector<512x1xf32>
    %33 = vector.broadcast %32 : vector<512x1xf32> to vector<512x128xf32>
    %34 = arith.subf %22, %33 : vector<512x128xf32>
    %c0_21 = arith.constant 0 : index
    %c0_22 = arith.constant 0 : index
    %35 = vector.load %arg7[%c0_21, %c0_22] : memref<512x128xf32, #tpu.memory_space<vmem>>, vector<512x128xf32>
    tpu.vector_store %arg7[%c0_21, %c0_22], %34 {strides = array<i32>} : memref<512x128xf32, #tpu.memory_space<vmem>>, vector<512x128xf32>,
    return
  }
  func.func @transform_0(%arg0: i32) -> (i32, i32) {
    %c0_i32 = arith.constant 0 : i32
    %c0_i32_0 = arith.constant 0 : i32
    return %arg0, %c0_i32 : i32, i32
  }
  func.func @transform_1(%arg0: i32) -> (i32, i32) {
    %c0_i32 = arith.constant 0 : i32
    %c0_i32_0 = arith.constant 0 : i32
    %c0_i32_1 = arith.constant 0 : i32
    return %c0_i32, %c0_i32_0 : i32, i32
  }
  func.func @transform_2(%arg0: i32) -> (i32, i32) {
    %c0_i32 = arith.constant 0 : i32
    %c0_i32_0 = arith.constant 0 : i32
    %c0_i32_1 = arith.constant 0 : i32
    return %c0_i32, %c0_i32_0 : i32, i32
  }
  func.func @transform_3(%arg0: i32) -> (i32, i32) {
    %c0_i32 = arith.constant 0 : i32
    %c0_i32_0 = arith.constant 0 : i32
    %c0_i32_1 = arith.constant 0 : i32
    return %c0_i32, %c0_i32_0 : i32, i32
  }
  func.func @transform_4(%arg0: i32) -> (i32, i32) {
    %c0_i32 = arith.constant 0 : i32
    %c0_i32_0 = arith.constant 0 : i32
    %c0_i32_1 = arith.constant 0 : i32
    return %c0_i32, %c0_i32_0 : i32, i32
  }
  func.func @transform_5(%arg0: i32) -> (i32, i32) {
    %c0_i32 = arith.constant 0 : i32
    %c0_i32_0 = arith.constant 0 : i32
    %c0_i32_1 = arith.constant 0 : i32
    return %c0_i32, %c0_i32_0 : i32, i32
  }
  func.func @transform_6(%arg0: i32) -> (i32, i32) {
    %c0_i32 = arith.constant 0 : i32
    %c0_i32_0 = arith.constant 0 : i32
    return %arg0, %c0_i32 : i32, i32
  }
}

</mosaic_0001>

<llo_original>
// kernel: tpu_custom_call.1
$region0: #{tpu_custom_call.1}
  #allocation0 [shape = 'u32[]', space=smem, size = 0x4, offset = 0x4, fixed_abs, tag = 'smem constant byte address 0x4 - core index']
  #allocation1 [shape = 'u32[72,128]{1,0:T(1,128)}', space=vmem, size = 0x9000, scoped, tag = 'internal scratch']
  %s0 = inlined_call_operand.vmem [shape: s32[512,8], index: 0, kind: input, shape index: {}]
  %s1 = inlined_call_operand.vmem [shape: f32[9,385], index: 1, kind: input, shape index: {}]
  %s2 = inlined_call_operand.vmem [shape: f32[385,65], index: 2, kind: input, shape index: {}]
  %s3 = inlined_call_operand.vmem [shape: f32[65,65], index: 3, kind: input, shape index: {}]
  %s4 = inlined_call_operand.vmem [shape: f32[65,33], index: 4, kind: input, shape index: {}]
  %s5 = inlined_call_operand.vmem [shape: f32[33,128], index: 5, kind: input, shape index: {}]
  %s6 = inlined_call_operand.hbm [shape: f32[512,128], index: 6, kind: output, shape index: {}]
  %s7 = sld [smem:[#allocation0]]
  $region34: #{tpu_custom_call.1} parent=0
    _
  %s9 = ssub.s32 1, %s7
  %s10 = scalar_select 0, %s9, %s7
  $region1: #{tpu_custom_call.1} parent=0
    #allocation2 [shape = 'u8[262144]{0}', space=vmem, size = 0x40000, scoped, tag = 'output window, operand 0, single buffered']
    #allocation3 [shape = 's32[1]{0}', space=sflag, size = 0x4, scoped, tag = 'scoped memory for tpu_custom_call.1']
    %11 = vsyncpa [#allocation3], 0
    // Predicated region
    $region2: #{tpu_custom_call.1} parent=1 // pred_check
      _
    $region3: #{tpu_custom_call.1} parent=1 // pred_check_branch
      %13 = sbr.rel (0) target = $region5
    $region4: #{tpu_custom_call.1} parent=1 // pred_region
      _
    $region5: #{tpu_custom_call.1} parent=1 // pred_fallthru
      _
    // Predicated region
    $region6: #{tpu_custom_call.1} parent=1 // pred_check
      _
    $region7: #{tpu_custom_call.1} parent=1 // pred_check_branch
      %15 = sbr.rel (0) target = $region9
    $region8: #{tpu_custom_call.1} parent=1 // pred_region
      _
    $region9: #{tpu_custom_call.1} parent=1 // pred_fallthru
      _
    // Predicated region
    $region10: #{tpu_custom_call.1} parent=1 // pred_check
      _
    $region11: #{tpu_custom_call.1} parent=1 // pred_check_branch
      %17 = sbr.rel (0) target = $region13
    $region12: #{tpu_custom_call.1} parent=1 // pred_region
      _
    $region13: #{tpu_custom_call.1} parent=1 // pred_fallthru
      _
    // Predicated region
    $region14: #{tpu_custom_call.1} parent=1 // pred_check
      _
    $region15: #{tpu_custom_call.1} parent=1 // pred_check_branch
      %19 = sbr.rel (0) target = $region17
    $region16: #{tpu_custom_call.1} parent=1 // pred_region
      _
    $region17: #{tpu_custom_call.1} parent=1 // pred_fallthru
      _
    // Predicated region
    $region18: #{tpu_custom_call.1} parent=1 // pred_check
      _
    $region19: #{tpu_custom_call.1} parent=1 // pred_check_branch
      %21 = sbr.rel (0) target = $region21
    $region20: #{tpu_custom_call.1} parent=1 // pred_region
      _
    $region21: #{tpu_custom_call.1} parent=1 // pred_fallthru
      _
    // Predicated region
    $region22: #{tpu_custom_call.1} parent=1 // pred_check
      _
    $region23: #{tpu_custom_call.1} parent=1 // pred_check_branch
      %23 = sbr.rel (0) target = $region25
    $region24: #{tpu_custom_call.1} parent=1 // pred_region
      _
    $region25: #{tpu_custom_call.1} parent=1 // pred_fallthru
      _
    %v24 = vld [vmem:[%s0] sm:$0xff]
    %v25 = vld [vmem:[%s0 + $0x8] sm:$0xff]
    %v26 = vld [vmem:[%s0 + $0x10] sm:$0xff]
    %v27 = vld [vmem:[%s0 + $0x18] sm:$0xff]
    %v28 = vld [vmem:[%s0 + $0x20] sm:$0xff]
    %v29 = vld [vmem:[%s0 + $0x28] sm:$0xff]
    %v30 = vld [vmem:[%s0 + $0x30] sm:$0xff]
    %v31 = vld [vmem:[%s0 + $0x38] sm:$0xff]
    %v32 = vld [vmem:[%s0 + $0x40] sm:$0xff]
    %v33 = vld [vmem:[%s0 + $0x48] sm:$0xff]
    %v34 = vld [vmem:[%s0 + $0x50] sm:$0xff]
    %v35 = vld [vmem:[%s0 + $0x58] sm:$0xff]
    %v36 = vld [vmem:[%s0 + $0x60] sm:$0xff]
    %v37 = vld [vmem:[%s0 + $0x68] sm:$0xff]
    %v38 = vld [vmem:[%s0 + $0x70] sm:$0xff]
    %v39 = vld [vmem:[%s0 + $0x78] sm:$0xff]
    %v40 = vld [vmem:[%s0 + $0x80] sm:$0xff]
    %v41 = vld [vmem:[%s0 + $0x88] sm:$0xff]
    %v42 = vld [vmem:[%s0 + $0x90] sm:$0xff]
    %v43 = vld [vmem:[%s0 + $0x98] sm:$0xff]
    %v44 = vld [vmem:[%s0 + $0xa0] sm:$0xff]
    %v45 = vld [vmem:[%s0 + $0xa8] sm:$0xff]
    %v46 = vld [vmem:[%s0 + $0xb0] sm:$0xff]
    %v47 = vld [vmem:[%s0 + $0xb8] sm:$0xff]
    %v48 = vld [vmem:[%s0 + $0xc0] sm:$0xff]
    %v49 = vld [vmem:[%s0 + $0xc8] sm:$0xff]
    %v50 = vld [vmem:[%s0 + $0xd0] sm:$0xff]
    %v51 = vld [vmem:[%s0 + $0xd8] sm:$0xff]
    %v52 = vld [vmem:[%s0 + $0xe0] sm:$0xff]
    %v53 = vld [vmem:[%s0 + $0xe8] sm:$0xff]
    %v54 = vld [vmem:[%s0 + $0xf0] sm:$0xff]
    %v55 = vld [vmem:[%s0 + $0xf8] sm:$0xff]
    %v56 = vld [vmem:[%s0 + $0x100] sm:$0xff]
    %v57 = vld [vmem:[%s0 + $0x108] sm:$0xff]
    %v58 = vld [vmem:[%s0 + $0x110] sm:$0xff]
    %v59 = vld [vmem:[%s0 + $0x118] sm:$0xff]
    %v60 = vld [vmem:[%s0 + $0x120] sm:$0xff]
    %v61 = vld [vmem:[%s0 + $0x128] sm:$0xff]
    %v62 = vld [vmem:[%s0 + $0x130] sm:$0xff]
    %v63 = vld [vmem:[%s0 + $0x138] sm:$0xff]
    %v64 = vld [vmem:[%s0 + $0x140] sm:$0xff]
    %v65 = vld [vmem:[%s0 + $0x148] sm:$0xff]
    %v66 = vld [vmem:[%s0 + $0x150] sm:$0xff]
    %v67 = vld [vmem:[%s0 + $0x158] sm:$0xff]
    %v68 = vld [vmem:[%s0 + $0x160] sm:$0xff]
    %v69 = vld [vmem:[%s0 + $0x168] sm:$0xff]
    %v70 = vld [vmem:[%s0 + $0x170] sm:$0xff]
    %v71 = vld [vmem:[%s0 + $0x178] sm:$0xff]
    %v72 = vld [vmem:[%s0 + $0x180] sm:$0xff]
    %v73 = vld [vmem:[%s0 + $0x188] sm:$0xff]
    %v74 = vld [vmem:[%s0 + $0x190] sm:$0xff]
    %v75 = vld [vmem:[%s0 + $0x198] sm:$0xff]
    %v76 = vld [vmem:[%s0 + $0x1a0] sm:$0xff]
    %v77 = vld [vmem:[%s0 + $0x1a8] sm:$0xff]
    %v78 = vld [vmem:[%s0 + $0x1b0] sm:$0xff]
    %v79 = vld [vmem:[%s0 + $0x1b8] sm:$0xff]
    %v80 = vld [vmem:[%s0 + $0x1c0] sm:$0xff]
    %v81 = vld [vmem:[%s0 + $0x1c8] sm:$0xff]
    %v82 = vld [vmem:[%s0 + $0x1d0] sm:$0xff]
    %v83 = vld [vmem:[%s0 + $0x1d8] sm:$0xff]
    %v84 = vld [vmem:[%s0 + $0x1e0] sm:$0xff]
    %v85 = vld [vmem:[%s0 + $0x1e8] sm:$0xff]
    %v86 = vld [vmem:[%s0 + $0x1f0] sm:$0xff]
    %v87 = vld [vmem:[%s0 + $0x1f8] sm:$0xff]
    %v88 = vcvt.s32.f32 %v24
    %v89 = vcvt.s32.f32 %v25
    %v90 = vcvt.s32.f32 %v26
    %v91 = vcvt.s32.f32 %v27
    %v92 = vcvt.s32.f32 %v28
    %v93 = vcvt.s32.f32 %v29
    %v94 = vcvt.s32.f32 %v30
    %v95 = vcvt.s32.f32 %v31
    %v96 = vcvt.s32.f32 %v32
    %v97 = vcvt.s32.f32 %v33
    %v98 = vcvt.s32.f32 %v34
    %v99 = vcvt.s32.f32 %v35
    %v100 = vcvt.s32.f32 %v36
    %v101 = vcvt.s32.f32 %v37
    %v102 = vcvt.s32.f32 %v38
    %v103 = vcvt.s32.f32 %v39
    %v104 = vcvt.s32.f32 %v40
    %v105 = vcvt.s32.f32 %v41
    %v106 = vcvt.s32.f32 %v42
    %v107 = vcvt.s32.f32 %v43
    %v108 = vcvt.s32.f32 %v44
    %v109 = vcvt.s32.f32 %v45
    %v110 = vcvt.s32.f32 %v46
    %v111 = vcvt.s32.f32 %v47
    %v112 = vcvt.s32.f32 %v48
    %v113 = vcvt.s32.f32 %v49
    %v114 = vcvt.s32.f32 %v50
    %v115 = vcvt.s32.f32 %v51
    %v116 = vcvt.s32.f32 %v52
    %v117 = vcvt.s32.f32 %v53
    %v118 = vcvt.s32.f32 %v54
    %v119 = vcvt.s32.f32 %v55
    %v120 = vcvt.s32.f32 %v56
    %v121 = vcvt.s32.f32 %v57
    %v122 = vcvt.s32.f32 %v58
    %v123 = vcvt.s32.f32 %v59
    %v124 = vcvt.s32.f32 %v60
    %v125 = vcvt.s32.f32 %v61
    %v126 = vcvt.s32.f32 %v62
    %v127 = vcvt.s32.f32 %v63
    %v128 = vcvt.s32.f32 %v64
    %v129 = vcvt.s32.f32 %v65
    %v130 = vcvt.s32.f32 %v66
    %v131 = vcvt.s32.f32 %v67
    %v132 = vcvt.s32.f32 %v68
    %v133 = vcvt.s32.f32 %v69
    %v134 = vcvt.s32.f32 %v70
    %v135 = vcvt.s32.f32 %v71
    %v136 = vcvt.s32.f32 %v72
    %v137 = vcvt.s32.f32 %v73
    %v138 = vcvt.s32.f32 %v74
    %v139 = vcvt.s32.f32 %v75
    %v140 = vcvt.s32.f32 %v76
    %v141 = vcvt.s32.f32 %v77
    %v142 = vcvt.s32.f32 %v78
    %v143 = vcvt.s32.f32 %v79
    %v144 = vcvt.s32.f32 %v80
    %v145 = vcvt.s32.f32 %v81
    %v146 = vcvt.s32.f32 %v82
    %v147 = vcvt.s32.f32 %v83
    %v148 = vcvt.s32.f32 %v84
    %v149 = vcvt.s32.f32 %v85
    %v150 = vcvt.s32.f32 %v86
    %v151 = vcvt.s32.f32 %v87
    %v152 = vld [vmem:[%s1] sm:$0xff]
    %v153 = vld [vmem:[%s1 + $0x8] sm:$0xff]
    %v154 = vld [vmem:[%s1 + $0x10] sm:$0xff]
    %v155 = vld [vmem:[%s1 + $0x18] sm:$0xff]
    %s156 = scalar_lea.vmem %s1, 32
    %v157 = vld [vmem:[%s156] ss:$8 sm:$0xf]
    %vm158 = vcmask 64512
    %v160 = vsel %vm158, %v88, 0
    %v163 = vsel %vm158, %v89, 0
    %v166 = vsel %vm158, %v90, 0
    %v169 = vsel %vm158, %v91, 0
    %v172 = vsel %vm158, %v92, 0
    %v175 = vsel %vm158, %v93, 0
    %v178 = vsel %vm158, %v94, 0
    %v181 = vsel %vm158, %v95, 0
    %v184 = vsel %vm158, %v96, 0
    %v187 = vsel %vm158, %v97, 0
    %v190 = vsel %vm158, %v98, 0
    %v193 = vsel %vm158, %v99, 0
    %v196 = vsel %vm158, %v100, 0
    %v199 = vsel %vm158, %v101, 0
    %v202 = vsel %vm158, %v102, 0
    %v205 = vsel %vm158, %v103, 0
    %v208 = vsel %vm158, %v104, 0
    %v211 = vsel %vm158, %v105, 0
    %v214 = vsel %vm158, %v106, 0
    %v217 = vsel %vm158, %v107, 0
    %v220 = vsel %vm158, %v108, 0
    %v223 = vsel %vm158, %v109, 0
    %v226 = vsel %vm158, %v110, 0
    %v229 = vsel %vm158, %v111, 0
    %v232 = vsel %vm158, %v112, 0
    %v235 = vsel %vm158, %v113, 0
    %v238 = vsel %vm158, %v114, 0
    %v241 = vsel %vm158, %v115, 0
    %v244 = vsel %vm158, %v116, 0
    %v247 = vsel %vm158, %v117, 0
    %v250 = vsel %vm158, %v118, 0
    %v253 = vsel %vm158, %v119, 0
    %v256 = vsel %vm158, %v120, 0
    %v259 = vsel %vm158, %v121, 0
    %v262 = vsel %vm158, %v122, 0
    %v265 = vsel %vm158, %v123, 0
    %v268 = vsel %vm158, %v124, 0
    %v271 = vsel %vm158, %v125, 0
    %v274 = vsel %vm158, %v126, 0
    %v277 = vsel %vm158, %v127, 0
    %v280 = vsel %vm158, %v128, 0
    %v283 = vsel %vm158, %v129, 0
    %v286 = vsel %vm158, %v130, 0
    %v289 = vsel %vm158, %v131, 0
    %v292 = vsel %vm158, %v132, 0
    %v295 = vsel %vm158, %v133, 0
    %v298 = vsel %vm158, %v134, 0
    %v301 = vsel %vm158, %v135, 0
    %v304 = vsel %vm158, %v136, 0
    %v307 = vsel %vm158, %v137, 0
    %v310 = vsel %vm158, %v138, 0
    %v313 = vsel %vm158, %v139, 0
    %v316 = vsel %vm158, %v140, 0
    %v319 = vsel %vm158, %v141, 0
    %v322 = vsel %vm158, %v142, 0
    %v325 = vsel %vm158, %v143, 0
    %v328 = vsel %vm158, %v144, 0
    %v331 = vsel %vm158, %v145, 0
    %v334 = vsel %vm158, %v146, 0
    %v337 = vsel %vm158, %v147, 0
    %v340 = vsel %vm158, %v148, 0
    %v343 = vsel %vm158, %v149, 0
    %v346 = vsel %vm158, %v150, 0
    %v349 = vsel %vm158, %v151, 0
    %351 = vmatpush.msra.mxu0 0.0
    %352 = vmatpush.msra.mxu0 0.0
    %353 = vmatpush.msra.mxu0 0.0
    %354 = vmatpush.msra.mxu0 0.0
    %355 = vmatpush.msra.mxu0 0.0
    %356 = vmatpush.msra.mxu0 0.0
    %357 = vmatpush.msra.mxu0 0.0
    %358 = vmatpush.msra.mxu0 0.0
    %359 = vmatpush.msra.mxu0 0.0
    %360 = vmatpush.msra.mxu0 0.0
    %361 = vmatpush.msra.mxu0 0.0
    %362 = vmatpush.msra.mxu0 0.0
    %363 = vmatpush.msra.mxu0 0.0
    %364 = vmatpush.msra.mxu0 0.0
    %365 = vmatpush.msra.mxu0 0.0
    %366 = vmatpush.msra.mxu0 %v152
    %367 = vmatmul.f32.gmra.mxu0 %v160
    %v368 = vpop.f32.mrf.mxu0
    %v369 = vadd.f32 0.0, %v368
    %370 = vmatmul.f32.gmra.mxu0 %v163
    %v371 = vpop.f32.mrf.mxu0
    %v372 = vadd.f32 0.0, %v371
    %373 = vmatmul.f32.gmra.mxu0 %v166
    %v374 = vpop.f32.mrf.mxu0
    %v375 = vadd.f32 0.0, %v374
    %376 = vmatmul.f32.gmra.mxu0 %v169
    %v377 = vpop.f32.mrf.mxu0
    %v378 = vadd.f32 0.0, %v377
    %379 = vmatmul.f32.gmra.mxu0 %v172
    %v380 = vpop.f32.mrf.mxu0
    %v381 = vadd.f32 0.0, %v380
    %382 = vmatmul.f32.gmra.mxu0 %v175
    %v383 = vpop.f32.mrf.mxu0
    %v384 = vadd.f32 0.0, %v383
    %385 = vmatmul.f32.gmra.mxu0 %v178
    %v386 = vpop.f32.mrf.mxu0
    %v387 = vadd.f32 0.0, %v386
    %388 = vmatmul.f32.gmra.mxu0 %v181
    %v389 = vpop.f32.mrf.mxu0
    %v390 = vadd.f32 0.0, %v389
    %391 = vmatmul.f32.gmra.mxu0 %v184
    %v392 = vpop.f32.mrf.mxu0
    %v393 = vadd.f32 0.0, %v392
    %394 = vmatmul.f32.gmra.mxu0 %v187
    %v395 = vpop.f32.mrf.mxu0
    %v396 = vadd.f32 0.0, %v395
    %397 = vmatmul.f32.gmra.mxu0 %v190
    %v398 = vpop.f32.mrf.mxu0
    %v399 = vadd.f32 0.0, %v398
    %400 = vmatmul.f32.gmra.mxu0 %v193
    %v401 = vpop.f32.mrf.mxu0
    %v402 = vadd.f32 0.0, %v401
    %403 = vmatmul.f32.gmra.mxu0 %v196
    %v404 = vpop.f32.mrf.mxu0
    %v405 = vadd.f32 0.0, %v404
    %406 = vmatmul.f32.gmra.mxu0 %v199
    %v407 = vpop.f32.mrf.mxu0
    %v408 = vadd.f32 0.0, %v407
    %409 = vmatmul.f32.gmra.mxu0 %v202
    %v410 = vpop.f32.mrf.mxu0
    %v411 = vadd.f32 0.0, %v410
    %412 = vmatmul.f32.gmra.mxu0 %v205
    %v413 = vpop.f32.mrf.mxu0
    %v414 = vadd.f32 0.0, %v413
    %415 = vmatmul.f32.gmra.mxu0 %v208
    %v416 = vpop.f32.mrf.mxu0
    %v417 = vadd.f32 0.0, %v416
    %418 = vmatmul.f32.gmra.mxu0 %v211
    %v419 = vpop.f32.mrf.mxu0
    %v420 = vadd.f32 0.0, %v419
    %421 = vmatmul.f32.gmra.mxu0 %v214
    %v422 = vpop.f32.mrf.mxu0
    %v423 = vadd.f32 0.0, %v422
    %424 = vmatmul.f32.gmra.mxu0 %v217
    %v425 = vpop.f32.mrf.mxu0
    %v426 = vadd.f32 0.0, %v425
    %427 = vmatmul.f32.gmra.mxu0 %v220
    %v428 = vpop.f32.mrf.mxu0
    %v429 = vadd.f32 0.0, %v428
    %430 = vmatmul.f32.gmra.mxu0 %v223
    %v431 = vpop.f32.mrf.mxu0
    %v432 = vadd.f32 0.0, %v431
    %433 = vmatmul.f32.gmra.mxu0 %v226
    %v434 = vpop.f32.mrf.mxu0
    %v435 = vadd.f32 0.0, %v434
    %436 = vmatmul.f32.gmra.mxu0 %v229
    %v437 = vpop.f32.mrf.mxu0
    %v438 = vadd.f32 0.0, %v437
    %439 = vmatmul.f32.gmra.mxu0 %v232
    %v440 = vpop.f32.mrf.mxu0
    %v441 = vadd.f32 0.0, %v440
    %442 = vmatmul.f32.gmra.mxu0 %v235
    %v443 = vpop.f32.mrf.mxu0
    %v444 = vadd.f32 0.0, %v443
    %445 = vmatmul.f32.gmra.mxu0 %v238
    %v446 = vpop.f32.mrf.mxu0
    %v447 = vadd.f32 0.0, %v446
    %448 = vmatmul.f32.gmra.mxu0 %v241
    %v449 = vpop.f32.mrf.mxu0
    %v450 = vadd.f32 0.0, %v449
    %451 = vmatmul.f32.gmra.mxu0 %v244
    %v452 = vpop.f32.mrf.mxu0
    %v453 = vadd.f32 0.0, %v452
    %454 = vmatmul.f32.gmra.mxu0 %v247
    %v455 = vpop.f32.mrf.mxu0
    %v456 = vadd.f32 0.0, %v455
    %457 = vmatmul.f32.gmra.mxu0 %v250
    %v458 = vpop.f32.mrf.mxu0
    %v459 = vadd.f32 0.0, %v458
    %460 = vmatmul.f32.gmra.mxu0 %v253
    %v461 = vpop.f32.mrf.mxu0
    %v462 = vadd.f32 0.0, %v461
    %463 = vmatmul.f32.gmra.mxu0 %v256
    %v464 = vpop.f32.mrf.mxu0
    %v465 = vadd.f32 0.0, %v464
    %466 = vmatmul.f32.gmra.mxu0 %v259
    %v467 = vpop.f32.mrf.mxu0
    %v468 = vadd.f32 0.0, %v467
    %469 = vmatmul.f32.gmra.mxu0 %v262
    %v470 = vpop.f32.mrf.mxu0
    %v471 = vadd.f32 0.0, %v470
    %472 = vmatmul.f32.gmra.mxu0 %v265
    %v473 = vpop.f32.mrf.mxu0
    %v474 = vadd.f32 0.0, %v473
    %475 = vmatmul.f32.gmra.mxu0 %v268
    %v476 = vpop.f32.mrf.mxu0
    %v477 = vadd.f32 0.0, %v476
    %478 = vmatmul.f32.gmra.mxu0 %v271
    %v479 = vpop.f32.mrf.mxu0
    %v480 = vadd.f32 0.0, %v479
    %481 = vmatmul.f32.gmra.mxu0 %v274
    %v482 = vpop.f32.mrf.mxu0
    %v483 = vadd.f32 0.0, %v482
    %484 = vmatmul.f32.gmra.mxu0 %v277
    %v485 = vpop.f32.mrf.mxu0
    %v486 = vadd.f32 0.0, %v485
    %487 = vmatmul.f32.gmra.mxu0 %v280
    %v488 = vpop.f32.mrf.mxu0
    %v489 = vadd.f32 0.0, %v488
    %490 = vmatmul.f32.gmra.mxu0 %v283
    %v491 = vpop.f32.mrf.mxu0
    %v492 = vadd.f32 0.0, %v491
    %493 = vmatmul.f32.gmra.mxu0 %v286
    %v494 = vpop.f32.mrf.mxu0
    %v495 = vadd.f32 0.0, %v494
    %496 = vmatmul.f32.gmra.mxu0 %v289
    %v497 = vpop.f32.mrf.mxu0
    %v498 = vadd.f32 0.0, %v497
    %499 = vmatmul.f32.gmra.mxu0 %v292
    %v500 = vpop.f32.mrf.mxu0
    %v501 = vadd.f32 0.0, %v500
    %502 = vmatmul.f32.gmra.mxu0 %v295
    %v503 = vpop.f32.mrf.mxu0
    %v504 = vadd.f32 0.0, %v503
    %505 = vmatmul.f32.gmra.mxu0 %v298
    %v506 = vpop.f32.mrf.mxu0
    %v507 = vadd.f32 0.0, %v506
    %508 = vmatmul.f32.gmra.mxu0 %v301
    %v509 = vpop.f32.mrf.mxu0
    %v510 = vadd.f32 0.0, %v509
    %511 = vmatmul.f32.gmra.mxu0 %v304
    %v512 = vpop.f32.mrf.mxu0
    %v513 = vadd.f32 0.0, %v512
    %514 = vmatmul.f32.gmra.mxu0 %v307
    %v515 = vpop.f32.mrf.mxu0
    %v516 = vadd.f32 0.0, %v515
    %517 = vmatmul.f32.gmra.mxu0 %v310
    %v518 = vpop.f32.mrf.mxu0
    %v519 = vadd.f32 0.0, %v518
    %520 = vmatmul.f32.gmra.mxu0 %v313
    %v521 = vpop.f32.mrf.mxu0
    %v522 = vadd.f32 0.0, %v521
    %523 = vmatmul.f32.gmra.mxu0 %v316
    %v524 = vpop.f32.mrf.mxu0
    %v525 = vadd.f32 0.0, %v524
    %526 = vmatmul.f32.gmra.mxu0 %v319
    %v527 = vpop.f32.mrf.mxu0
    %v528 = vadd.f32 0.0, %v527
    %529 = vmatmul.f32.gmra.mxu0 %v322
    %v530 = vpop.f32.mrf.mxu0
    %v531 = vadd.f32 0.0, %v530
    %532 = vmatmul.f32.gmra.mxu0 %v325
    %v533 = vpop.f32.mrf.mxu0
    %v534 = vadd.f32 0.0, %v533
    %535 = vmatmul.f32.gmra.mxu0 %v328
    %v536 = vpop.f32.mrf.mxu0
    %v537 = vadd.f32 0.0, %v536
    %538 = vmatmul.f32.gmra.mxu0 %v331
    %v539 = vpop.f32.mrf.mxu0
    %v540 = vadd.f32 0.0, %v539
    %541 = vmatmul.f32.gmra.mxu0 %v334
    %v542 = vpop.f32.mrf.mxu0
    %v543 = vadd.f32 0.0, %v542
    %544 = vmatmul.f32.gmra.mxu0 %v337
    %v545 = vpop.f32.mrf.mxu0
    %v546 = vadd.f32 0.0, %v545
    %547 = vmatmul.f32.gmra.mxu0 %v340
    %v548 = vpop.f32.mrf.mxu0
    %v549 = vadd.f32 0.0, %v548
    %550 = vmatmul.f32.gmra.mxu0 %v343
    %v551 = vpop.f32.mrf.mxu0
    %v552 = vadd.f32 0.0, %v551
    %553 = vmatmul.f32.gmra.mxu0 %v346
    %v554 = vpop.f32.mrf.mxu0
    %v555 = vadd.f32 0.0, %v554
    %556 = vmatmul.f32.gmra.mxu0 %v349
    %v557 = vpop.f32.mrf.mxu0
    %v558 = vadd.f32 0.0, %v557
    %559 = vdwg.mxu0
    %560 = vmatpush.msra.mxu0 0.0
    %561 = vmatpush.msra.mxu0 0.0
    %562 = vmatpush.msra.mxu0 0.0
    %563 = vmatpush.msra.mxu0 0.0
    %564 = vmatpush.msra.mxu0 0.0
    %565 = vmatpush.msra.mxu0 0.0
    %566 = vmatpush.msra.mxu0 0.0
    %567 = vmatpush.msra.mxu0 0.0
    %568 = vmatpush.msra.mxu0 0.0
    %569 = vmatpush.msra.mxu0 0.0
    %570 = vmatpush.msra.mxu0 0.0
    %571 = vmatpush.msra.mxu0 0.0
    %572 = vmatpush.msra.mxu0 0.0
    %573 = vmatpush.msra.mxu0 0.0
    %574 = vmatpush.msra.mxu0 0.0
    %575 = vmatpush.msra.mxu0 %v153
    %576 = vmatmul.f32.gmra.mxu0 %v160
    %v577 = vpop.f32.mrf.mxu0
    %v578 = vadd.f32 0.0, %v577
    %579 = vmatmul.f32.gmra.mxu0 %v163
    %v580 = vpop.f32.mrf.mxu0
    %v581 = vadd.f32 0.0, %v580
    %582 = vmatmul.f32.gmra.mxu0 %v166
    %v583 = vpop.f32.mrf.mxu0
    %v584 = vadd.f32 0.0, %v583
    %585 = vmatmul.f32.gmra.mxu0 %v169
    %v586 = vpop.f32.mrf.mxu0
    %v587 = vadd.f32 0.0, %v586
    %588 = vmatmul.f32.gmra.mxu0 %v172
    %v589 = vpop.f32.mrf.mxu0
    %v590 = vadd.f32 0.0, %v589
    %591 = vmatmul.f32.gmra.mxu0 %v175
    %v592 = vpop.f32.mrf.mxu0
    %v593 = vadd.f32 0.0, %v592
    %594 = vmatmul.f32.gmra.mxu0 %v178
    %v595 = vpop.f32.mrf.mxu0
    %v596 = vadd.f32 0.0, %v595
    %597 = vmatmul.f32.gmra.mxu0 %v181
    %v598 = vpop.f32.mrf.mxu0
    %v599 = vadd.f32 0.0, %v598
    %600 = vmatmul.f32.gmra.mxu0 %v184
    %v601 = vpop.f32.mrf.mxu0
    %v602 = vadd.f32 0.0, %v601
    %603 = vmatmul.f32.gmra.mxu0 %v187
    %v604 = vpop.f32.mrf.mxu0
    %v605 = vadd.f32 0.0, %v604
    %606 = vmatmul.f32.gmra.mxu0 %v190
    %v607 = vpop.f32.mrf.mxu0
    %v608 = vadd.f32 0.0, %v607
    %609 = vmatmul.f32.gmra.mxu0 %v193
    %v610 = vpop.f32.mrf.mxu0
    %v611 = vadd.f32 0.0, %v610
    %612 = vmatmul.f32.gmra.mxu0 %v196
    %v613 = vpop.f32.mrf.mxu0
    %v614 = vadd.f32 0.0, %v613
    %615 = vmatmul.f32.gmra.mxu0 %v199
    %v616 = vpop.f32.mrf.mxu0
    %v617 = vadd.f32 0.0, %v616
    %618 = vmatmul.f32.gmra.mxu0 %v202
    %v619 = vpop.f32.mrf.mxu0
    %v620 = vadd.f32 0.0, %v619
    %621 = vmatmul.f32.gmra.mxu0 %v205
    %v622 = vpop.f32.mrf.mxu0
    %v623 = vadd.f32 0.0, %v622
    %624 = vmatmul.f32.gmra.mxu0 %v208
    %v625 = vpop.f32.mrf.mxu0
    %v626 = vadd.f32 0.0, %v625
    %627 = vmatmul.f32.gmra.mxu0 %v211
    %v628 = vpop.f32.mrf.mxu0
    %v629 = vadd.f32 0.0, %v628
    %630 = vmatmul.f32.gmra.mxu0 %v214
    %v631 = vpop.f32.mrf.mxu0
    %v632 = vadd.f32 0.0, %v631
    %633 = vmatmul.f32.gmra.mxu0 %v217
    %v634 = vpop.f32.mrf.mxu0
    %v635 = vadd.f32 0.0, %v634
    %636 = vmatmul.f32.gmra.mxu0 %v220
    %v637 = vpop.f32.mrf.mxu0
    %v638 = vadd.f32 0.0, %v637
    %639 = vmatmul.f32.gmra.mxu0 %v223
    %v640 = vpop.f32.mrf.mxu0
    %v641 = vadd.f32 0.0, %v640
    %642 = vmatmul.f32.gmra.mxu0 %v226
    %v643 = vpop.f32.mrf.mxu0
    %v644 = vadd.f32 0.0, %v643
    %645 = vmatmul.f32.gmra.mxu0 %v229
    %v646 = vpop.f32.mrf.mxu0
    %v647 = vadd.f32 0.0, %v646
    %648 = vmatmul.f32.gmra.mxu0 %v232
    %v649 = vpop.f32.mrf.mxu0
    %v650 = vadd.f32 0.0, %v649
    %651 = vmatmul.f32.gmra.mxu0 %v235
    %v652 = vpop.f32.mrf.mxu0
    %v653 = vadd.f32 0.0, %v652
    %654 = vmatmul.f32.gmra.mxu0 %v238
    %v655 = vpop.f32.mrf.mxu0
    %v656 = vadd.f32 0.0, %v655
    %657 = vmatmul.f32.gmra.mxu0 %v241
    %v658 = vpop.f32.mrf.mxu0
    %v659 = vadd.f32 0.0, %v658
    %660 = vmatmul.f32.gmra.mxu0 %v244
    %v661 = vpop.f32.mrf.mxu0
    %v662 = vadd.f32 0.0, %v661
    %663 = vmatmul.f32.gmra.mxu0 %v247
    %v664 = vpop.f32.mrf.mxu0
    %v665 = vadd.f32 0.0, %v664
    %666 = vmatmul.f32.gmra.mxu0 %v250
    %v667 = vpop.f32.mrf.mxu0
    %v668 = vadd.f32 0.0, %v667
    %669 = vmatmul.f32.gmra.mxu0 %v253
    %v670 = vpop.f32.mrf.mxu0
    %v671 = vadd.f32 0.0, %v670
    %672 = vmatmul.f32.gmra.mxu0 %v256
    %v673 = vpop.f32.mrf.mxu0
    %v674 = vadd.f32 0.0, %v673
    %675 = vmatmul.f32.gmra.mxu0 %v259
    %v676 = vpop.f32.mrf.mxu0
    %v677 = vadd.f32 0.0, %v676
    %678 = vmatmul.f32.gmra.mxu0 %v262
    %v679 = vpop.f32.mrf.mxu0
    %v680 = vadd.f32 0.0, %v679
    %681 = vmatmul.f32.gmra.mxu0 %v265
    %v682 = vpop.f32.mrf.mxu0
    %v683 = vadd.f32 0.0, %v682
    %684 = vmatmul.f32.gmra.mxu0 %v268
    %v685 = vpop.f32.mrf.mxu0
    %v686 = vadd.f32 0.0, %v685
    %687 = vmatmul.f32.gmra.mxu0 %v271
    %v688 = vpop.f32.mrf.mxu0
    %v689 = vadd.f32 0.0, %v688
    %690 = vmatmul.f32.gmra.mxu0 %v274
    %v691 = vpop.f32.mrf.mxu0
    %v692 = vadd.f32 0.0, %v691
    %693 = vmatmul.f32.gmra.mxu0 %v277
    %v694 = vpop.f32.mrf.mxu0
    %v695 = vadd.f32 0.0, %v694
    %696 = vmatmul.f32.gmra.mxu0 %v280
    %v697 = vpop.f32.mrf.mxu0
    %v698 = vadd.f32 0.0, %v697
    %699 = vmatmul.f32.gmra.mxu0 %v283
    %v700 = vpop.f32.mrf.mxu0
    %v701 = vadd.f32 0.0, %v700
    %702 = vmatmul.f32.gmra.mxu0 %v286
    %v703 = vpop.f32.mrf.mxu0
    %v704 = vadd.f32 0.0, %v703
    %705 = vmatmul.f32.gmra.mxu0 %v289
    %v706 = vpop.f32.mrf.mxu0
    %v707 = vadd.f32 0.0, %v706
    %708 = vmatmul.f32.gmra.mxu0 %v292
    %v709 = vpop.f32.mrf.mxu0
    %v710 = vadd.f32 0.0, %v709
    %711 = vmatmul.f32.gmra.mxu0 %v295
    %v712 = vpop.f32.mrf.mxu0
    %v713 = vadd.f32 0.0, %v712
    %714 = vmatmul.f32.gmra.mxu0 %v298
    %v715 = vpop.f32.mrf.mxu0
    %v716 = vadd.f32 0.0, %v715
    %717 = vmatmul.f32.gmra.mxu0 %v301
    %v718 = vpop.f32.mrf.mxu0
    %v719 = vadd.f32 0.0, %v718
    %720 = vmatmul.f32.gmra.mxu0 %v304
    %v721 = vpop.f32.mrf.mxu0
    %v722 = vadd.f32 0.0, %v721
    %723 = vmatmul.f32.gmra.mxu0 %v307
    %v724 = vpop.f32.mrf.mxu0
    %v725 = vadd.f32 0.0, %v724
    %726 = vmatmul.f32.gmra.mxu0 %v310
    %v727 = vpop.f32.mrf.mxu0
    %v728 = vadd.f32 0.0, %v727
    %729 = vmatmul.f32.gmra.mxu0 %v313
    %v730 = vpop.f32.mrf.mxu0
    %v731 = vadd.f32 0.0, %v730
    %732 = vmatmul.f32.gmra.mxu0 %v316
    %v733 = vpop.f32.mrf.mxu0
    %v734 = vadd.f32 0.0, %v733
    %735 = vmatmul.f32.gmra.mxu0 %v319
    %v736 = vpop.f32.mrf.mxu0
    %v737 = vadd.f32 0.0, %v736
    %738 = vmatmul.f32.gmra.mxu0 %v322
    %v739 = vpop.f32.mrf.mxu0
    %v740 = vadd.f32 0.0, %v739
    %741 = vmatmul.f32.gmra.mxu0 %v325
    %v742 = vpop.f32.mrf.mxu0
    %v743 = vadd.f32 0.0, %v742
    %744 = vmatmul.f32.gmra.mxu0 %v328
    %v745 = vpop.f32.mrf.mxu0
    %v746 = vadd.f32 0.0, %v745
    %747 = vmatmul.f32.gmra.mxu0 %v331
    %v748 = vpop.f32.mrf.mxu0
    %v749 = vadd.f32 0.0, %v748
    %750 = vmatmul.f32.gmra.mxu0 %v334
    %v751 = vpop.f32.mrf.mxu0
    %v752 = vadd.f32 0.0, %v751
    %753 = vmatmul.f32.gmra.mxu0 %v337
    %v754 = vpop.f32.mrf.mxu0
    %v755 = vadd.f32 0.0, %v754
    %756 = vmatmul.f32.gmra.mxu0 %v340
    %v757 = vpop.f32.mrf.mxu0
    %v758 = vadd.f32 0.0, %v757
    %759 = vmatmul.f32.gmra.mxu0 %v343
    %v760 = vpop.f32.mrf.mxu0
    %v761 = vadd.f32 0.0, %v760
    %762 = vmatmul.f32.gmra.mxu0 %v346
    %v763 = vpop.f32.mrf.mxu0
    %v764 = vadd.f32 0.0, %v763
    %765 = vmatmul.f32.gmra.mxu0 %v349
    %v766 = vpop.f32.mrf.mxu0
    %v767 = vadd.f32 0.0, %v766
    %768 = vdwg.mxu0
    %769 = vmatpush.msra.mxu0 0.0
    %770 = vmatpush.msra.mxu0 0.0
    %771 = vmatpush.msra.mxu0 0.0
    %772 = vmatpush.msra.mxu0 0.0
    %773 = vmatpush.msra.mxu0 0.0
    %774 = vmatpush.msra.mxu0 0.0
    %775 = vmatpush.msra.mxu0 0.0
    %776 = vmatpush.msra.mxu0 0.0
    %777 = vmatpush.msra.mxu0 0.0
    %778 = vmatpush.msra.mxu0 0.0
    %779 = vmatpush.msra.mxu0 0.0
    %780 = vmatpush.msra.mxu0 0.0
    %781 = vmatpush.msra.mxu0 0.0
    %782 = vmatpush.msra.mxu0 0.0
    %783 = vmatpush.msra.mxu0 0.0
    %784 = vmatpush.msra.mxu0 %v154
    %785 = vmatmul.f32.gmra.mxu0 %v160
    %v786 = vpop.f32.mrf.mxu0
    %v787 = vadd.f32 0.0, %v786
    %788 = vmatmul.f32.gmra.mxu0 %v163
    %v789 = vpop.f32.mrf.mxu0
    %v790 = vadd.f32 0.0, %v789
    %791 = vmatmul.f32.gmra.mxu0 %v166
    %v792 = vpop.f32.mrf.mxu0
    %v793 = vadd.f32 0.0, %v792
    %794 = vmatmul.f32.gmra.mxu0 %v169
    %v795 = vpop.f32.mrf.mxu0
    %v796 = vadd.f32 0.0, %v795
    %797 = vmatmul.f32.gmra.mxu0 %v172
    %v798 = vpop.f32.mrf.mxu0
    %v799 = vadd.f32 0.0, %v798
    %800 = vmatmul.f32.gmra.mxu0 %v175
    %v801 = vpop.f32.mrf.mxu0
    %v802 = vadd.f32 0.0, %v801
    %803 = vmatmul.f32.gmra.mxu0 %v178
    %v804 = vpop.f32.mrf.mxu0
    %v805 = vadd.f32 0.0, %v804
    %806 = vmatmul.f32.gmra.mxu0 %v181
    %v807 = vpop.f32.mrf.mxu0
    %v808 = vadd.f32 0.0, %v807
    %809 = vmatmul.f32.gmra.mxu0 %v184
    %v810 = vpop.f32.mrf.mxu0
    %v811 = vadd.f32 0.0, %v810
    %812 = vmatmul.f32.gmra.mxu0 %v187
    %v813 = vpop.f32.mrf.mxu0
    %v814 = vadd.f32 0.0, %v813
    %815 = vmatmul.f32.gmra.mxu0 %v190
    %v816 = vpop.f32.mrf.mxu0
    %v817 = vadd.f32 0.0, %v816
    %818 = vmatmul.f32.gmra.mxu0 %v193
    %v819 = vpop.f32.mrf.mxu0
    %v820 = vadd.f32 0.0, %v819
    %821 = vmatmul.f32.gmra.mxu0 %v196
    %v822 = vpop.f32.mrf.mxu0
    %v823 = vadd.f32 0.0, %v822
    %824 = vmatmul.f32.gmra.mxu0 %v199
    %v825 = vpop.f32.mrf.mxu0
    %v826 = vadd.f32 0.0, %v825
    %827 = vmatmul.f32.gmra.mxu0 %v202
    %v828 = vpop.f32.mrf.mxu0
    %v829 = vadd.f32 0.0, %v828
    %830 = vmatmul.f32.gmra.mxu0 %v205
    %v831 = vpop.f32.mrf.mxu0
    %v832 = vadd.f32 0.0, %v831
    %833 = vmatmul.f32.gmra.mxu0 %v208
    %v834 = vpop.f32.mrf.mxu0
    %v835 = vadd.f32 0.0, %v834
    %836 = vmatmul.f32.gmra.mxu0 %v211
    %v837 = vpop.f32.mrf.mxu0
    %v838 = vadd.f32 0.0, %v837
    %839 = vmatmul.f32.gmra.mxu0 %v214
    %v840 = vpop.f32.mrf.mxu0
    %v841 = vadd.f32 0.0, %v840
    %842 = vmatmul.f32.gmra.mxu0 %v217
    %v843 = vpop.f32.mrf.mxu0
    %v844 = vadd.f32 0.0, %v843
    %845 = vmatmul.f32.gmra.mxu0 %v220
    %v846 = vpop.f32.mrf.mxu0
    %v847 = vadd.f32 0.0, %v846
    %848 = vmatmul.f32.gmra.mxu0 %v223
    %v849 = vpop.f32.mrf.mxu0
    %v850 = vadd.f32 0.0, %v849
    %851 = vmatmul.f32.gmra.mxu0 %v226
    %v852 = vpop.f32.mrf.mxu0
    %v853 = vadd.f32 0.0, %v852
    %854 = vmatmul.f32.gmra.mxu0 %v229
    %v855 = vpop.f32.mrf.mxu0
    %v856 = vadd.f32 0.0, %v855
    %857 = vmatmul.f32.gmra.mxu0 %v232
    %v858 = vpop.f32.mrf.mxu0
    %v859 = vadd.f32 0.0, %v858
    %860 = vmatmul.f32.gmra.mxu0 %v235
    %v861 = vpop.f32.mrf.mxu0
    %v862 = vadd.f32 0.0, %v861
    %863 = vmatmul.f32.gmra.mxu0 %v238
    %v864 = vpop.f32.mrf.mxu0
    %v865 = vadd.f32 0.0, %v864
    %866 = vmatmul.f32.gmra.mxu0 %v241
    %v867 = vpop.f32.mrf.mxu0
    %v868 = vadd.f32 0.0, %v867
    %869 = vmatmul.f32.gmra.mxu0 %v244
    %v870 = vpop.f32.mrf.mxu0
    %v871 = vadd.f32 0.0, %v870
    %872 = vmatmul.f32.gmra.mxu0 %v247
    %v873 = vpop.f32.mrf.mxu0
    %v874 = vadd.f32 0.0, %v873
    %875 = vmatmul.f32.gmra.mxu0 %v250
    %v876 = vpop.f32.mrf.mxu0
    %v877 = vadd.f32 0.0, %v876
    %878 = vmatmul.f32.gmra.mxu0 %v253
    %v879 = vpop.f32.mrf.mxu0
    %v880 = vadd.f32 0.0, %v879
    %881 = vmatmul.f32.gmra.mxu0 %v256
    %v882 = vpop.f32.mrf.mxu0
    %v883 = vadd.f32 0.0, %v882
    %884 = vmatmul.f32.gmra.mxu0 %v259
    %v885 = vpop.f32.mrf.mxu0
    %v886 = vadd.f32 0.0, %v885
    %887 = vmatmul.f32.gmra.mxu0 %v262
    %v888 = vpop.f32.mrf.mxu0
    %v889 = vadd.f32 0.0, %v888
    %890 = vmatmul.f32.gmra.mxu0 %v265
    %v891 = vpop.f32.mrf.mxu0
    %v892 = vadd.f32 0.0, %v891
    %893 = vmatmul.f32.gmra.mxu0 %v268
    %v894 = vpop.f32.mrf.mxu0
    %v895 = vadd.f32 0.0, %v894
    %896 = vmatmul.f32.gmra.mxu0 %v271
    %v897 = vpop.f32.mrf.mxu0
    %v898 = vadd.f32 0.0, %v897
    %899 = vmatmul.f32.gmra.mxu0 %v274
    %v900 = vpop.f32.mrf.mxu0
    %v901 = vadd.f32 0.0, %v900
    %902 = vmatmul.f32.gmra.mxu0 %v277
    %v903 = vpop.f32.mrf.mxu0
    %v904 = vadd.f32 0.0, %v903
    %905 = vmatmul.f32.gmra.mxu0 %v280
    %v906 = vpop.f32.mrf.mxu0
    %v907 = vadd.f32 0.0, %v906
    %908 = vmatmul.f32.gmra.mxu0 %v283
    %v909 = vpop.f32.mrf.mxu0
    %v910 = vadd.f32 0.0, %v909
    %911 = vmatmul.f32.gmra.mxu0 %v286
    %v912 = vpop.f32.mrf.mxu0
    %v913 = vadd.f32 0.0, %v912
    %914 = vmatmul.f32.gmra.mxu0 %v289
    %v915 = vpop.f32.mrf.mxu0
    %v916 = vadd.f32 0.0, %v915
    %917 = vmatmul.f32.gmra.mxu0 %v292
    %v918 = vpop.f32.mrf.mxu0
    %v919 = vadd.f32 0.0, %v918
    %920 = vmatmul.f32.gmra.mxu0 %v295
    %v921 = vpop.f32.mrf.mxu0
    %v922 = vadd.f32 0.0, %v921
    %923 = vmatmul.f32.gmra.mxu0 %v298
    %v924 = vpop.f32.mrf.mxu0
    %v925 = vadd.f32 0.0, %v924
    %926 = vmatmul.f32.gmra.mxu0 %v301
    %v927 = vpop.f32.mrf.mxu0
    %v928 = vadd.f32 0.0, %v927
    %929 = vmatmul.f32.gmra.mxu0 %v304
    %v930 = vpop.f32.mrf.mxu0
    %v931 = vadd.f32 0.0, %v930
    %932 = vmatmul.f32.gmra.mxu0 %v307
    %v933 = vpop.f32.mrf.mxu0
    %v934 = vadd.f32 0.0, %v933
    %935 = vmatmul.f32.gmra.mxu0 %v310
    %v936 = vpop.f32.mrf.mxu0
    %v937 = vadd.f32 0.0, %v936
    %938 = vmatmul.f32.gmra.mxu0 %v313
    %v939 = vpop.f32.mrf.mxu0
    %v940 = vadd.f32 0.0, %v939
    %941 = vmatmul.f32.gmra.mxu0 %v316
    %v942 = vpop.f32.mrf.mxu0
    %v943 = vadd.f32 0.0, %v942
    %944 = vmatmul.f32.gmra.mxu0 %v319
    %v945 = vpop.f32.mrf.mxu0
    %v946 = vadd.f32 0.0, %v945
    %947 = vmatmul.f32.gmra.mxu0 %v322
    %v948 = vpop.f32.mrf.mxu0
    %v949 = vadd.f32 0.0, %v948
    %950 = vmatmul.f32.gmra.mxu0 %v325
    %v951 = vpop.f32.mrf.mxu0
    %v952 = vadd.f32 0.0, %v951
    %953 = vmatmul.f32.gmra.mxu0 %v328
    %v954 = vpop.f32.mrf.mxu0
    %v955 = vadd.f32 0.0, %v954
    %956 = vmatmul.f32.gmra.mxu0 %v331
    %v957 = vpop.f32.mrf.mxu0
    %v958 = vadd.f32 0.0, %v957
    %959 = vmatmul.f32.gmra.mxu0 %v334
    %v960 = vpop.f32.mrf.mxu0
    %v961 = vadd.f32 0.0, %v960
    %962 = vmatmul.f32.gmra.mxu0 %v337
    %v963 = vpop.f32.mrf.mxu0
    %v964 = vadd.f32 0.0, %v963
    %965 = vmatmul.f32.gmra.mxu0 %v340
    %v966 = vpop.f32.mrf.mxu0
    %v967 = vadd.f32 0.0, %v966
    %968 = vmatmul.f32.gmra.mxu0 %v343
    %v969 = vpop.f32.mrf.mxu0
    %v970 = vadd.f32 0.0, %v969
    %971 = vmatmul.f32.gmra.mxu0 %v346
    %v972 = vpop.f32.mrf.mxu0
    %v973 = vadd.f32 0.0, %v972
    %974 = vmatmul.f32.gmra.mxu0 %v349
    %v975 = vpop.f32.mrf.mxu0
    %v976 = vadd.f32 0.0, %v975
    %977 = vdwg.mxu0
    %978 = vmatpush.msra.mxu0 0.0
    %979 = vmatpush.msra.mxu0 0.0
    %980 = vmatpush.msra.mxu0 0.0
    %981 = vmatpush.msra.mxu0 0.0
    %982 = vmatpush.msra.mxu0 0.0
    %983 = vmatpush.msra.mxu0 0.0
    %984 = vmatpush.msra.mxu0 0.0
    %985 = vmatpush.msra.mxu0 0.0
    %986 = vmatpush.msra.mxu0 0.0
    %987 = vmatpush.msra.mxu0 0.0
    %988 = vmatpush.msra.mxu0 0.0
    %989 = vmatpush.msra.mxu0 0.0
    %990 = vmatpush.msra.mxu0 0.0
    %991 = vmatpush.msra.mxu0 0.0
    %992 = vmatpush.msra.mxu0 0.0
    %993 = vmatpush.msra.mxu0 %v155
    %994 = vmatmul.f32.gmra.mxu0 %v160
    %v995 = vpop.f32.mrf.mxu0
    %v996 = vadd.f32 0.0, %v995
    %997 = vmatmul.f32.gmra.mxu0 %v163
    %v998 = vpop.f32.mrf.mxu0
    %v999 = vadd.f32 0.0, %v998
    %1000 = vmatmul.f32.gmra.mxu0 %v166
    %v1001 = vpop.f32.mrf.mxu0
    %v1002 = vadd.f32 0.0, %v1001
    %1003 = vmatmul.f32.gmra.mxu0 %v169
    %v1004 = vpop.f32.mrf.mxu0
    %v1005 = vadd.f32 0.0, %v1004
    %1006 = vmatmul.f32.gmra.mxu0 %v172
    %v1007 = vpop.f32.mrf.mxu0
    %v1008 = vadd.f32 0.0, %v1007
    %1009 = vmatmul.f32.gmra.mxu0 %v175
    %v1010 = vpop.f32.mrf.mxu0
    %v1011 = vadd.f32 0.0, %v1010
    %1012 = vmatmul.f32.gmra.mxu0 %v178
    %v1013 = vpop.f32.mrf.mxu0
    %v1014 = vadd.f32 0.0, %v1013
    %1015 = vmatmul.f32.gmra.mxu0 %v181
    %v1016 = vpop.f32.mrf.mxu0
    %v1017 = vadd.f32 0.0, %v1016
    %1018 = vmatmul.f32.gmra.mxu0 %v184
    %v1019 = vpop.f32.mrf.mxu0
    %v1020 = vadd.f32 0.0, %v1019
    %1021 = vmatmul.f32.gmra.mxu0 %v187
    %v1022 = vpop.f32.mrf.mxu0
    %v1023 = vadd.f32 0.0, %v1022
    %1024 = vmatmul.f32.gmra.mxu0 %v190
    %v1025 = vpop.f32.mrf.mxu0
    %v1026 = vadd.f32 0.0, %v1025
    %1027 = vmatmul.f32.gmra.mxu0 %v193
    %v1028 = vpop.f32.mrf.mxu0
    %v1029 = vadd.f32 0.0, %v1028
    %1030 = vmatmul.f32.gmra.mxu0 %v196
    %v1031 = vpop.f32.mrf.mxu0
    %v1032 = vadd.f32 0.0, %v1031
    %1033 = vmatmul.f32.gmra.mxu0 %v199
    %v1034 = vpop.f32.mrf.mxu0
    %v1035 = vadd.f32 0.0, %v1034
    %1036 = vmatmul.f32.gmra.mxu0 %v202
    %v1037 = vpop.f32.mrf.mxu0
    %v1038 = vadd.f32 0.0, %v1037
    %1039 = vmatmul.f32.gmra.mxu0 %v205
    %v1040 = vpop.f32.mrf.mxu0
    %v1041 = vadd.f32 0.0, %v1040
    %1042 = vmatmul.f32.gmra.mxu0 %v208
    %v1043 = vpop.f32.mrf.mxu0
    %v1044 = vadd.f32 0.0, %v1043
    %1045 = vmatmul.f32.gmra.mxu0 %v211
    %v1046 = vpop.f32.mrf.mxu0
    %v1047 = vadd.f32 0.0, %v1046
    %1048 = vmatmul.f32.gmra.mxu0 %v214
    %v1049 = vpop.f32.mrf.mxu0
    %v1050 = vadd.f32 0.0, %v1049
    %1051 = vmatmul.f32.gmra.mxu0 %v217
    %v1052 = vpop.f32.mrf.mxu0
    %v1053 = vadd.f32 0.0, %v1052
    %1054 = vmatmul.f32.gmra.mxu0 %v220
    %v1055 = vpop.f32.mrf.mxu0
    %v1056 = vadd.f32 0.0, %v1055
    %1057 = vmatmul.f32.gmra.mxu0 %v223
    %v1058 = vpop.f32.mrf.mxu0
    %v1059 = vadd.f32 0.0, %v1058
    %1060 = vmatmul.f32.gmra.mxu0 %v226
    %v1061 = vpop.f32.mrf.mxu0
    %v1062 = vadd.f32 0.0, %v1061
    %1063 = vmatmul.f32.gmra.mxu0 %v229
    %v1064 = vpop.f32.mrf.mxu0
    %v1065 = vadd.f32 0.0, %v1064
    %1066 = vmatmul.f32.gmra.mxu0 %v232
    %v1067 = vpop.f32.mrf.mxu0
    %v1068 = vadd.f32 0.0, %v1067
    %1069 = vmatmul.f32.gmra.mxu0 %v235
    %v1070 = vpop.f32.mrf.mxu0
    %v1071 = vadd.f32 0.0, %v1070
    %1072 = vmatmul.f32.gmra.mxu0 %v238
    %v1073 = vpop.f32.mrf.mxu0
    %v1074 = vadd.f32 0.0, %v1073
    %1075 = vmatmul.f32.gmra.mxu0 %v241
    %v1076 = vpop.f32.mrf.mxu0
    %v1077 = vadd.f32 0.0, %v1076
    %1078 = vmatmul.f32.gmra.mxu0 %v244
    %v1079 = vpop.f32.mrf.mxu0
    %v1080 = vadd.f32 0.0, %v1079
    %1081 = vmatmul.f32.gmra.mxu0 %v247
    %v1082 = vpop.f32.mrf.mxu0
    %v1083 = vadd.f32 0.0, %v1082
    %1084 = vmatmul.f32.gmra.mxu0 %v250
    %v1085 = vpop.f32.mrf.mxu0
    %v1086 = vadd.f32 0.0, %v1085
    %1087 = vmatmul.f32.gmra.mxu0 %v253
    %v1088 = vpop.f32.mrf.mxu0
    %v1089 = vadd.f32 0.0, %v1088
    %1090 = vmatmul.f32.gmra.mxu0 %v256
    %v1091 = vpop.f32.mrf.mxu0
    %v1092 = vadd.f32 0.0, %v1091
    %1093 = vmatmul.f32.gmra.mxu0 %v259
    %v1094 = vpop.f32.mrf.mxu0
    %v1095 = vadd.f32 0.0, %v1094
    %1096 = vmatmul.f32.gmra.mxu0 %v262
    %v1097 = vpop.f32.mrf.mxu0
    %v1098 = vadd.f32 0.0, %v1097
    %1099 = vmatmul.f32.gmra.mxu0 %v265
    %v1100 = vpop.f32.mrf.mxu0
    %v1101 = vadd.f32 0.0, %v1100
    %1102 = vmatmul.f32.gmra.mxu0 %v268
    %v1103 = vpop.f32.mrf.mxu0
    %v1104 = vadd.f32 0.0, %v1103
    %1105 = vmatmul.f32.gmra.mxu0 %v271
    %v1106 = vpop.f32.mrf.mxu0
    %v1107 = vadd.f32 0.0, %v1106
    %1108 = vmatmul.f32.gmra.mxu0 %v274
    %v1109 = vpop.f32.mrf.mxu0
    %v1110 = vadd.f32 0.0, %v1109
    %1111 = vmatmul.f32.gmra.mxu0 %v277
    %v1112 = vpop.f32.mrf.mxu0
    %v1113 = vadd.f32 0.0, %v1112
    %1114 = vmatmul.f32.gmra.mxu0 %v280
    %v1115 = vpop.f32.mrf.mxu0
    %v1116 = vadd.f32 0.0, %v1115
    %1117 = vmatmul.f32.gmra.mxu0 %v283
    %v1118 = vpop.f32.mrf.mxu0
    %v1119 = vadd.f32 0.0, %v1118
    %1120 = vmatmul.f32.gmra.mxu0 %v286
    %v1121 = vpop.f32.mrf.mxu0
    %v1122 = vadd.f32 0.0, %v1121
    %1123 = vmatmul.f32.gmra.mxu0 %v289
    %v1124 = vpop.f32.mrf.mxu0
    %v1125 = vadd.f32 0.0, %v1124
    %1126 = vmatmul.f32.gmra.mxu0 %v292
    %v1127 = vpop.f32.mrf.mxu0
    %v1128 = vadd.f32 0.0, %v1127
    %1129 = vmatmul.f32.gmra.mxu0 %v295
    %v1130 = vpop.f32.mrf.mxu0
    %v1131 = vadd.f32 0.0, %v1130
    %1132 = vmatmul.f32.gmra.mxu0 %v298
    %v1133 = vpop.f32.mrf.mxu0
    %v1134 = vadd.f32 0.0, %v1133
    %1135 = vmatmul.f32.gmra.mxu0 %v301
    %v1136 = vpop.f32.mrf.mxu0
    %v1137 = vadd.f32 0.0, %v1136
    %1138 = vmatmul.f32.gmra.mxu0 %v304
    %v1139 = vpop.f32.mrf.mxu0
    %v1140 = vadd.f32 0.0, %v1139
    %1141 = vmatmul.f32.gmra.mxu0 %v307
    %v1142 = vpop.f32.mrf.mxu0
    %v1143 = vadd.f32 0.0, %v1142
    %1144 = vmatmul.f32.gmra.mxu0 %v310
    %v1145 = vpop.f32.mrf.mxu0
    %v1146 = vadd.f32 0.0, %v1145
    %1147 = vmatmul.f32.gmra.mxu0 %v313
    %v1148 = vpop.f32.mrf.mxu0
    %v1149 = vadd.f32 0.0, %v1148
    %1150 = vmatmul.f32.gmra.mxu0 %v316
    %v1151 = vpop.f32.mrf.mxu0
    %v1152 = vadd.f32 0.0, %v1151
    %1153 = vmatmul.f32.gmra.mxu0 %v319
    %v1154 = vpop.f32.mrf.mxu0
    %v1155 = vadd.f32 0.0, %v1154
    %1156 = vmatmul.f32.gmra.mxu0 %v322
    %v1157 = vpop.f32.mrf.mxu0
    %v1158 = vadd.f32 0.0, %v1157
    %1159 = vmatmul.f32.gmra.mxu0 %v325
    %v1160 = vpop.f32.mrf.mxu0
    %v1161 = vadd.f32 0.0, %v1160
    %1162 = vmatmul.f32.gmra.mxu0 %v328
    %v1163 = vpop.f32.mrf.mxu0
    %v1164 = vadd.f32 0.0, %v1163
    %1165 = vmatmul.f32.gmra.mxu0 %v331
    %v1166 = vpop.f32.mrf.mxu0
    %v1167 = vadd.f32 0.0, %v1166
    %1168 = vmatmul.f32.gmra.mxu0 %v334
    %v1169 = vpop.f32.mrf.mxu0
    %v1170 = vadd.f32 0.0, %v1169
    %1171 = vmatmul.f32.gmra.mxu0 %v337
    %v1172 = vpop.f32.mrf.mxu0
    %v1173 = vadd.f32 0.0, %v1172
    %1174 = vmatmul.f32.gmra.mxu0 %v340
    %v1175 = vpop.f32.mrf.mxu0
    %v1176 = vadd.f32 0.0, %v1175
    %1177 = vmatmul.f32.gmra.mxu0 %v343
    %v1178 = vpop.f32.mrf.mxu0
    %v1179 = vadd.f32 0.0, %v1178
    %1180 = vmatmul.f32.gmra.mxu0 %v346
    %v1181 = vpop.f32.mrf.mxu0
    %v1182 = vadd.f32 0.0, %v1181
    %1183 = vmatmul.f32.gmra.mxu0 %v349
    %v1184 = vpop.f32.mrf.mxu0
    %v1185 = vadd.f32 0.0, %v1184
    %1186 = vdwg.mxu0
    %v1188 = vperm.slane %v157, 0
    %v1189 = vperm.slane %v157, 1
    %v1190 = vperm.slane %v157, 2
    %v1191 = vperm.slane %v157, 3
    %vm1196 = vcmp.eq.f32.partialorder %v369, %v1188
    %vm1197 = vcmp.eq.f32.partialorder %v578, %v1189
    %vm1198 = vcmp.eq.f32.partialorder %v787, %v1190
    %vm1199 = vcmp.eq.f32.partialorder %v996, %v1191
    %vm1200 = vcmp.eq.f32.partialorder %v372, %v1188
    %vm1201 = vcmp.eq.f32.partialorder %v581, %v1189
    %vm1202 = vcmp.eq.f32.partialorder %v790, %v1190
    %vm1203 = vcmp.eq.f32.partialorder %v999, %v1191
    %vm1204 = vcmp.eq.f32.partialorder %v375, %v1188
    %vm1205 = vcmp.eq.f32.partialorder %v584, %v1189
    %vm1206 = vcmp.eq.f32.partialorder %v793, %v1190
    %vm1207 = vcmp.eq.f32.partialorder %v1002, %v1191
    %vm1208 = vcmp.eq.f32.partialorder %v378, %v1188
    %vm1209 = vcmp.eq.f32.partialorder %v587, %v1189
    %vm1210 = vcmp.eq.f32.partialorder %v796, %v1190
    %vm1211 = vcmp.eq.f32.partialorder %v1005, %v1191
    %vm1212 = vcmp.eq.f32.partialorder %v381, %v1188
    %vm1213 = vcmp.eq.f32.partialorder %v590, %v1189
    %vm1214 = vcmp.eq.f32.partialorder %v799, %v1190
    %vm1215 = vcmp.eq.f32.partialorder %v1008, %v1191
    %vm1216 = vcmp.eq.f32.partialorder %v384, %v1188
    %vm1217 = vcmp.eq.f32.partialorder %v593, %v1189
    %vm1218 = vcmp.eq.f32.partialorder %v802, %v1190
    %vm1219 = vcmp.eq.f32.partialorder %v1011, %v1191
    %vm1220 = vcmp.eq.f32.partialorder %v387, %v1188
    %vm1221 = vcmp.eq.f32.partialorder %v596, %v1189
    %vm1222 = vcmp.eq.f32.partialorder %v805, %v1190
    %vm1223 = vcmp.eq.f32.partialorder %v1014, %v1191
    %vm1224 = vcmp.eq.f32.partialorder %v390, %v1188
    %vm1225 = vcmp.eq.f32.partialorder %v599, %v1189
    %vm1226 = vcmp.eq.f32.partialorder %v808, %v1190
    %vm1227 = vcmp.eq.f32.partialorder %v1017, %v1191
    %vm1228 = vcmp.eq.f32.partialorder %v393, %v1188
    %vm1229 = vcmp.eq.f32.partialorder %v602, %v1189
    %vm1230 = vcmp.eq.f32.partialorder %v811, %v1190
    %vm1231 = vcmp.eq.f32.partialorder %v1020, %v1191
    %vm1232 = vcmp.eq.f32.partialorder %v396, %v1188
    %vm1233 = vcmp.eq.f32.partialorder %v605, %v1189
    %vm1234 = vcmp.eq.f32.partialorder %v814, %v1190
    %vm1235 = vcmp.eq.f32.partialorder %v1023, %v1191
    %vm1236 = vcmp.eq.f32.partialorder %v399, %v1188
    %vm1237 = vcmp.eq.f32.partialorder %v608, %v1189
    %vm1238 = vcmp.eq.f32.partialorder %v817, %v1190
    %vm1239 = vcmp.eq.f32.partialorder %v1026, %v1191
    %vm1240 = vcmp.eq.f32.partialorder %v402, %v1188
    %vm1241 = vcmp.eq.f32.partialorder %v611, %v1189
    %vm1242 = vcmp.eq.f32.partialorder %v820, %v1190
    %vm1243 = vcmp.eq.f32.partialorder %v1029, %v1191
    %vm1244 = vcmp.eq.f32.partialorder %v405, %v1188
    %vm1245 = vcmp.eq.f32.partialorder %v614, %v1189
    %vm1246 = vcmp.eq.f32.partialorder %v823, %v1190
    %vm1247 = vcmp.eq.f32.partialorder %v1032, %v1191
    %vm1248 = vcmp.eq.f32.partialorder %v408, %v1188
    %vm1249 = vcmp.eq.f32.partialorder %v617, %v1189
    %vm1250 = vcmp.eq.f32.partialorder %v826, %v1190
    %vm1251 = vcmp.eq.f32.partialorder %v1035, %v1191
    %vm1252 = vcmp.eq.f32.partialorder %v411, %v1188
    %vm1253 = vcmp.eq.f32.partialorder %v620, %v1189
    %vm1254 = vcmp.eq.f32.partialorder %v829, %v1190
    %vm1255 = vcmp.eq.f32.partialorder %v1038, %v1191
    %vm1256 = vcmp.eq.f32.partialorder %v414, %v1188
    %vm1257 = vcmp.eq.f32.partialorder %v623, %v1189
    %vm1258 = vcmp.eq.f32.partialorder %v832, %v1190
    %vm1259 = vcmp.eq.f32.partialorder %v1041, %v1191
    %vm1260 = vcmp.eq.f32.partialorder %v417, %v1188
    %vm1261 = vcmp.eq.f32.partialorder %v626, %v1189
    %vm1262 = vcmp.eq.f32.partialorder %v835, %v1190
    %vm1263 = vcmp.eq.f32.partialorder %v1044, %v1191
    %vm1264 = vcmp.eq.f32.partialorder %v420, %v1188
    %vm1265 = vcmp.eq.f32.partialorder %v629, %v1189
    %vm1266 = vcmp.eq.f32.partialorder %v838, %v1190
    %vm1267 = vcmp.eq.f32.partialorder %v1047, %v1191
    %vm1268 = vcmp.eq.f32.partialorder %v423, %v1188
    %vm1269 = vcmp.eq.f32.partialorder %v632, %v1189
    %vm1270 = vcmp.eq.f32.partialorder %v841, %v1190
    %vm1271 = vcmp.eq.f32.partialorder %v1050, %v1191
    %vm1272 = vcmp.eq.f32.partialorder %v426, %v1188
    %vm1273 = vcmp.eq.f32.partialorder %v635, %v1189
    %vm1274 = vcmp.eq.f32.partialorder %v844, %v1190
    %vm1275 = vcmp.eq.f32.partialorder %v1053, %v1191
    %vm1276 = vcmp.eq.f32.partialorder %v429, %v1188
    %vm1277 = vcmp.eq.f32.partialorder %v638, %v1189
    %vm1278 = vcmp.eq.f32.partialorder %v847, %v1190
    %vm1279 = vcmp.eq.f32.partialorder %v1056, %v1191
    %vm1280 = vcmp.eq.f32.partialorder %v432, %v1188
    %vm1281 = vcmp.eq.f32.partialorder %v641, %v1189
    %vm1282 = vcmp.eq.f32.partialorder %v850, %v1190
    %vm1283 = vcmp.eq.f32.partialorder %v1059, %v1191
    %vm1284 = vcmp.eq.f32.partialorder %v435, %v1188
    %vm1285 = vcmp.eq.f32.partialorder %v644, %v1189
    %vm1286 = vcmp.eq.f32.partialorder %v853, %v1190
    %vm1287 = vcmp.eq.f32.partialorder %v1062, %v1191
    %vm1288 = vcmp.eq.f32.partialorder %v438, %v1188
    %vm1289 = vcmp.eq.f32.partialorder %v647, %v1189
    %vm1290 = vcmp.eq.f32.partialorder %v856, %v1190
    %vm1291 = vcmp.eq.f32.partialorder %v1065, %v1191
    %vm1292 = vcmp.eq.f32.partialorder %v441, %v1188
    %vm1293 = vcmp.eq.f32.partialorder %v650, %v1189
    %vm1294 = vcmp.eq.f32.partialorder %v859, %v1190
    %vm1295 = vcmp.eq.f32.partialorder %v1068, %v1191
    %vm1296 = vcmp.eq.f32.partialorder %v444, %v1188
    %vm1297 = vcmp.eq.f32.partialorder %v653, %v1189
    %vm1298 = vcmp.eq.f32.partialorder %v862, %v1190
    %vm1299 = vcmp.eq.f32.partialorder %v1071, %v1191
    %vm1300 = vcmp.eq.f32.partialorder %v447, %v1188
    %vm1301 = vcmp.eq.f32.partialorder %v656, %v1189
    %vm1302 = vcmp.eq.f32.partialorder %v865, %v1190
    %vm1303 = vcmp.eq.f32.partialorder %v1074, %v1191
    %vm1304 = vcmp.eq.f32.partialorder %v450, %v1188
    %vm1305 = vcmp.eq.f32.partialorder %v659, %v1189
    %vm1306 = vcmp.eq.f32.partialorder %v868, %v1190
    %vm1307 = vcmp.eq.f32.partialorder %v1077, %v1191
    %vm1308 = vcmp.eq.f32.partialorder %v453, %v1188
    %vm1309 = vcmp.eq.f32.partialorder %v662, %v1189
    %vm1310 = vcmp.eq.f32.partialorder %v871, %v1190
    %vm1311 = vcmp.eq.f32.partialorder %v1080, %v1191
    %vm1312 = vcmp.eq.f32.partialorder %v456, %v1188
    %vm1313 = vcmp.eq.f32.partialorder %v665, %v1189
    %vm1314 = vcmp.eq.f32.partialorder %v874, %v1190
    %vm1315 = vcmp.eq.f32.partialorder %v1083, %v1191
    %vm1316 = vcmp.eq.f32.partialorder %v459, %v1188
    %vm1317 = vcmp.eq.f32.partialorder %v668, %v1189
    %vm1318 = vcmp.eq.f32.partialorder %v877, %v1190
    %vm1319 = vcmp.eq.f32.partialorder %v1086, %v1191
    %vm1320 = vcmp.eq.f32.partialorder %v462, %v1188
    %vm1321 = vcmp.eq.f32.partialorder %v671, %v1189
    %vm1322 = vcmp.eq.f32.partialorder %v880, %v1190
    %vm1323 = vcmp.eq.f32.partialorder %v1089, %v1191
    %vm1324 = vcmp.eq.f32.partialorder %v465, %v1188
    %vm1325 = vcmp.eq.f32.partialorder %v674, %v1189
    %vm1326 = vcmp.eq.f32.partialorder %v883, %v1190
    %vm1327 = vcmp.eq.f32.partialorder %v1092, %v1191
    %vm1328 = vcmp.eq.f32.partialorder %v468, %v1188
    %vm1329 = vcmp.eq.f32.partialorder %v677, %v1189
    %vm1330 = vcmp.eq.f32.partialorder %v886, %v1190
    %vm1331 = vcmp.eq.f32.partialorder %v1095, %v1191
    %vm1332 = vcmp.eq.f32.partialorder %v471, %v1188
    %vm1333 = vcmp.eq.f32.partialorder %v680, %v1189
    %vm1334 = vcmp.eq.f32.partialorder %v889, %v1190
    %vm1335 = vcmp.eq.f32.partialorder %v1098, %v1191
    %vm1336 = vcmp.eq.f32.partialorder %v474, %v1188
    %vm1337 = vcmp.eq.f32.partialorder %v683, %v1189
    %vm1338 = vcmp.eq.f32.partialorder %v892, %v1190
    %vm1339 = vcmp.eq.f32.partialorder %v1101, %v1191
    %vm1340 = vcmp.eq.f32.partialorder %v477, %v1188
    %vm1341 = vcmp.eq.f32.partialorder %v686, %v1189
    %vm1342 = vcmp.eq.f32.partialorder %v895, %v1190
    %vm1343 = vcmp.eq.f32.partialorder %v1104, %v1191
    %vm1344 = vcmp.eq.f32.partialorder %v480, %v1188
    %vm1345 = vcmp.eq.f32.partialorder %v689, %v1189
    %vm1346 = vcmp.eq.f32.partialorder %v898, %v1190
    %vm1347 = vcmp.eq.f32.partialorder %v1107, %v1191
    %vm1348 = vcmp.eq.f32.partialorder %v483, %v1188
    %vm1349 = vcmp.eq.f32.partialorder %v692, %v1189
    %vm1350 = vcmp.eq.f32.partialorder %v901, %v1190
    %vm1351 = vcmp.eq.f32.partialorder %v1110, %v1191
    %vm1352 = vcmp.eq.f32.partialorder %v486, %v1188
    %vm1353 = vcmp.eq.f32.partialorder %v695, %v1189
    %vm1354 = vcmp.eq.f32.partialorder %v904, %v1190
    %vm1355 = vcmp.eq.f32.partialorder %v1113, %v1191
    %vm1356 = vcmp.eq.f32.partialorder %v489, %v1188
    %vm1357 = vcmp.eq.f32.partialorder %v698, %v1189
    %vm1358 = vcmp.eq.f32.partialorder %v907, %v1190
    %vm1359 = vcmp.eq.f32.partialorder %v1116, %v1191
    %vm1360 = vcmp.eq.f32.partialorder %v492, %v1188
    %vm1361 = vcmp.eq.f32.partialorder %v701, %v1189
    %vm1362 = vcmp.eq.f32.partialorder %v910, %v1190
    %vm1363 = vcmp.eq.f32.partialorder %v1119, %v1191
    %vm1364 = vcmp.eq.f32.partialorder %v495, %v1188
    %vm1365 = vcmp.eq.f32.partialorder %v704, %v1189
    %vm1366 = vcmp.eq.f32.partialorder %v913, %v1190
    %vm1367 = vcmp.eq.f32.partialorder %v1122, %v1191
    %vm1368 = vcmp.eq.f32.partialorder %v498, %v1188
    %vm1369 = vcmp.eq.f32.partialorder %v707, %v1189
    %vm1370 = vcmp.eq.f32.partialorder %v916, %v1190
    %vm1371 = vcmp.eq.f32.partialorder %v1125, %v1191
    %vm1372 = vcmp.eq.f32.partialorder %v501, %v1188
    %vm1373 = vcmp.eq.f32.partialorder %v710, %v1189
    %vm1374 = vcmp.eq.f32.partialorder %v919, %v1190
    %vm1375 = vcmp.eq.f32.partialorder %v1128, %v1191
    %vm1376 = vcmp.eq.f32.partialorder %v504, %v1188
    %vm1377 = vcmp.eq.f32.partialorder %v713, %v1189
    %vm1378 = vcmp.eq.f32.partialorder %v922, %v1190
    %vm1379 = vcmp.eq.f32.partialorder %v1131, %v1191
    %vm1380 = vcmp.eq.f32.partialorder %v507, %v1188
    %vm1381 = vcmp.eq.f32.partialorder %v716, %v1189
    %vm1382 = vcmp.eq.f32.partialorder %v925, %v1190
    %vm1383 = vcmp.eq.f32.partialorder %v1134, %v1191
    %vm1384 = vcmp.eq.f32.partialorder %v510, %v1188
    %vm1385 = vcmp.eq.f32.partialorder %v719, %v1189
    %vm1386 = vcmp.eq.f32.partialorder %v928, %v1190
    %vm1387 = vcmp.eq.f32.partialorder %v1137, %v1191
    %vm1388 = vcmp.eq.f32.partialorder %v513, %v1188
    %vm1389 = vcmp.eq.f32.partialorder %v722, %v1189
    %vm1390 = vcmp.eq.f32.partialorder %v931, %v1190
    %vm1391 = vcmp.eq.f32.partialorder %v1140, %v1191
    %vm1392 = vcmp.eq.f32.partialorder %v516, %v1188
    %vm1393 = vcmp.eq.f32.partialorder %v725, %v1189
    %vm1394 = vcmp.eq.f32.partialorder %v934, %v1190
    %vm1395 = vcmp.eq.f32.partialorder %v1143, %v1191
    %vm1396 = vcmp.eq.f32.partialorder %v519, %v1188
    %vm1397 = vcmp.eq.f32.partialorder %v728, %v1189
    %vm1398 = vcmp.eq.f32.partialorder %v937, %v1190
    %vm1399 = vcmp.eq.f32.partialorder %v1146, %v1191
    %vm1400 = vcmp.eq.f32.partialorder %v522, %v1188
    %vm1401 = vcmp.eq.f32.partialorder %v731, %v1189
    %vm1402 = vcmp.eq.f32.partialorder %v940, %v1190
    %vm1403 = vcmp.eq.f32.partialorder %v1149, %v1191
    %vm1404 = vcmp.eq.f32.partialorder %v525, %v1188
    %vm1405 = vcmp.eq.f32.partialorder %v734, %v1189
    %vm1406 = vcmp.eq.f32.partialorder %v943, %v1190
    %vm1407 = vcmp.eq.f32.partialorder %v1152, %v1191
    %vm1408 = vcmp.eq.f32.partialorder %v528, %v1188
    %vm1409 = vcmp.eq.f32.partialorder %v737, %v1189
    %vm1410 = vcmp.eq.f32.partialorder %v946, %v1190
    %vm1411 = vcmp.eq.f32.partialorder %v1155, %v1191
    %vm1412 = vcmp.eq.f32.partialorder %v531, %v1188
    %vm1413 = vcmp.eq.f32.partialorder %v740, %v1189
    %vm1414 = vcmp.eq.f32.partialorder %v949, %v1190
    %vm1415 = vcmp.eq.f32.partialorder %v1158, %v1191
    %vm1416 = vcmp.eq.f32.partialorder %v534, %v1188
    %vm1417 = vcmp.eq.f32.partialorder %v743, %v1189
    %vm1418 = vcmp.eq.f32.partialorder %v952, %v1190
    %vm1419 = vcmp.eq.f32.partialorder %v1161, %v1191
    %vm1420 = vcmp.eq.f32.partialorder %v537, %v1188
    %vm1421 = vcmp.eq.f32.partialorder %v746, %v1189
    %vm1422 = vcmp.eq.f32.partialorder %v955, %v1190
    %vm1423 = vcmp.eq.f32.partialorder %v1164, %v1191
    %vm1424 = vcmp.eq.f32.partialorder %v540, %v1188
    %vm1425 = vcmp.eq.f32.partialorder %v749, %v1189
    %vm1426 = vcmp.eq.f32.partialorder %v958, %v1190
    %vm1427 = vcmp.eq.f32.partialorder %v1167, %v1191
    %vm1428 = vcmp.eq.f32.partialorder %v543, %v1188
    %vm1429 = vcmp.eq.f32.partialorder %v752, %v1189
    %vm1430 = vcmp.eq.f32.partialorder %v961, %v1190
    %vm1431 = vcmp.eq.f32.partialorder %v1170, %v1191
    %vm1432 = vcmp.eq.f32.partialorder %v546, %v1188
    %vm1433 = vcmp.eq.f32.partialorder %v755, %v1189
    %vm1434 = vcmp.eq.f32.partialorder %v964, %v1190
    %vm1435 = vcmp.eq.f32.partialorder %v1173, %v1191
    %vm1436 = vcmp.eq.f32.partialorder %v549, %v1188
    %vm1437 = vcmp.eq.f32.partialorder %v758, %v1189
    %vm1438 = vcmp.eq.f32.partialorder %v967, %v1190
    %vm1439 = vcmp.eq.f32.partialorder %v1176, %v1191
    %vm1440 = vcmp.eq.f32.partialorder %v552, %v1188
    %vm1441 = vcmp.eq.f32.partialorder %v761, %v1189
    %vm1442 = vcmp.eq.f32.partialorder %v970, %v1190
    %vm1443 = vcmp.eq.f32.partialorder %v1179, %v1191
    %vm1444 = vcmp.eq.f32.partialorder %v555, %v1188
    %vm1445 = vcmp.eq.f32.partialorder %v764, %v1189
    %vm1446 = vcmp.eq.f32.partialorder %v973, %v1190
    %vm1447 = vcmp.eq.f32.partialorder %v1182, %v1191
    %vm1448 = vcmp.eq.f32.partialorder %v558, %v1188
    %vm1449 = vcmp.eq.f32.partialorder %v767, %v1189
    %vm1450 = vcmp.eq.f32.partialorder %v976, %v1190
    %vm1451 = vcmp.eq.f32.partialorder %v1185, %v1191
    %v1452 = vsel %vm1196, 1, 0
    %v1453 = vsel %vm1197, 1, 0
    %v1454 = vsel %vm1198, 1, 0
    %v1455 = vsel %vm1199, 1, 0
    %v1456 = vsel %vm1200, 1, 0
    %v1457 = vsel %vm1201, 1, 0
    %v1458 = vsel %vm1202, 1, 0
    %v1459 = vsel %vm1203, 1, 0
    %v1460 = vsel %vm1204, 1, 0
    %v1461 = vsel %vm1205, 1, 0
    %v1462 = vsel %vm1206, 1, 0
    %v1463 = vsel %vm1207, 1, 0
    %v1464 = vsel %vm1208, 1, 0
    %v1465 = vsel %vm1209, 1, 0
    %v1466 = vsel %vm1210, 1, 0
    %v1467 = vsel %vm1211, 1, 0
    %v1468 = vsel %vm1212, 1, 0
    %v1469 = vsel %vm1213, 1, 0
    %v1470 = vsel %vm1214, 1, 0
    %v1471 = vsel %vm1215, 1, 0
    %v1472 = vsel %vm1216, 1, 0
    %v1473 = vsel %vm1217, 1, 0
    %v1474 = vsel %vm1218, 1, 0
    %v1475 = vsel %vm1219, 1, 0
    %v1476 = vsel %vm1220, 1, 0
    %v1477 = vsel %vm1221, 1, 0
    %v1478 = vsel %vm1222, 1, 0
    %v1479 = vsel %vm1223, 1, 0
    %v1480 = vsel %vm1224, 1, 0
    %v1481 = vsel %vm1225, 1, 0
    %v1482 = vsel %vm1226, 1, 0
    %v1483 = vsel %vm1227, 1, 0
    %v1484 = vsel %vm1228, 1, 0
    %v1485 = vsel %vm1229, 1, 0
    %v1486 = vsel %vm1230, 1, 0
    %v1487 = vsel %vm1231, 1, 0
    %v1488 = vsel %vm1232, 1, 0
    %v1489 = vsel %vm1233, 1, 0
    %v1490 = vsel %vm1234, 1, 0
    %v1491 = vsel %vm1235, 1, 0
    %v1492 = vsel %vm1236, 1, 0
    %v1493 = vsel %vm1237, 1, 0
    %v1494 = vsel %vm1238, 1, 0
    %v1495 = vsel %vm1239, 1, 0
    %v1496 = vsel %vm1240, 1, 0
    %v1497 = vsel %vm1241, 1, 0
    %v1498 = vsel %vm1242, 1, 0
    %v1499 = vsel %vm1243, 1, 0
    %v1500 = vsel %vm1244, 1, 0
    %v1501 = vsel %vm1245, 1, 0
    %v1502 = vsel %vm1246, 1, 0
    %v1503 = vsel %vm1247, 1, 0
    %v1504 = vsel %vm1248, 1, 0
    %v1505 = vsel %vm1249, 1, 0
    %v1506 = vsel %vm1250, 1, 0
    %v1507 = vsel %vm1251, 1, 0
    %v1508 = vsel %vm1252, 1, 0
    %v1509 = vsel %vm1253, 1, 0
    %v1510 = vsel %vm1254, 1, 0
    %v1511 = vsel %vm1255, 1, 0
    %v1512 = vsel %vm1256, 1, 0
    %v1513 = vsel %vm1257, 1, 0
    %v1514 = vsel %vm1258, 1, 0
    %v1515 = vsel %vm1259, 1, 0
    %v1516 = vsel %vm1260, 1, 0
    %v1517 = vsel %vm1261, 1, 0
    %v1518 = vsel %vm1262, 1, 0
    %v1519 = vsel %vm1263, 1, 0
    %v1520 = vsel %vm1264, 1, 0
    %v1521 = vsel %vm1265, 1, 0
    %v1522 = vsel %vm1266, 1, 0
    %v1523 = vsel %vm1267, 1, 0
    %v1524 = vsel %vm1268, 1, 0
    %v1525 = vsel %vm1269, 1, 0
    %v1526 = vsel %vm1270, 1, 0
    %v1527 = vsel %vm1271, 1, 0
    %v1528 = vsel %vm1272, 1, 0
    %v1529 = vsel %vm1273, 1, 0
    %v1530 = vsel %vm1274, 1, 0
    %v1531 = vsel %vm1275, 1, 0
    %v1532 = vsel %vm1276, 1, 0
    %v1533 = vsel %vm1277, 1, 0
    %v1534 = vsel %vm1278, 1, 0
    %v1535 = vsel %vm1279, 1, 0
    %v1536 = vsel %vm1280, 1, 0
    %v1537 = vsel %vm1281, 1, 0
    %v1538 = vsel %vm1282, 1, 0
    %v1539 = vsel %vm1283, 1, 0
    %v1540 = vsel %vm1284, 1, 0
    %v1541 = vsel %vm1285, 1, 0
    %v1542 = vsel %vm1286, 1, 0
    %v1543 = vsel %vm1287, 1, 0
    %v1544 = vsel %vm1288, 1, 0
    %v1545 = vsel %vm1289, 1, 0
    %v1546 = vsel %vm1290, 1, 0
    %v1547 = vsel %vm1291, 1, 0
    %v1548 = vsel %vm1292, 1, 0
    %v1549 = vsel %vm1293, 1, 0
    %v1550 = vsel %vm1294, 1, 0
    %v1551 = vsel %vm1295, 1, 0
    %v1552 = vsel %vm1296, 1, 0
    %v1553 = vsel %vm1297, 1, 0
    %v1554 = vsel %vm1298, 1, 0
    %v1555 = vsel %vm1299, 1, 0
    %v1556 = vsel %vm1300, 1, 0
    %v1557 = vsel %vm1301, 1, 0
    %v1558 = vsel %vm1302, 1, 0
    %v1559 = vsel %vm1303, 1, 0
    %v1560 = vsel %vm1304, 1, 0
    %v1561 = vsel %vm1305, 1, 0
    %v1562 = vsel %vm1306, 1, 0
    %v1563 = vsel %vm1307, 1, 0
    %v1564 = vsel %vm1308, 1, 0
    %v1565 = vsel %vm1309, 1, 0
    %v1566 = vsel %vm1310, 1, 0
    %v1567 = vsel %vm1311, 1, 0
    %v1568 = vsel %vm1312, 1, 0
    %v1569 = vsel %vm1313, 1, 0
    %v1570 = vsel %vm1314, 1, 0
    %v1571 = vsel %vm1315, 1, 0
    %v1572 = vsel %vm1316, 1, 0
    %v1573 = vsel %vm1317, 1, 0
    %v1574 = vsel %vm1318, 1, 0
    %v1575 = vsel %vm1319, 1, 0
    %v1576 = vsel %vm1320, 1, 0
    %v1577 = vsel %vm1321, 1, 0
    %v1578 = vsel %vm1322, 1, 0
    %v1579 = vsel %vm1323, 1, 0
    %v1580 = vsel %vm1324, 1, 0
    %v1581 = vsel %vm1325, 1, 0
    %v1582 = vsel %vm1326, 1, 0
    %v1583 = vsel %vm1327, 1, 0
    %v1584 = vsel %vm1328, 1, 0
    %v1585 = vsel %vm1329, 1, 0
    %v1586 = vsel %vm1330, 1, 0
    %v1587 = vsel %vm1331, 1, 0
    %v1588 = vsel %vm1332, 1, 0
    %v1589 = vsel %vm1333, 1, 0
    %v1590 = vsel %vm1334, 1, 0
    %v1591 = vsel %vm1335, 1, 0
    %v1592 = vsel %vm1336, 1, 0
    %v1593 = vsel %vm1337, 1, 0
    %v1594 = vsel %vm1338, 1, 0
    %v1595 = vsel %vm1339, 1, 0
    %v1596 = vsel %vm1340, 1, 0
    %v1597 = vsel %vm1341, 1, 0
    %v1598 = vsel %vm1342, 1, 0
    %v1599 = vsel %vm1343, 1, 0
    %v1600 = vsel %vm1344, 1, 0
    %v1601 = vsel %vm1345, 1, 0
    %v1602 = vsel %vm1346, 1, 0
    %v1603 = vsel %vm1347, 1, 0
    %v1604 = vsel %vm1348, 1, 0
    %v1605 = vsel %vm1349, 1, 0
    %v1606 = vsel %vm1350, 1, 0
    %v1607 = vsel %vm1351, 1, 0
    %v1608 = vsel %vm1352, 1, 0
    %v1609 = vsel %vm1353, 1, 0
    %v1610 = vsel %vm1354, 1, 0
    %v1611 = vsel %vm1355, 1, 0
    %v1612 = vsel %vm1356, 1, 0
    %v1613 = vsel %vm1357, 1, 0
    %v1614 = vsel %vm1358, 1, 0
    %v1615 = vsel %vm1359, 1, 0
    %v1616 = vsel %vm1360, 1, 0
    %v1617 = vsel %vm1361, 1, 0
    %v1618 = vsel %vm1362, 1, 0
    %v1619 = vsel %vm1363, 1, 0
    %v1620 = vsel %vm1364, 1, 0
    %v1621 = vsel %vm1365, 1, 0
    %v1622 = vsel %vm1366, 1, 0
    %v1623 = vsel %vm1367, 1, 0
    %v1624 = vsel %vm1368, 1, 0
    %v1625 = vsel %vm1369, 1, 0
    %v1626 = vsel %vm1370, 1, 0
    %v1627 = vsel %vm1371, 1, 0
    %v1628 = vsel %vm1372, 1, 0
    %v1629 = vsel %vm1373, 1, 0
    %v1630 = vsel %vm1374, 1, 0
    %v1631 = vsel %vm1375, 1, 0
    %v1632 = vsel %vm1376, 1, 0
    %v1633 = vsel %vm1377, 1, 0
    %v1634 = vsel %vm1378, 1, 0
    %v1635 = vsel %vm1379, 1, 0
    %v1636 = vsel %vm1380, 1, 0
    %v1637 = vsel %vm1381, 1, 0
    %v1638 = vsel %vm1382, 1, 0
    %v1639 = vsel %vm1383, 1, 0
    %v1640 = vsel %vm1384, 1, 0
    %v1641 = vsel %vm1385, 1, 0
    %v1642 = vsel %vm1386, 1, 0
    %v1643 = vsel %vm1387, 1, 0
    %v1644 = vsel %vm1388, 1, 0
    %v1645 = vsel %vm1389, 1, 0
    %v1646 = vsel %vm1390, 1, 0
    %v1647 = vsel %vm1391, 1, 0
    %v1648 = vsel %vm1392, 1, 0
    %v1649 = vsel %vm1393, 1, 0
    %v1650 = vsel %vm1394, 1, 0
    %v1651 = vsel %vm1395, 1, 0
    %v1652 = vsel %vm1396, 1, 0
    %v1653 = vsel %vm1397, 1, 0
    %v1654 = vsel %vm1398, 1, 0
    %v1655 = vsel %vm1399, 1, 0
    %v1656 = vsel %vm1400, 1, 0
    %v1657 = vsel %vm1401, 1, 0
    %v1658 = vsel %vm1402, 1, 0
    %v1659 = vsel %vm1403, 1, 0
    %v1660 = vsel %vm1404, 1, 0
    %v1661 = vsel %vm1405, 1, 0
    %v1662 = vsel %vm1406, 1, 0
    %v1663 = vsel %vm1407, 1, 0
    %v1664 = vsel %vm1408, 1, 0
    %v1665 = vsel %vm1409, 1, 0
    %v1666 = vsel %vm1410, 1, 0
    %v1667 = vsel %vm1411, 1, 0
    %v1668 = vsel %vm1412, 1, 0
    %v1669 = vsel %vm1413, 1, 0
    %v1670 = vsel %vm1414, 1, 0
    %v1671 = vsel %vm1415, 1, 0
    %v1672 = vsel %vm1416, 1, 0
    %v1673 = vsel %vm1417, 1, 0
    %v1674 = vsel %vm1418, 1, 0
    %v1675 = vsel %vm1419, 1, 0
    %v1676 = vsel %vm1420, 1, 0
    %v1677 = vsel %vm1421, 1, 0
    %v1678 = vsel %vm1422, 1, 0
    %v1679 = vsel %vm1423, 1, 0
    %v1680 = vsel %vm1424, 1, 0
    %v1681 = vsel %vm1425, 1, 0
    %v1682 = vsel %vm1426, 1, 0
    %v1683 = vsel %vm1427, 1, 0
    %v1684 = vsel %vm1428, 1, 0
    %v1685 = vsel %vm1429, 1, 0
    %v1686 = vsel %vm1430, 1, 0
    %v1687 = vsel %vm1431, 1, 0
    %v1688 = vsel %vm1432, 1, 0
    %v1689 = vsel %vm1433, 1, 0
    %v1690 = vsel %vm1434, 1, 0
    %v1691 = vsel %vm1435, 1, 0
    %v1692 = vsel %vm1436, 1, 0
    %v1693 = vsel %vm1437, 1, 0
    %v1694 = vsel %vm1438, 1, 0
    %v1695 = vsel %vm1439, 1, 0
    %v1696 = vsel %vm1440, 1, 0
    %v1697 = vsel %vm1441, 1, 0
    %v1698 = vsel %vm1442, 1, 0
    %v1699 = vsel %vm1443, 1, 0
    %v1700 = vsel %vm1444, 1, 0
    %v1701 = vsel %vm1445, 1, 0
    %v1702 = vsel %vm1446, 1, 0
    %v1703 = vsel %vm1447, 1, 0
    %v1704 = vsel %vm1448, 1, 0
    %v1705 = vsel %vm1449, 1, 0
    %v1706 = vsel %vm1450, 1, 0
    %v1707 = vsel %vm1451, 1, 0
    %v1708 = vcvt.s32.f32 %v1452
    %v1709 = vcvt.s32.f32 %v1453
    %v1710 = vcvt.s32.f32 %v1454
    %v1711 = vcvt.s32.f32 %v1455
    %v1712 = vcvt.s32.f32 %v1456
    %v1713 = vcvt.s32.f32 %v1457
    %v1714 = vcvt.s32.f32 %v1458
    %v1715 = vcvt.s32.f32 %v1459
    %v1716 = vcvt.s32.f32 %v1460
    %v1717 = vcvt.s32.f32 %v1461
    %v1718 = vcvt.s32.f32 %v1462
    %v1719 = vcvt.s32.f32 %v1463
    %v1720 = vcvt.s32.f32 %v1464
    %v1721 = vcvt.s32.f32 %v1465
    %v1722 = vcvt.s32.f32 %v1466
    %v1723 = vcvt.s32.f32 %v1467
    %v1724 = vcvt.s32.f32 %v1468
    %v1725 = vcvt.s32.f32 %v1469
    %v1726 = vcvt.s32.f32 %v1470
    %v1727 = vcvt.s32.f32 %v1471
    %v1728 = vcvt.s32.f32 %v1472
    %v1729 = vcvt.s32.f32 %v1473
    %v1730 = vcvt.s32.f32 %v1474
    %v1731 = vcvt.s32.f32 %v1475
    %v1732 = vcvt.s32.f32 %v1476
    %v1733 = vcvt.s32.f32 %v1477
    %v1734 = vcvt.s32.f32 %v1478
    %v1735 = vcvt.s32.f32 %v1479
    %v1736 = vcvt.s32.f32 %v1480
    %v1737 = vcvt.s32.f32 %v1481
    %v1738 = vcvt.s32.f32 %v1482
    %v1739 = vcvt.s32.f32 %v1483
    %v1740 = vcvt.s32.f32 %v1484
    %v1741 = vcvt.s32.f32 %v1485
    %v1742 = vcvt.s32.f32 %v1486
    %v1743 = vcvt.s32.f32 %v1487
    %v1744 = vcvt.s32.f32 %v1488
    %v1745 = vcvt.s32.f32 %v1489
    %v1746 = vcvt.s32.f32 %v1490
    %v1747 = vcvt.s32.f32 %v1491
    %v1748 = vcvt.s32.f32 %v1492
    %v1749 = vcvt.s32.f32 %v1493
    %v1750 = vcvt.s32.f32 %v1494
    %v1751 = vcvt.s32.f32 %v1495
    %v1752 = vcvt.s32.f32 %v1496
    %v1753 = vcvt.s32.f32 %v1497
    %v1754 = vcvt.s32.f32 %v1498
    %v1755 = vcvt.s32.f32 %v1499
    %v1756 = vcvt.s32.f32 %v1500
    %v1757 = vcvt.s32.f32 %v1501
    %v1758 = vcvt.s32.f32 %v1502
    %v1759 = vcvt.s32.f32 %v1503
    %v1760 = vcvt.s32.f32 %v1504
    %v1761 = vcvt.s32.f32 %v1505
    %v1762 = vcvt.s32.f32 %v1506
    %v1763 = vcvt.s32.f32 %v1507
    %v1764 = vcvt.s32.f32 %v1508
    %v1765 = vcvt.s32.f32 %v1509
    %v1766 = vcvt.s32.f32 %v1510
    %v1767 = vcvt.s32.f32 %v1511
    %v1768 = vcvt.s32.f32 %v1512
    %v1769 = vcvt.s32.f32 %v1513
    %v1770 = vcvt.s32.f32 %v1514
    %v1771 = vcvt.s32.f32 %v1515
    %v1772 = vcvt.s32.f32 %v1516
    %v1773 = vcvt.s32.f32 %v1517
    %v1774 = vcvt.s32.f32 %v1518
    %v1775 = vcvt.s32.f32 %v1519
    %v1776 = vcvt.s32.f32 %v1520
    %v1777 = vcvt.s32.f32 %v1521
    %v1778 = vcvt.s32.f32 %v1522
    %v1779 = vcvt.s32.f32 %v1523
    %v1780 = vcvt.s32.f32 %v1524
    %v1781 = vcvt.s32.f32 %v1525
    %v1782 = vcvt.s32.f32 %v1526
    %v1783 = vcvt.s32.f32 %v1527
    %v1784 = vcvt.s32.f32 %v1528
    %v1785 = vcvt.s32.f32 %v1529
    %v1786 = vcvt.s32.f32 %v1530
    %v1787 = vcvt.s32.f32 %v1531
    %v1788 = vcvt.s32.f32 %v1532
    %v1789 = vcvt.s32.f32 %v1533
    %v1790 = vcvt.s32.f32 %v1534
    %v1791 = vcvt.s32.f32 %v1535
    %v1792 = vcvt.s32.f32 %v1536
    %v1793 = vcvt.s32.f32 %v1537
    %v1794 = vcvt.s32.f32 %v1538
    %v1795 = vcvt.s32.f32 %v1539
    %v1796 = vcvt.s32.f32 %v1540
    %v1797 = vcvt.s32.f32 %v1541
    %v1798 = vcvt.s32.f32 %v1542
    %v1799 = vcvt.s32.f32 %v1543
    %v1800 = vcvt.s32.f32 %v1544
    %v1801 = vcvt.s32.f32 %v1545
    %v1802 = vcvt.s32.f32 %v1546
    %v1803 = vcvt.s32.f32 %v1547
    %v1804 = vcvt.s32.f32 %v1548
    %v1805 = vcvt.s32.f32 %v1549
    %v1806 = vcvt.s32.f32 %v1550
    %v1807 = vcvt.s32.f32 %v1551
    %v1808 = vcvt.s32.f32 %v1552
    %v1809 = vcvt.s32.f32 %v1553
    %v1810 = vcvt.s32.f32 %v1554
    %v1811 = vcvt.s32.f32 %v1555
    %v1812 = vcvt.s32.f32 %v1556
    %v1813 = vcvt.s32.f32 %v1557
    %v1814 = vcvt.s32.f32 %v1558
    %v1815 = vcvt.s32.f32 %v1559
    %v1816 = vcvt.s32.f32 %v1560
    %v1817 = vcvt.s32.f32 %v1561
    %v1818 = vcvt.s32.f32 %v1562
    %v1819 = vcvt.s32.f32 %v1563
    %v1820 = vcvt.s32.f32 %v1564
    %v1821 = vcvt.s32.f32 %v1565
    %v1822 = vcvt.s32.f32 %v1566
    %v1823 = vcvt.s32.f32 %v1567
    %v1824 = vcvt.s32.f32 %v1568
    %v1825 = vcvt.s32.f32 %v1569
    %v1826 = vcvt.s32.f32 %v1570
    %v1827 = vcvt.s32.f32 %v1571
    %v1828 = vcvt.s32.f32 %v1572
    %v1829 = vcvt.s32.f32 %v1573
    %v1830 = vcvt.s32.f32 %v1574
    %v1831 = vcvt.s32.f32 %v1575
    %v1832 = vcvt.s32.f32 %v1576
    %v1833 = vcvt.s32.f32 %v1577
    %v1834 = vcvt.s32.f32 %v1578
    %v1835 = vcvt.s32.f32 %v1579
    %v1836 = vcvt.s32.f32 %v1580
    %v1837 = vcvt.s32.f32 %v1581
    %v1838 = vcvt.s32.f32 %v1582
    %v1839 = vcvt.s32.f32 %v1583
    %v1840 = vcvt.s32.f32 %v1584
    %v1841 = vcvt.s32.f32 %v1585
    %v1842 = vcvt.s32.f32 %v1586
    %v1843 = vcvt.s32.f32 %v1587
    %v1844 = vcvt.s32.f32 %v1588
    %v1845 = vcvt.s32.f32 %v1589
    %v1846 = vcvt.s32.f32 %v1590
    %v1847 = vcvt.s32.f32 %v1591
    %v1848 = vcvt.s32.f32 %v1592
    %v1849 = vcvt.s32.f32 %v1593
    %v1850 = vcvt.s32.f32 %v1594
    %v1851 = vcvt.s32.f32 %v1595
    %v1852 = vcvt.s32.f32 %v1596
    %v1853 = vcvt.s32.f32 %v1597
    %v1854 = vcvt.s32.f32 %v1598
    %v1855 = vcvt.s32.f32 %v1599
    %v1856 = vcvt.s32.f32 %v1600
    %v1857 = vcvt.s32.f32 %v1601
    %v1858 = vcvt.s32.f32 %v1602
    %v1859 = vcvt.s32.f32 %v1603
    %v1860 = vcvt.s32.f32 %v1604
    %v1861 = vcvt.s32.f32 %v1605
    %v1862 = vcvt.s32.f32 %v1606
    %v1863 = vcvt.s32.f32 %v1607
    %v1864 = vcvt.s32.f32 %v1608
    %v1865 = vcvt.s32.f32 %v1609
    %v1866 = vcvt.s32.f32 %v1610
    %v1867 = vcvt.s32.f32 %v1611
    %v1868 = vcvt.s32.f32 %v1612
    %v1869 = vcvt.s32.f32 %v1613
    %v1870 = vcvt.s32.f32 %v1614
    %v1871 = vcvt.s32.f32 %v1615
    %v1872 = vcvt.s32.f32 %v1616
    %v1873 = vcvt.s32.f32 %v1617
    %v1874 = vcvt.s32.f32 %v1618
    %v1875 = vcvt.s32.f32 %v1619
    %v1876 = vcvt.s32.f32 %v1620
    %v1877 = vcvt.s32.f32 %v1621
    %v1878 = vcvt.s32.f32 %v1622
    %v1879 = vcvt.s32.f32 %v1623
    %v1880 = vcvt.s32.f32 %v1624
    %v1881 = vcvt.s32.f32 %v1625
    %v1882 = vcvt.s32.f32 %v1626
    %v1883 = vcvt.s32.f32 %v1627
    %v1884 = vcvt.s32.f32 %v1628
    %v1885 = vcvt.s32.f32 %v1629
    %v1886 = vcvt.s32.f32 %v1630
    %v1887 = vcvt.s32.f32 %v1631
    %v1888 = vcvt.s32.f32 %v1632
    %v1889 = vcvt.s32.f32 %v1633
    %v1890 = vcvt.s32.f32 %v1634
    %v1891 = vcvt.s32.f32 %v1635
    %v1892 = vcvt.s32.f32 %v1636
    %v1893 = vcvt.s32.f32 %v1637
    %v1894 = vcvt.s32.f32 %v1638
    %v1895 = vcvt.s32.f32 %v1639
    %v1896 = vcvt.s32.f32 %v1640
    %v1897 = vcvt.s32.f32 %v1641
    %v1898 = vcvt.s32.f32 %v1642
    %v1899 = vcvt.s32.f32 %v1643
    %v1900 = vcvt.s32.f32 %v1644
    %v1901 = vcvt.s32.f32 %v1645
    %v1902 = vcvt.s32.f32 %v1646
    %v1903 = vcvt.s32.f32 %v1647
    %v1904 = vcvt.s32.f32 %v1648
    %v1905 = vcvt.s32.f32 %v1649
    %v1906 = vcvt.s32.f32 %v1650
    %v1907 = vcvt.s32.f32 %v1651
    %v1908 = vcvt.s32.f32 %v1652
    %v1909 = vcvt.s32.f32 %v1653
    %v1910 = vcvt.s32.f32 %v1654
    %v1911 = vcvt.s32.f32 %v1655
    %v1912 = vcvt.s32.f32 %v1656
    %v1913 = vcvt.s32.f32 %v1657
    %v1914 = vcvt.s32.f32 %v1658
    %v1915 = vcvt.s32.f32 %v1659
    %v1916 = vcvt.s32.f32 %v1660
    %v1917 = vcvt.s32.f32 %v1661
    %v1918 = vcvt.s32.f32 %v1662
    %v1919 = vcvt.s32.f32 %v1663
    %v1920 = vcvt.s32.f32 %v1664
    %v1921 = vcvt.s32.f32 %v1665
    %v1922 = vcvt.s32.f32 %v1666
    %v1923 = vcvt.s32.f32 %v1667
    %v1924 = vcvt.s32.f32 %v1668
    %v1925 = vcvt.s32.f32 %v1669
    %v1926 = vcvt.s32.f32 %v1670
    %v1927 = vcvt.s32.f32 %v1671
    %v1928 = vcvt.s32.f32 %v1672
    %v1929 = vcvt.s32.f32 %v1673
    %v1930 = vcvt.s32.f32 %v1674
    %v1931 = vcvt.s32.f32 %v1675
    %v1932 = vcvt.s32.f32 %v1676
    %v1933 = vcvt.s32.f32 %v1677
    %v1934 = vcvt.s32.f32 %v1678
    %v1935 = vcvt.s32.f32 %v1679
    %v1936 = vcvt.s32.f32 %v1680
    %v1937 = vcvt.s32.f32 %v1681
    %v1938 = vcvt.s32.f32 %v1682
    %v1939 = vcvt.s32.f32 %v1683
    %v1940 = vcvt.s32.f32 %v1684
    %v1941 = vcvt.s32.f32 %v1685
    %v1942 = vcvt.s32.f32 %v1686
    %v1943 = vcvt.s32.f32 %v1687
    %v1944 = vcvt.s32.f32 %v1688
    %v1945 = vcvt.s32.f32 %v1689
    %v1946 = vcvt.s32.f32 %v1690
    %v1947 = vcvt.s32.f32 %v1691
    %v1948 = vcvt.s32.f32 %v1692
    %v1949 = vcvt.s32.f32 %v1693
    %v1950 = vcvt.s32.f32 %v1694
    %v1951 = vcvt.s32.f32 %v1695
    %v1952 = vcvt.s32.f32 %v1696
    %v1953 = vcvt.s32.f32 %v1697
    %v1954 = vcvt.s32.f32 %v1698
    %v1955 = vcvt.s32.f32 %v1699
    %v1956 = vcvt.s32.f32 %v1700
    %v1957 = vcvt.s32.f32 %v1701
    %v1958 = vcvt.s32.f32 %v1702
    %v1959 = vcvt.s32.f32 %v1703
    %v1960 = vcvt.s32.f32 %v1704
    %v1961 = vcvt.s32.f32 %v1705
    %v1962 = vcvt.s32.f32 %v1706
    %v1963 = vcvt.s32.f32 %v1707
    %v1964 = vld [vmem:[%s2] sm:$0xff]
    %v1965 = vld [vmem:[%s2 + $0x8] sm:$0xff]
    %v1966 = vld [vmem:[%s2 + $0x10] sm:$0xff]
    %v1967 = vld [vmem:[%s2 + $0x18] sm:$0xff]
    %v1968 = vld [vmem:[%s2 + $0x20] sm:$0xff]
    %v1969 = vld [vmem:[%s2 + $0x28] sm:$0xff]
    %v1970 = vld [vmem:[%s2 + $0x30] sm:$0xff]
    %v1971 = vld [vmem:[%s2 + $0x38] sm:$0xff]
    %v1972 = vld [vmem:[%s2 + $0x40] sm:$0xff]
    %v1973 = vld [vmem:[%s2 + $0x48] sm:$0xff]
    %v1974 = vld [vmem:[%s2 + $0x50] sm:$0xff]
    %v1975 = vld [vmem:[%s2 + $0x58] sm:$0xff]
    %v1976 = vld [vmem:[%s2 + $0x60] sm:$0xff]
    %v1977 = vld [vmem:[%s2 + $0x68] sm:$0xff]
    %v1978 = vld [vmem:[%s2 + $0x70] sm:$0xff]
    %v1979 = vld [vmem:[%s2 + $0x78] sm:$0xff]
    %v1980 = vld [vmem:[%s2 + $0x80] sm:$0xff]
    %v1981 = vld [vmem:[%s2 + $0x88] sm:$0xff]
    %v1982 = vld [vmem:[%s2 + $0x90] sm:$0xff]
    %v1983 = vld [vmem:[%s2 + $0x98] sm:$0xff]
    %v1984 = vld [vmem:[%s2 + $0xa0] sm:$0xff]
    %v1985 = vld [vmem:[%s2 + $0xa8] sm:$0xff]
    %v1986 = vld [vmem:[%s2 + $0xb0] sm:$0xff]
    %v1987 = vld [vmem:[%s2 + $0xb8] sm:$0xff]
    %v1988 = vld [vmem:[%s2 + $0xc0] sm:$0xff]
    %v1989 = vld [vmem:[%s2 + $0xc8] sm:$0xff]
    %v1990 = vld [vmem:[%s2 + $0xd0] sm:$0xff]
    %v1991 = vld [vmem:[%s2 + $0xd8] sm:$0xff]
    %v1992 = vld [vmem:[%s2 + $0xe0] sm:$0xff]
    %v1993 = vld [vmem:[%s2 + $0xe8] sm:$0xff]
    %v1994 = vld [vmem:[%s2 + $0xf0] sm:$0xff]
    %v1995 = vld [vmem:[%s2 + $0xf8] sm:$0xff]
    %v1996 = vld [vmem:[%s2 + $0x100] sm:$0xff]
    %v1997 = vld [vmem:[%s2 + $0x108] sm:$0xff]
    %v1998 = vld [vmem:[%s2 + $0x110] sm:$0xff]
    %v1999 = vld [vmem:[%s2 + $0x118] sm:$0xff]
    %v2000 = vld [vmem:[%s2 + $0x120] sm:$0xff]
    %v2001 = vld [vmem:[%s2 + $0x128] sm:$0xff]
    %v2002 = vld [vmem:[%s2 + $0x130] sm:$0xff]
    %v2003 = vld [vmem:[%s2 + $0x138] sm:$0xff]
    %v2004 = vld [vmem:[%s2 + $0x140] sm:$0xff]
    %v2005 = vld [vmem:[%s2 + $0x148] sm:$0xff]
    %v2006 = vld [vmem:[%s2 + $0x150] sm:$0xff]
    %v2007 = vld [vmem:[%s2 + $0x158] sm:$0xff]
    %v2008 = vld [vmem:[%s2 + $0x160] sm:$0xff]
    %v2009 = vld [vmem:[%s2 + $0x168] sm:$0xff]
    %v2010 = vld [vmem:[%s2 + $0x170] sm:$0xff]
    %v2011 = vld [vmem:[%s2 + $0x178] sm:$0xff]
    %v2012 = vld [vmem:[%s2 + $0x180] sm:$0x1]
    %vm2013 = vcmask 7168
    %v2015 = vsel %vm2013, %v1711, 0
    %v2018 = vsel %vm2013, %v1715, 0
    %v2021 = vsel %vm2013, %v1719, 0
    %v2024 = vsel %vm2013, %v1723, 0
    %v2027 = vsel %vm2013, %v1727, 0
    %v2030 = vsel %vm2013, %v1731, 0
    %v2033 = vsel %vm2013, %v1735, 0
    %v2036 = vsel %vm2013, %v1739, 0
    %v2039 = vsel %vm2013, %v1743, 0
    %v2042 = vsel %vm2013, %v1747, 0
    %v2045 = vsel %vm2013, %v1751, 0
    %v2048 = vsel %vm2013, %v1755, 0
    %v2051 = vsel %vm2013, %v1759, 0
    %v2054 = vsel %vm2013, %v1763, 0
    %v2057 = vsel %vm2013, %v1767, 0
    %v2060 = vsel %vm2013, %v1771, 0
    %v2063 = vsel %vm2013, %v1775, 0
    %v2066 = vsel %vm2013, %v1779, 0
    %v2069 = vsel %vm2013, %v1783, 0
    %v2072 = vsel %vm2013, %v1787, 0
    %v2075 = vsel %vm2013, %v1791, 0
    %v2078 = vsel %vm2013, %v1795, 0
    %v2081 = vsel %vm2013, %v1799, 0
    %v2084 = vsel %vm2013, %v1803, 0
    %v2087 = vsel %vm2013, %v1807, 0
    %v2090 = vsel %vm2013, %v1811, 0
    %v2093 = vsel %vm2013, %v1815, 0
    %v2096 = vsel %vm2013, %v1819, 0
    %v2099 = vsel %vm2013, %v1823, 0
    %v2102 = vsel %vm2013, %v1827, 0
    %v2105 = vsel %vm2013, %v1831, 0
    %v2108 = vsel %vm2013, %v1835, 0
    %v2111 = vsel %vm2013, %v1839, 0
    %v2114 = vsel %vm2013, %v1843, 0
    %v2117 = vsel %vm2013, %v1847, 0
    %v2120 = vsel %vm2013, %v1851, 0
    %v2123 = vsel %vm2013, %v1855, 0
    %v2126 = vsel %vm2013, %v1859, 0
    %v2129 = vsel %vm2013, %v1863, 0
    %v2132 = vsel %vm2013, %v1867, 0
    %v2135 = vsel %vm2013, %v1871, 0
    %v2138 = vsel %vm2013, %v1875, 0
    %v2141 = vsel %vm2013, %v1879, 0
    %v2144 = vsel %vm2013, %v1883, 0
    %v2147 = vsel %vm2013, %v1887, 0
    %v2150 = vsel %vm2013, %v1891, 0
    %v2153 = vsel %vm2013, %v1895, 0
    %v2156 = vsel %vm2013, %v1899, 0
    %v2159 = vsel %vm2013, %v1903, 0
    %v2162 = vsel %vm2013, %v1907, 0
    %v2165 = vsel %vm2013, %v1911, 0
    %v2168 = vsel %vm2013, %v1915, 0
    %v2171 = vsel %vm2013, %v1919, 0
    %v2174 = vsel %vm2013, %v1923, 0
    %v2177 = vsel %vm2013, %v1927, 0
    %v2180 = vsel %vm2013, %v1931, 0
    %v2183 = vsel %vm2013, %v1935, 0
    %v2186 = vsel %vm2013, %v1939, 0
    %v2189 = vsel %vm2013, %v1943, 0
    %v2192 = vsel %vm2013, %v1947, 0
    %v2195 = vsel %vm2013, %v1951, 0
    %v2198 = vsel %vm2013, %v1955, 0
    %v2201 = vsel %vm2013, %v1959, 0
    %v2204 = vsel %vm2013, %v1963, 0
    %vm2206 = vcmask 1040384
    %v2208 = vsel %vm2206, %v2012, 0
    %2210 = vmatpush.msra.mxu0 %v1979
    %2211 = vmatpush.msra.mxu0 %v1978
    %2212 = vmatpush.msra.mxu0 %v1977
    %2213 = vmatpush.msra.mxu0 %v1976
    %2214 = vmatpush.msra.mxu0 %v1975
    %2215 = vmatpush.msra.mxu0 %v1974
    %2216 = vmatpush.msra.mxu0 %v1973
    %2217 = vmatpush.msra.mxu0 %v1972
    %2218 = vmatpush.msra.mxu0 %v1971
    %2219 = vmatpush.msra.mxu0 %v1970
    %2220 = vmatpush.msra.mxu0 %v1969
    %2221 = vmatpush.msra.mxu0 %v1968
    %2222 = vmatpush.msra.mxu0 %v1967
    %2223 = vmatpush.msra.mxu0 %v1966
    %2224 = vmatpush.msra.mxu0 %v1965
    %2225 = vmatpush.msra.mxu0 %v1964
    %2226 = vmatmul.f32.gmra.mxu0 %v1708
    %v2227 = vpop.f32.mrf.mxu0
    %v2228 = vadd.f32 0.0, %v2227
    %2229 = vmatmul.f32.gmra.mxu0 %v1712
    %v2230 = vpop.f32.mrf.mxu0
    %v2231 = vadd.f32 0.0, %v2230
    %2232 = vmatmul.f32.gmra.mxu0 %v1716
    %v2233 = vpop.f32.mrf.mxu0
    %v2234 = vadd.f32 0.0, %v2233
    %2235 = vmatmul.f32.gmra.mxu0 %v1720
    %v2236 = vpop.f32.mrf.mxu0
    %v2237 = vadd.f32 0.0, %v2236
    %2238 = vmatmul.f32.gmra.mxu0 %v1724
    %v2239 = vpop.f32.mrf.mxu0
    %v2240 = vadd.f32 0.0, %v2239
    %2241 = vmatmul.f32.gmra.mxu0 %v1728
    %v2242 = vpop.f32.mrf.mxu0
    %v2243 = vadd.f32 0.0, %v2242
    %2244 = vmatmul.f32.gmra.mxu0 %v1732
    %v2245 = vpop.f32.mrf.mxu0
    %v2246 = vadd.f32 0.0, %v2245
    %2247 = vmatmul.f32.gmra.mxu0 %v1736
    %v2248 = vpop.f32.mrf.mxu0
    %v2249 = vadd.f32 0.0, %v2248
    %2250 = vmatmul.f32.gmra.mxu0 %v1740
    %v2251 = vpop.f32.mrf.mxu0
    %v2252 = vadd.f32 0.0, %v2251
    %2253 = vmatmul.f32.gmra.mxu0 %v1744
    %v2254 = vpop.f32.mrf.mxu0
    %v2255 = vadd.f32 0.0, %v2254
    %2256 = vmatmul.f32.gmra.mxu0 %v1748
    %v2257 = vpop.f32.mrf.mxu0
    %v2258 = vadd.f32 0.0, %v2257
    %2259 = vmatmul.f32.gmra.mxu0 %v1752
    %v2260 = vpop.f32.mrf.mxu0
    %v2261 = vadd.f32 0.0, %v2260
    %2262 = vmatmul.f32.gmra.mxu0 %v1756
    %v2263 = vpop.f32.mrf.mxu0
    %v2264 = vadd.f32 0.0, %v2263
    %2265 = vmatmul.f32.gmra.mxu0 %v1760
    %v2266 = vpop.f32.mrf.mxu0
    %v2267 = vadd.f32 0.0, %v2266
    %2268 = vmatmul.f32.gmra.mxu0 %v1764
    %v2269 = vpop.f32.mrf.mxu0
    %v2270 = vadd.f32 0.0, %v2269
    %2271 = vmatmul.f32.gmra.mxu0 %v1768
    %v2272 = vpop.f32.mrf.mxu0
    %v2273 = vadd.f32 0.0, %v2272
    %2274 = vmatmul.f32.gmra.mxu0 %v1772
    %v2275 = vpop.f32.mrf.mxu0
    %v2276 = vadd.f32 0.0, %v2275
    %2277 = vmatmul.f32.gmra.mxu0 %v1776
    %v2278 = vpop.f32.mrf.mxu0
    %v2279 = vadd.f32 0.0, %v2278
    %2280 = vmatmul.f32.gmra.mxu0 %v1780
    %v2281 = vpop.f32.mrf.mxu0
    %v2282 = vadd.f32 0.0, %v2281
    %2283 = vmatmul.f32.gmra.mxu0 %v1784
    %v2284 = vpop.f32.mrf.mxu0
    %v2285 = vadd.f32 0.0, %v2284
    %2286 = vmatmul.f32.gmra.mxu0 %v1788
    %v2287 = vpop.f32.mrf.mxu0
    %v2288 = vadd.f32 0.0, %v2287
    %2289 = vmatmul.f32.gmra.mxu0 %v1792
    %v2290 = vpop.f32.mrf.mxu0
    %v2291 = vadd.f32 0.0, %v2290
    %2292 = vmatmul.f32.gmra.mxu0 %v1796
    %v2293 = vpop.f32.mrf.mxu0
    %v2294 = vadd.f32 0.0, %v2293
    %2295 = vmatmul.f32.gmra.mxu0 %v1800
    %v2296 = vpop.f32.mrf.mxu0
    %v2297 = vadd.f32 0.0, %v2296
    %2298 = vmatmul.f32.gmra.mxu0 %v1804
    %v2299 = vpop.f32.mrf.mxu0
    %v2300 = vadd.f32 0.0, %v2299
    %2301 = vmatmul.f32.gmra.mxu0 %v1808
    %v2302 = vpop.f32.mrf.mxu0
    %v2303 = vadd.f32 0.0, %v2302
    %2304 = vmatmul.f32.gmra.mxu0 %v1812
    %v2305 = vpop.f32.mrf.mxu0
    %v2306 = vadd.f32 0.0, %v2305
    %2307 = vmatmul.f32.gmra.mxu0 %v1816
    %v2308 = vpop.f32.mrf.mxu0
    %v2309 = vadd.f32 0.0, %v2308
    %2310 = vmatmul.f32.gmra.mxu0 %v1820
    %v2311 = vpop.f32.mrf.mxu0
    %v2312 = vadd.f32 0.0, %v2311
    %2313 = vmatmul.f32.gmra.mxu0 %v1824
    %v2314 = vpop.f32.mrf.mxu0
    %v2315 = vadd.f32 0.0, %v2314
    %2316 = vmatmul.f32.gmra.mxu0 %v1828
    %v2317 = vpop.f32.mrf.mxu0
    %v2318 = vadd.f32 0.0, %v2317
    %2319 = vmatmul.f32.gmra.mxu0 %v1832
    %v2320 = vpop.f32.mrf.mxu0
    %v2321 = vadd.f32 0.0, %v2320
    %2322 = vmatmul.f32.gmra.mxu0 %v1836
    %v2323 = vpop.f32.mrf.mxu0
    %v2324 = vadd.f32 0.0, %v2323
    %2325 = vmatmul.f32.gmra.mxu0 %v1840
    %v2326 = vpop.f32.mrf.mxu0
    %v2327 = vadd.f32 0.0, %v2326
    %2328 = vmatmul.f32.gmra.mxu0 %v1844
    %v2329 = vpop.f32.mrf.mxu0
    %v2330 = vadd.f32 0.0, %v2329
    %2331 = vmatmul.f32.gmra.mxu0 %v1848
    %v2332 = vpop.f32.mrf.mxu0
    %v2333 = vadd.f32 0.0, %v2332
    %2334 = vmatmul.f32.gmra.mxu0 %v1852
    %v2335 = vpop.f32.mrf.mxu0
    %v2336 = vadd.f32 0.0, %v2335
    %2337 = vmatmul.f32.gmra.mxu0 %v1856
    %v2338 = vpop.f32.mrf.mxu0
    %v2339 = vadd.f32 0.0, %v2338
    %2340 = vmatmul.f32.gmra.mxu0 %v1860
    %v2341 = vpop.f32.mrf.mxu0
    %v2342 = vadd.f32 0.0, %v2341
    %2343 = vmatmul.f32.gmra.mxu0 %v1864
    %v2344 = vpop.f32.mrf.mxu0
    %v2345 = vadd.f32 0.0, %v2344
    %2346 = vmatmul.f32.gmra.mxu0 %v1868
    %v2347 = vpop.f32.mrf.mxu0
    %v2348 = vadd.f32 0.0, %v2347
    %2349 = vmatmul.f32.gmra.mxu0 %v1872
    %v2350 = vpop.f32.mrf.mxu0
    %v2351 = vadd.f32 0.0, %v2350
    %2352 = vmatmul.f32.gmra.mxu0 %v1876
    %v2353 = vpop.f32.mrf.mxu0
    %v2354 = vadd.f32 0.0, %v2353
    %2355 = vmatmul.f32.gmra.mxu0 %v1880
    %v2356 = vpop.f32.mrf.mxu0
    %v2357 = vadd.f32 0.0, %v2356
    %2358 = vmatmul.f32.gmra.mxu0 %v1884
    %v2359 = vpop.f32.mrf.mxu0
    %v2360 = vadd.f32 0.0, %v2359
    %2361 = vmatmul.f32.gmra.mxu0 %v1888
    %v2362 = vpop.f32.mrf.mxu0
    %v2363 = vadd.f32 0.0, %v2362
    %2364 = vmatmul.f32.gmra.mxu0 %v1892
    %v2365 = vpop.f32.mrf.mxu0
    %v2366 = vadd.f32 0.0, %v2365
    %2367 = vmatmul.f32.gmra.mxu0 %v1896
    %v2368 = vpop.f32.mrf.mxu0
    %v2369 = vadd.f32 0.0, %v2368
    %2370 = vmatmul.f32.gmra.mxu0 %v1900
    %v2371 = vpop.f32.mrf.mxu0
    %v2372 = vadd.f32 0.0, %v2371
    %2373 = vmatmul.f32.gmra.mxu0 %v1904
    %v2374 = vpop.f32.mrf.mxu0
    %v2375 = vadd.f32 0.0, %v2374
    %2376 = vmatmul.f32.gmra.mxu0 %v1908
    %v2377 = vpop.f32.mrf.mxu0
    %v2378 = vadd.f32 0.0, %v2377
    %2379 = vmatmul.f32.gmra.mxu0 %v1912
    %v2380 = vpop.f32.mrf.mxu0
    %v2381 = vadd.f32 0.0, %v2380
    %2382 = vmatmul.f32.gmra.mxu0 %v1916
    %v2383 = vpop.f32.mrf.mxu0
    %v2384 = vadd.f32 0.0, %v2383
    %2385 = vmatmul.f32.gmra.mxu0 %v1920
    %v2386 = vpop.f32.mrf.mxu0
    %v2387 = vadd.f32 0.0, %v2386
    %2388 = vmatmul.f32.gmra.mxu0 %v1924
    %v2389 = vpop.f32.mrf.mxu0
    %v2390 = vadd.f32 0.0, %v2389
    %2391 = vmatmul.f32.gmra.mxu0 %v1928
    %v2392 = vpop.f32.mrf.mxu0
    %v2393 = vadd.f32 0.0, %v2392
    %2394 = vmatmul.f32.gmra.mxu0 %v1932
    %v2395 = vpop.f32.mrf.mxu0
    %v2396 = vadd.f32 0.0, %v2395
    %2397 = vmatmul.f32.gmra.mxu0 %v1936
    %v2398 = vpop.f32.mrf.mxu0
    %v2399 = vadd.f32 0.0, %v2398
    %2400 = vmatmul.f32.gmra.mxu0 %v1940
    %v2401 = vpop.f32.mrf.mxu0
    %v2402 = vadd.f32 0.0, %v2401
    %2403 = vmatmul.f32.gmra.mxu0 %v1944
    %v2404 = vpop.f32.mrf.mxu0
    %v2405 = vadd.f32 0.0, %v2404
    %2406 = vmatmul.f32.gmra.mxu0 %v1948
    %v2407 = vpop.f32.mrf.mxu0
    %v2408 = vadd.f32 0.0, %v2407
    %2409 = vmatmul.f32.gmra.mxu0 %v1952
    %v2410 = vpop.f32.mrf.mxu0
    %v2411 = vadd.f32 0.0, %v2410
    %2412 = vmatmul.f32.gmra.mxu0 %v1956
    %v2413 = vpop.f32.mrf.mxu0
    %v2414 = vadd.f32 0.0, %v2413
    %2415 = vmatmul.f32.gmra.mxu0 %v1960
    %v2416 = vpop.f32.mrf.mxu0
    %v2417 = vadd.f32 0.0, %v2416
    %2418 = vdwg.mxu0
    %2419 = vmatpush.msra.mxu0 %v1995
    %2420 = vmatpush.msra.mxu0 %v1994
    %2421 = vmatpush.msra.mxu0 %v1993
    %2422 = vmatpush.msra.mxu0 %v1992
    %2423 = vmatpush.msra.mxu0 %v1991
    %2424 = vmatpush.msra.mxu0 %v1990
    %2425 = vmatpush.msra.mxu0 %v1989
    %2426 = vmatpush.msra.mxu0 %v1988
    %2427 = vmatpush.msra.mxu0 %v1987
    %2428 = vmatpush.msra.mxu0 %v1986
    %2429 = vmatpush.msra.mxu0 %v1985
    %2430 = vmatpush.msra.mxu0 %v1984
    %2431 = vmatpush.msra.mxu0 %v1983
    %2432 = vmatpush.msra.mxu0 %v1982
    %2433 = vmatpush.msra.mxu0 %v1981
    %2434 = vmatpush.msra.mxu0 %v1980
    %2435 = vmatmul.f32.gmra.mxu0 %v1709
    %v2436 = vpop.f32.mrf.mxu0
    %v2437 = vadd.f32 %v2228, %v2436
    %2438 = vmatmul.f32.gmra.mxu0 %v1713
    %v2439 = vpop.f32.mrf.mxu0
    %v2440 = vadd.f32 %v2231, %v2439
    %2441 = vmatmul.f32.gmra.mxu0 %v1717
    %v2442 = vpop.f32.mrf.mxu0
    %v2443 = vadd.f32 %v2234, %v2442
    %2444 = vmatmul.f32.gmra.mxu0 %v1721
    %v2445 = vpop.f32.mrf.mxu0
    %v2446 = vadd.f32 %v2237, %v2445
    %2447 = vmatmul.f32.gmra.mxu0 %v1725
    %v2448 = vpop.f32.mrf.mxu0
    %v2449 = vadd.f32 %v2240, %v2448
    %2450 = vmatmul.f32.gmra.mxu0 %v1729
    %v2451 = vpop.f32.mrf.mxu0
    %v2452 = vadd.f32 %v2243, %v2451
    %2453 = vmatmul.f32.gmra.mxu0 %v1733
    %v2454 = vpop.f32.mrf.mxu0
    %v2455 = vadd.f32 %v2246, %v2454
    %2456 = vmatmul.f32.gmra.mxu0 %v1737
    %v2457 = vpop.f32.mrf.mxu0
    %v2458 = vadd.f32 %v2249, %v2457
    %2459 = vmatmul.f32.gmra.mxu0 %v1741
    %v2460 = vpop.f32.mrf.mxu0
    %v2461 = vadd.f32 %v2252, %v2460
    %2462 = vmatmul.f32.gmra.mxu0 %v1745
    %v2463 = vpop.f32.mrf.mxu0
    %v2464 = vadd.f32 %v2255, %v2463
    %2465 = vmatmul.f32.gmra.mxu0 %v1749
    %v2466 = vpop.f32.mrf.mxu0
    %v2467 = vadd.f32 %v2258, %v2466
    %2468 = vmatmul.f32.gmra.mxu0 %v1753
    %v2469 = vpop.f32.mrf.mxu0
    %v2470 = vadd.f32 %v2261, %v2469
    %2471 = vmatmul.f32.gmra.mxu0 %v1757
    %v2472 = vpop.f32.mrf.mxu0
    %v2473 = vadd.f32 %v2264, %v2472
    %2474 = vmatmul.f32.gmra.mxu0 %v1761
    %v2475 = vpop.f32.mrf.mxu0
    %v2476 = vadd.f32 %v2267, %v2475
    %2477 = vmatmul.f32.gmra.mxu0 %v1765
    %v2478 = vpop.f32.mrf.mxu0
    %v2479 = vadd.f32 %v2270, %v2478
    %2480 = vmatmul.f32.gmra.mxu0 %v1769
    %v2481 = vpop.f32.mrf.mxu0
    %v2482 = vadd.f32 %v2273, %v2481
    %2483 = vmatmul.f32.gmra.mxu0 %v1773
    %v2484 = vpop.f32.mrf.mxu0
    %v2485 = vadd.f32 %v2276, %v2484
    %2486 = vmatmul.f32.gmra.mxu0 %v1777
    %v2487 = vpop.f32.mrf.mxu0
    %v2488 = vadd.f32 %v2279, %v2487
    %2489 = vmatmul.f32.gmra.mxu0 %v1781
    %v2490 = vpop.f32.mrf.mxu0
    %v2491 = vadd.f32 %v2282, %v2490
    %2492 = vmatmul.f32.gmra.mxu0 %v1785
    %v2493 = vpop.f32.mrf.mxu0
    %v2494 = vadd.f32 %v2285, %v2493
    %2495 = vmatmul.f32.gmra.mxu0 %v1789
    %v2496 = vpop.f32.mrf.mxu0
    %v2497 = vadd.f32 %v2288, %v2496
    %2498 = vmatmul.f32.gmra.mxu0 %v1793
    %v2499 = vpop.f32.mrf.mxu0
    %v2500 = vadd.f32 %v2291, %v2499
    %2501 = vmatmul.f32.gmra.mxu0 %v1797
    %v2502 = vpop.f32.mrf.mxu0
    %v2503 = vadd.f32 %v2294, %v2502
    %2504 = vmatmul.f32.gmra.mxu0 %v1801
    %v2505 = vpop.f32.mrf.mxu0
    %v2506 = vadd.f32 %v2297, %v2505
    %2507 = vmatmul.f32.gmra.mxu0 %v1805
    %v2508 = vpop.f32.mrf.mxu0
    %v2509 = vadd.f32 %v2300, %v2508
    %2510 = vmatmul.f32.gmra.mxu0 %v1809
    %v2511 = vpop.f32.mrf.mxu0
    %v2512 = vadd.f32 %v2303, %v2511
    %2513 = vmatmul.f32.gmra.mxu0 %v1813
    %v2514 = vpop.f32.mrf.mxu0
    %v2515 = vadd.f32 %v2306, %v2514
    %2516 = vmatmul.f32.gmra.mxu0 %v1817
    %v2517 = vpop.f32.mrf.mxu0
    %v2518 = vadd.f32 %v2309, %v2517
    %2519 = vmatmul.f32.gmra.mxu0 %v1821
    %v2520 = vpop.f32.mrf.mxu0
    %v2521 = vadd.f32 %v2312, %v2520
    %2522 = vmatmul.f32.gmra.mxu0 %v1825
    %v2523 = vpop.f32.mrf.mxu0
    %v2524 = vadd.f32 %v2315, %v2523
    %2525 = vmatmul.f32.gmra.mxu0 %v1829
    %v2526 = vpop.f32.mrf.mxu0
    %v2527 = vadd.f32 %v2318, %v2526
    %2528 = vmatmul.f32.gmra.mxu0 %v1833
    %v2529 = vpop.f32.mrf.mxu0
    %v2530 = vadd.f32 %v2321, %v2529
    %2531 = vmatmul.f32.gmra.mxu0 %v1837
    %v2532 = vpop.f32.mrf.mxu0
    %v2533 = vadd.f32 %v2324, %v2532
    %2534 = vmatmul.f32.gmra.mxu0 %v1841
    %v2535 = vpop.f32.mrf.mxu0
    %v2536 = vadd.f32 %v2327, %v2535
    %2537 = vmatmul.f32.gmra.mxu0 %v1845
    %v2538 = vpop.f32.mrf.mxu0
    %v2539 = vadd.f32 %v2330, %v2538
    %2540 = vmatmul.f32.gmra.mxu0 %v1849
    %v2541 = vpop.f32.mrf.mxu0
    %v2542 = vadd.f32 %v2333, %v2541
    %2543 = vmatmul.f32.gmra.mxu0 %v1853
    %v2544 = vpop.f32.mrf.mxu0
    %v2545 = vadd.f32 %v2336, %v2544
    %2546 = vmatmul.f32.gmra.mxu0 %v1857
    %v2547 = vpop.f32.mrf.mxu0
    %v2548 = vadd.f32 %v2339, %v2547
    %2549 = vmatmul.f32.gmra.mxu0 %v1861
    %v2550 = vpop.f32.mrf.mxu0
    %v2551 = vadd.f32 %v2342, %v2550
    %2552 = vmatmul.f32.gmra.mxu0 %v1865
    %v2553 = vpop.f32.mrf.mxu0
    %v2554 = vadd.f32 %v2345, %v2553
    %2555 = vmatmul.f32.gmra.mxu0 %v1869
    %v2556 = vpop.f32.mrf.mxu0
    %v2557 = vadd.f32 %v2348, %v2556
    %2558 = vmatmul.f32.gmra.mxu0 %v1873
    %v2559 = vpop.f32.mrf.mxu0
    %v2560 = vadd.f32 %v2351, %v2559
    %2561 = vmatmul.f32.gmra.mxu0 %v1877
    %v2562 = vpop.f32.mrf.mxu0
    %v2563 = vadd.f32 %v2354, %v2562
    %2564 = vmatmul.f32.gmra.mxu0 %v1881
    %v2565 = vpop.f32.mrf.mxu0
    %v2566 = vadd.f32 %v2357, %v2565
    %2567 = vmatmul.f32.gmra.mxu0 %v1885
    %v2568 = vpop.f32.mrf.mxu0
    %v2569 = vadd.f32 %v2360, %v2568
    %2570 = vmatmul.f32.gmra.mxu0 %v1889
    %v2571 = vpop.f32.mrf.mxu0
    %v2572 = vadd.f32 %v2363, %v2571
    %2573 = vmatmul.f32.gmra.mxu0 %v1893
    %v2574 = vpop.f32.mrf.mxu0
    %v2575 = vadd.f32 %v2366, %v2574
    %2576 = vmatmul.f32.gmra.mxu0 %v1897
    %v2577 = vpop.f32.mrf.mxu0
    %v2578 = vadd.f32 %v2369, %v2577
    %2579 = vmatmul.f32.gmra.mxu0 %v1901
    %v2580 = vpop.f32.mrf.mxu0
    %v2581 = vadd.f32 %v2372, %v2580
    %2582 = vmatmul.f32.gmra.mxu0 %v1905
    %v2583 = vpop.f32.mrf.mxu0
    %v2584 = vadd.f32 %v2375, %v2583
    %2585 = vmatmul.f32.gmra.mxu0 %v1909
    %v2586 = vpop.f32.mrf.mxu0
    %v2587 = vadd.f32 %v2378, %v2586
    %2588 = vmatmul.f32.gmra.mxu0 %v1913
    %v2589 = vpop.f32.mrf.mxu0
    %v2590 = vadd.f32 %v2381, %v2589
    %2591 = vmatmul.f32.gmra.mxu0 %v1917
    %v2592 = vpop.f32.mrf.mxu0
    %v2593 = vadd.f32 %v2384, %v2592
    %2594 = vmatmul.f32.gmra.mxu0 %v1921
    %v2595 = vpop.f32.mrf.mxu0
    %v2596 = vadd.f32 %v2387, %v2595
    %2597 = vmatmul.f32.gmra.mxu0 %v1925
    %v2598 = vpop.f32.mrf.mxu0
    %v2599 = vadd.f32 %v2390, %v2598
    %2600 = vmatmul.f32.gmra.mxu0 %v1929
    %v2601 = vpop.f32.mrf.mxu0
    %v2602 = vadd.f32 %v2393, %v2601
    %2603 = vmatmul.f32.gmra.mxu0 %v1933
    %v2604 = vpop.f32.mrf.mxu0
    %v2605 = vadd.f32 %v2396, %v2604
    %2606 = vmatmul.f32.gmra.mxu0 %v1937
    %v2607 = vpop.f32.mrf.mxu0
    %v2608 = vadd.f32 %v2399, %v2607
    %2609 = vmatmul.f32.gmra.mxu0 %v1941
    %v2610 = vpop.f32.mrf.mxu0
    %v2611 = vadd.f32 %v2402, %v2610
    %2612 = vmatmul.f32.gmra.mxu0 %v1945
    %v2613 = vpop.f32.mrf.mxu0
    %v2614 = vadd.f32 %v2405, %v2613
    %2615 = vmatmul.f32.gmra.mxu0 %v1949
    %v2616 = vpop.f32.mrf.mxu0
    %v2617 = vadd.f32 %v2408, %v2616
    %2618 = vmatmul.f32.gmra.mxu0 %v1953
    %v2619 = vpop.f32.mrf.mxu0
    %v2620 = vadd.f32 %v2411, %v2619
    %2621 = vmatmul.f32.gmra.mxu0 %v1957
    %v2622 = vpop.f32.mrf.mxu0
    %v2623 = vadd.f32 %v2414, %v2622
    %2624 = vmatmul.f32.gmra.mxu0 %v1961
    %v2625 = vpop.f32.mrf.mxu0
    %v2626 = vadd.f32 %v2417, %v2625
    %2627 = vdwg.mxu0
    %2628 = vmatpush.msra.mxu0 %v2011
    %2629 = vmatpush.msra.mxu0 %v2010
    %2630 = vmatpush.msra.mxu0 %v2009
    %2631 = vmatpush.msra.mxu0 %v2008
    %2632 = vmatpush.msra.mxu0 %v2007
    %2633 = vmatpush.msra.mxu0 %v2006
    %2634 = vmatpush.msra.mxu0 %v2005
    %2635 = vmatpush.msra.mxu0 %v2004
    %2636 = vmatpush.msra.mxu0 %v2003
    %2637 = vmatpush.msra.mxu0 %v2002
    %2638 = vmatpush.msra.mxu0 %v2001
    %2639 = vmatpush.msra.mxu0 %v2000
    %2640 = vmatpush.msra.mxu0 %v1999
    %2641 = vmatpush.msra.mxu0 %v1998
    %2642 = vmatpush.msra.mxu0 %v1997
    %2643 = vmatpush.msra.mxu0 %v1996
    %2644 = vmatmul.f32.gmra.mxu0 %v1710
    %v2645 = vpop.f32.mrf.mxu0
    %v2646 = vadd.f32 %v2437, %v2645
    %2647 = vmatmul.f32.gmra.mxu0 %v1714
    %v2648 = vpop.f32.mrf.mxu0
    %v2649 = vadd.f32 %v2440, %v2648
    %2650 = vmatmul.f32.gmra.mxu0 %v1718
    %v2651 = vpop.f32.mrf.mxu0
    %v2652 = vadd.f32 %v2443, %v2651
    %2653 = vmatmul.f32.gmra.mxu0 %v1722
    %v2654 = vpop.f32.mrf.mxu0
    %v2655 = vadd.f32 %v2446, %v2654
    %2656 = vmatmul.f32.gmra.mxu0 %v1726
    %v2657 = vpop.f32.mrf.mxu0
    %v2658 = vadd.f32 %v2449, %v2657
    %2659 = vmatmul.f32.gmra.mxu0 %v1730
    %v2660 = vpop.f32.mrf.mxu0
    %v2661 = vadd.f32 %v2452, %v2660
    %2662 = vmatmul.f32.gmra.mxu0 %v1734
    %v2663 = vpop.f32.mrf.mxu0
    %v2664 = vadd.f32 %v2455, %v2663
    %2665 = vmatmul.f32.gmra.mxu0 %v1738
    %v2666 = vpop.f32.mrf.mxu0
    %v2667 = vadd.f32 %v2458, %v2666
    %2668 = vmatmul.f32.gmra.mxu0 %v1742
    %v2669 = vpop.f32.mrf.mxu0
    %v2670 = vadd.f32 %v2461, %v2669
    %2671 = vmatmul.f32.gmra.mxu0 %v1746
    %v2672 = vpop.f32.mrf.mxu0
    %v2673 = vadd.f32 %v2464, %v2672
    %2674 = vmatmul.f32.gmra.mxu0 %v1750
    %v2675 = vpop.f32.mrf.mxu0
    %v2676 = vadd.f32 %v2467, %v2675
    %2677 = vmatmul.f32.gmra.mxu0 %v1754
    %v2678 = vpop.f32.mrf.mxu0
    %v2679 = vadd.f32 %v2470, %v2678
    %2680 = vmatmul.f32.gmra.mxu0 %v1758
    %v2681 = vpop.f32.mrf.mxu0
    %v2682 = vadd.f32 %v2473, %v2681
    %2683 = vmatmul.f32.gmra.mxu0 %v1762
    %v2684 = vpop.f32.mrf.mxu0
    %v2685 = vadd.f32 %v2476, %v2684
    %2686 = vmatmul.f32.gmra.mxu0 %v1766
    %v2687 = vpop.f32.mrf.mxu0
    %v2688 = vadd.f32 %v2479, %v2687
    %2689 = vmatmul.f32.gmra.mxu0 %v1770
    %v2690 = vpop.f32.mrf.mxu0
    %v2691 = vadd.f32 %v2482, %v2690
    %2692 = vmatmul.f32.gmra.mxu0 %v1774
    %v2693 = vpop.f32.mrf.mxu0
    %v2694 = vadd.f32 %v2485, %v2693
    %2695 = vmatmul.f32.gmra.mxu0 %v1778
    %v2696 = vpop.f32.mrf.mxu0
    %v2697 = vadd.f32 %v2488, %v2696
    %2698 = vmatmul.f32.gmra.mxu0 %v1782
    %v2699 = vpop.f32.mrf.mxu0
    %v2700 = vadd.f32 %v2491, %v2699
    %2701 = vmatmul.f32.gmra.mxu0 %v1786
    %v2702 = vpop.f32.mrf.mxu0
    %v2703 = vadd.f32 %v2494, %v2702
    %2704 = vmatmul.f32.gmra.mxu0 %v1790
    %v2705 = vpop.f32.mrf.mxu0
    %v2706 = vadd.f32 %v2497, %v2705
    %2707 = vmatmul.f32.gmra.mxu0 %v1794
    %v2708 = vpop.f32.mrf.mxu0
    %v2709 = vadd.f32 %v2500, %v2708
    %2710 = vmatmul.f32.gmra.mxu0 %v1798
    %v2711 = vpop.f32.mrf.mxu0
    %v2712 = vadd.f32 %v2503, %v2711
    %2713 = vmatmul.f32.gmra.mxu0 %v1802
    %v2714 = vpop.f32.mrf.mxu0
    %v2715 = vadd.f32 %v2506, %v2714
    %2716 = vmatmul.f32.gmra.mxu0 %v1806
    %v2717 = vpop.f32.mrf.mxu0
    %v2718 = vadd.f32 %v2509, %v2717
    %2719 = vmatmul.f32.gmra.mxu0 %v1810
    %v2720 = vpop.f32.mrf.mxu0
    %v2721 = vadd.f32 %v2512, %v2720
    %2722 = vmatmul.f32.gmra.mxu0 %v1814
    %v2723 = vpop.f32.mrf.mxu0
    %v2724 = vadd.f32 %v2515, %v2723
    %2725 = vmatmul.f32.gmra.mxu0 %v1818
    %v2726 = vpop.f32.mrf.mxu0
    %v2727 = vadd.f32 %v2518, %v2726
    %2728 = vmatmul.f32.gmra.mxu0 %v1822
    %v2729 = vpop.f32.mrf.mxu0
    %v2730 = vadd.f32 %v2521, %v2729
    %2731 = vmatmul.f32.gmra.mxu0 %v1826
    %v2732 = vpop.f32.mrf.mxu0
    %v2733 = vadd.f32 %v2524, %v2732
    %2734 = vmatmul.f32.gmra.mxu0 %v1830
    %v2735 = vpop.f32.mrf.mxu0
    %v2736 = vadd.f32 %v2527, %v2735
    %2737 = vmatmul.f32.gmra.mxu0 %v1834
    %v2738 = vpop.f32.mrf.mxu0
    %v2739 = vadd.f32 %v2530, %v2738
    %2740 = vmatmul.f32.gmra.mxu0 %v1838
    %v2741 = vpop.f32.mrf.mxu0
    %v2742 = vadd.f32 %v2533, %v2741
    %2743 = vmatmul.f32.gmra.mxu0 %v1842
    %v2744 = vpop.f32.mrf.mxu0
    %v2745 = vadd.f32 %v2536, %v2744
    %2746 = vmatmul.f32.gmra.mxu0 %v1846
    %v2747 = vpop.f32.mrf.mxu0
    %v2748 = vadd.f32 %v2539, %v2747
    %2749 = vmatmul.f32.gmra.mxu0 %v1850
    %v2750 = vpop.f32.mrf.mxu0
    %v2751 = vadd.f32 %v2542, %v2750
    %2752 = vmatmul.f32.gmra.mxu0 %v1854
    %v2753 = vpop.f32.mrf.mxu0
    %v2754 = vadd.f32 %v2545, %v2753
    %2755 = vmatmul.f32.gmra.mxu0 %v1858
    %v2756 = vpop.f32.mrf.mxu0
    %v2757 = vadd.f32 %v2548, %v2756
    %2758 = vmatmul.f32.gmra.mxu0 %v1862
    %v2759 = vpop.f32.mrf.mxu0
    %v2760 = vadd.f32 %v2551, %v2759
    %2761 = vmatmul.f32.gmra.mxu0 %v1866
    %v2762 = vpop.f32.mrf.mxu0
    %v2763 = vadd.f32 %v2554, %v2762
    %2764 = vmatmul.f32.gmra.mxu0 %v1870
    %v2765 = vpop.f32.mrf.mxu0
    %v2766 = vadd.f32 %v2557, %v2765
    %2767 = vmatmul.f32.gmra.mxu0 %v1874
    %v2768 = vpop.f32.mrf.mxu0
    %v2769 = vadd.f32 %v2560, %v2768
    %2770 = vmatmul.f32.gmra.mxu0 %v1878
    %v2771 = vpop.f32.mrf.mxu0
    %v2772 = vadd.f32 %v2563, %v2771
    %2773 = vmatmul.f32.gmra.mxu0 %v1882
    %v2774 = vpop.f32.mrf.mxu0
    %v2775 = vadd.f32 %v2566, %v2774
    %2776 = vmatmul.f32.gmra.mxu0 %v1886
    %v2777 = vpop.f32.mrf.mxu0
    %v2778 = vadd.f32 %v2569, %v2777
    %2779 = vmatmul.f32.gmra.mxu0 %v1890
    %v2780 = vpop.f32.mrf.mxu0
    %v2781 = vadd.f32 %v2572, %v2780
    %2782 = vmatmul.f32.gmra.mxu0 %v1894
    %v2783 = vpop.f32.mrf.mxu0
    %v2784 = vadd.f32 %v2575, %v2783
    %2785 = vmatmul.f32.gmra.mxu0 %v1898
    %v2786 = vpop.f32.mrf.mxu0
    %v2787 = vadd.f32 %v2578, %v2786
    %2788 = vmatmul.f32.gmra.mxu0 %v1902
    %v2789 = vpop.f32.mrf.mxu0
    %v2790 = vadd.f32 %v2581, %v2789
    %2791 = vmatmul.f32.gmra.mxu0 %v1906
    %v2792 = vpop.f32.mrf.mxu0
    %v2793 = vadd.f32 %v2584, %v2792
    %2794 = vmatmul.f32.gmra.mxu0 %v1910
    %v2795 = vpop.f32.mrf.mxu0
    %v2796 = vadd.f32 %v2587, %v2795
    %2797 = vmatmul.f32.gmra.mxu0 %v1914
    %v2798 = vpop.f32.mrf.mxu0
    %v2799 = vadd.f32 %v2590, %v2798
    %2800 = vmatmul.f32.gmra.mxu0 %v1918
    %v2801 = vpop.f32.mrf.mxu0
    %v2802 = vadd.f32 %v2593, %v2801
    %2803 = vmatmul.f32.gmra.mxu0 %v1922
    %v2804 = vpop.f32.mrf.mxu0
    %v2805 = vadd.f32 %v2596, %v2804
    %2806 = vmatmul.f32.gmra.mxu0 %v1926
    %v2807 = vpop.f32.mrf.mxu0
    %v2808 = vadd.f32 %v2599, %v2807
    %2809 = vmatmul.f32.gmra.mxu0 %v1930
    %v2810 = vpop.f32.mrf.mxu0
    %v2811 = vadd.f32 %v2602, %v2810
    %2812 = vmatmul.f32.gmra.mxu0 %v1934
    %v2813 = vpop.f32.mrf.mxu0
    %v2814 = vadd.f32 %v2605, %v2813
    %2815 = vmatmul.f32.gmra.mxu0 %v1938
    %v2816 = vpop.f32.mrf.mxu0
    %v2817 = vadd.f32 %v2608, %v2816
    %2818 = vmatmul.f32.gmra.mxu0 %v1942
    %v2819 = vpop.f32.mrf.mxu0
    %v2820 = vadd.f32 %v2611, %v2819
    %2821 = vmatmul.f32.gmra.mxu0 %v1946
    %v2822 = vpop.f32.mrf.mxu0
    %v2823 = vadd.f32 %v2614, %v2822
    %2824 = vmatmul.f32.gmra.mxu0 %v1950
    %v2825 = vpop.f32.mrf.mxu0
    %v2826 = vadd.f32 %v2617, %v2825
    %2827 = vmatmul.f32.gmra.mxu0 %v1954
    %v2828 = vpop.f32.mrf.mxu0
    %v2829 = vadd.f32 %v2620, %v2828
    %2830 = vmatmul.f32.gmra.mxu0 %v1958
    %v2831 = vpop.f32.mrf.mxu0
    %v2832 = vadd.f32 %v2623, %v2831
    %2833 = vmatmul.f32.gmra.mxu0 %v1962
    %v2834 = vpop.f32.mrf.mxu0
    %v2835 = vadd.f32 %v2626, %v2834
    %2836 = vdwg.mxu0
    %2837 = vmatpush.msra.mxu0 0.0
    %2838 = vmatpush.msra.mxu0 0.0
    %2839 = vmatpush.msra.mxu0 0.0
    %2840 = vmatpush.msra.mxu0 0.0
    %2841 = vmatpush.msra.mxu0 0.0
    %2842 = vmatpush.msra.mxu0 0.0
    %2843 = vmatpush.msra.mxu0 0.0
    %2844 = vmatpush.msra.mxu0 0.0
    %2845 = vmatpush.msra.mxu0 0.0
    %2846 = vmatpush.msra.mxu0 0.0
    %2847 = vmatpush.msra.mxu0 0.0
    %2848 = vmatpush.msra.mxu0 0.0
    %2849 = vmatpush.msra.mxu0 0.0
    %2850 = vmatpush.msra.mxu0 0.0
    %2851 = vmatpush.msra.mxu0 0.0
    %2852 = vmatpush.msra.mxu0 %v2208
    %2853 = vmatmul.f32.gmra.mxu0 %v2015
    %v2854 = vpop.f32.mrf.mxu0
    %v2855 = vadd.f32 %v2646, %v2854
    %2856 = vmatmul.f32.gmra.mxu0 %v2018
    %v2857 = vpop.f32.mrf.mxu0
    %v2858 = vadd.f32 %v2649, %v2857
    %2859 = vmatmul.f32.gmra.mxu0 %v2021
    %v2860 = vpop.f32.mrf.mxu0
    %v2861 = vadd.f32 %v2652, %v2860
    %2862 = vmatmul.f32.gmra.mxu0 %v2024
    %v2863 = vpop.f32.mrf.mxu0
    %v2864 = vadd.f32 %v2655, %v2863
    %2865 = vmatmul.f32.gmra.mxu0 %v2027
    %v2866 = vpop.f32.mrf.mxu0
    %v2867 = vadd.f32 %v2658, %v2866
    %2868 = vmatmul.f32.gmra.mxu0 %v2030
    %v2869 = vpop.f32.mrf.mxu0
    %v2870 = vadd.f32 %v2661, %v2869
    %2871 = vmatmul.f32.gmra.mxu0 %v2033
    %v2872 = vpop.f32.mrf.mxu0
    %v2873 = vadd.f32 %v2664, %v2872
    %2874 = vmatmul.f32.gmra.mxu0 %v2036
    %v2875 = vpop.f32.mrf.mxu0
    %v2876 = vadd.f32 %v2667, %v2875
    %2877 = vmatmul.f32.gmra.mxu0 %v2039
    %v2878 = vpop.f32.mrf.mxu0
    %v2879 = vadd.f32 %v2670, %v2878
    %2880 = vmatmul.f32.gmra.mxu0 %v2042
    %v2881 = vpop.f32.mrf.mxu0
    %v2882 = vadd.f32 %v2673, %v2881
    %2883 = vmatmul.f32.gmra.mxu0 %v2045
    %v2884 = vpop.f32.mrf.mxu0
    %v2885 = vadd.f32 %v2676, %v2884
    %2886 = vmatmul.f32.gmra.mxu0 %v2048
    %v2887 = vpop.f32.mrf.mxu0
    %v2888 = vadd.f32 %v2679, %v2887
    %2889 = vmatmul.f32.gmra.mxu0 %v2051
    %v2890 = vpop.f32.mrf.mxu0
    %v2891 = vadd.f32 %v2682, %v2890
    %2892 = vmatmul.f32.gmra.mxu0 %v2054
    %v2893 = vpop.f32.mrf.mxu0
    %v2894 = vadd.f32 %v2685, %v2893
    %2895 = vmatmul.f32.gmra.mxu0 %v2057
    %v2896 = vpop.f32.mrf.mxu0
    %v2897 = vadd.f32 %v2688, %v2896
    %2898 = vmatmul.f32.gmra.mxu0 %v2060
    %v2899 = vpop.f32.mrf.mxu0
    %v2900 = vadd.f32 %v2691, %v2899
    %2901 = vmatmul.f32.gmra.mxu0 %v2063
    %v2902 = vpop.f32.mrf.mxu0
    %v2903 = vadd.f32 %v2694, %v2902
    %2904 = vmatmul.f32.gmra.mxu0 %v2066
    %v2905 = vpop.f32.mrf.mxu0
    %v2906 = vadd.f32 %v2697, %v2905
    %2907 = vmatmul.f32.gmra.mxu0 %v2069
    %v2908 = vpop.f32.mrf.mxu0
    %v2909 = vadd.f32 %v2700, %v2908
    %2910 = vmatmul.f32.gmra.mxu0 %v2072
    %v2911 = vpop.f32.mrf.mxu0
    %v2912 = vadd.f32 %v2703, %v2911
    %2913 = vmatmul.f32.gmra.mxu0 %v2075
    %v2914 = vpop.f32.mrf.mxu0
    %v2915 = vadd.f32 %v2706, %v2914
    %2916 = vmatmul.f32.gmra.mxu0 %v2078
    %v2917 = vpop.f32.mrf.mxu0
    %v2918 = vadd.f32 %v2709, %v2917
    %2919 = vmatmul.f32.gmra.mxu0 %v2081
    %v2920 = vpop.f32.mrf.mxu0
    %v2921 = vadd.f32 %v2712, %v2920
    %2922 = vmatmul.f32.gmra.mxu0 %v2084
    %v2923 = vpop.f32.mrf.mxu0
    %v2924 = vadd.f32 %v2715, %v2923
    %2925 = vmatmul.f32.gmra.mxu0 %v2087
    %v2926 = vpop.f32.mrf.mxu0
    %v2927 = vadd.f32 %v2718, %v2926
    %2928 = vmatmul.f32.gmra.mxu0 %v2090
    %v2929 = vpop.f32.mrf.mxu0
    %v2930 = vadd.f32 %v2721, %v2929
    %2931 = vmatmul.f32.gmra.mxu0 %v2093
    %v2932 = vpop.f32.mrf.mxu0
    %v2933 = vadd.f32 %v2724, %v2932
    %2934 = vmatmul.f32.gmra.mxu0 %v2096
    %v2935 = vpop.f32.mrf.mxu0
    %v2936 = vadd.f32 %v2727, %v2935
    %2937 = vmatmul.f32.gmra.mxu0 %v2099
    %v2938 = vpop.f32.mrf.mxu0
    %v2939 = vadd.f32 %v2730, %v2938
    %2940 = vmatmul.f32.gmra.mxu0 %v2102
    %v2941 = vpop.f32.mrf.mxu0
    %v2942 = vadd.f32 %v2733, %v2941
    %2943 = vmatmul.f32.gmra.mxu0 %v2105
    %v2944 = vpop.f32.mrf.mxu0
    %v2945 = vadd.f32 %v2736, %v2944
    %2946 = vmatmul.f32.gmra.mxu0 %v2108
    %v2947 = vpop.f32.mrf.mxu0
    %v2948 = vadd.f32 %v2739, %v2947
    %2949 = vmatmul.f32.gmra.mxu0 %v2111
    %v2950 = vpop.f32.mrf.mxu0
    %v2951 = vadd.f32 %v2742, %v2950
    %2952 = vmatmul.f32.gmra.mxu0 %v2114
    %v2953 = vpop.f32.mrf.mxu0
    %v2954 = vadd.f32 %v2745, %v2953
    %2955 = vmatmul.f32.gmra.mxu0 %v2117
    %v2956 = vpop.f32.mrf.mxu0
    %v2957 = vadd.f32 %v2748, %v2956
    %2958 = vmatmul.f32.gmra.mxu0 %v2120
    %v2959 = vpop.f32.mrf.mxu0
    %v2960 = vadd.f32 %v2751, %v2959
    %2961 = vmatmul.f32.gmra.mxu0 %v2123
    %v2962 = vpop.f32.mrf.mxu0
    %v2963 = vadd.f32 %v2754, %v2962
    %2964 = vmatmul.f32.gmra.mxu0 %v2126
    %v2965 = vpop.f32.mrf.mxu0
    %v2966 = vadd.f32 %v2757, %v2965
    %2967 = vmatmul.f32.gmra.mxu0 %v2129
    %v2968 = vpop.f32.mrf.mxu0
    %v2969 = vadd.f32 %v2760, %v2968
    %2970 = vmatmul.f32.gmra.mxu0 %v2132
    %v2971 = vpop.f32.mrf.mxu0
    %v2972 = vadd.f32 %v2763, %v2971
    %2973 = vmatmul.f32.gmra.mxu0 %v2135
    %v2974 = vpop.f32.mrf.mxu0
    %v2975 = vadd.f32 %v2766, %v2974
    %2976 = vmatmul.f32.gmra.mxu0 %v2138
    %v2977 = vpop.f32.mrf.mxu0
    %v2978 = vadd.f32 %v2769, %v2977
    %2979 = vmatmul.f32.gmra.mxu0 %v2141
    %v2980 = vpop.f32.mrf.mxu0
    %v2981 = vadd.f32 %v2772, %v2980
    %2982 = vmatmul.f32.gmra.mxu0 %v2144
    %v2983 = vpop.f32.mrf.mxu0
    %v2984 = vadd.f32 %v2775, %v2983
    %2985 = vmatmul.f32.gmra.mxu0 %v2147
    %v2986 = vpop.f32.mrf.mxu0
    %v2987 = vadd.f32 %v2778, %v2986
    %2988 = vmatmul.f32.gmra.mxu0 %v2150
    %v2989 = vpop.f32.mrf.mxu0
    %v2990 = vadd.f32 %v2781, %v2989
    %2991 = vmatmul.f32.gmra.mxu0 %v2153
    %v2992 = vpop.f32.mrf.mxu0
    %v2993 = vadd.f32 %v2784, %v2992
    %2994 = vmatmul.f32.gmra.mxu0 %v2156
    %v2995 = vpop.f32.mrf.mxu0
    %v2996 = vadd.f32 %v2787, %v2995
    %2997 = vmatmul.f32.gmra.mxu0 %v2159
    %v2998 = vpop.f32.mrf.mxu0
    %v2999 = vadd.f32 %v2790, %v2998
    %3000 = vmatmul.f32.gmra.mxu0 %v2162
    %v3001 = vpop.f32.mrf.mxu0
    %v3002 = vadd.f32 %v2793, %v3001
    %3003 = vmatmul.f32.gmra.mxu0 %v2165
    %v3004 = vpop.f32.mrf.mxu0
    %v3005 = vadd.f32 %v2796, %v3004
    %3006 = vmatmul.f32.gmra.mxu0 %v2168
    %v3007 = vpop.f32.mrf.mxu0
    %v3008 = vadd.f32 %v2799, %v3007
    %3009 = vmatmul.f32.gmra.mxu0 %v2171
    %v3010 = vpop.f32.mrf.mxu0
    %v3011 = vadd.f32 %v2802, %v3010
    %3012 = vmatmul.f32.gmra.mxu0 %v2174
    %v3013 = vpop.f32.mrf.mxu0
    %v3014 = vadd.f32 %v2805, %v3013
    %3015 = vmatmul.f32.gmra.mxu0 %v2177
    %v3016 = vpop.f32.mrf.mxu0
    %v3017 = vadd.f32 %v2808, %v3016
    %3018 = vmatmul.f32.gmra.mxu0 %v2180
    %v3019 = vpop.f32.mrf.mxu0
    %v3020 = vadd.f32 %v2811, %v3019
    %3021 = vmatmul.f32.gmra.mxu0 %v2183
    %v3022 = vpop.f32.mrf.mxu0
    %v3023 = vadd.f32 %v2814, %v3022
    %3024 = vmatmul.f32.gmra.mxu0 %v2186
    %v3025 = vpop.f32.mrf.mxu0
    %v3026 = vadd.f32 %v2817, %v3025
    %3027 = vmatmul.f32.gmra.mxu0 %v2189
    %v3028 = vpop.f32.mrf.mxu0
    %v3029 = vadd.f32 %v2820, %v3028
    %3030 = vmatmul.f32.gmra.mxu0 %v2192
    %v3031 = vpop.f32.mrf.mxu0
    %v3032 = vadd.f32 %v2823, %v3031
    %3033 = vmatmul.f32.gmra.mxu0 %v2195
    %v3034 = vpop.f32.mrf.mxu0
    %v3035 = vadd.f32 %v2826, %v3034
    %3036 = vmatmul.f32.gmra.mxu0 %v2198
    %v3037 = vpop.f32.mrf.mxu0
    %v3038 = vadd.f32 %v2829, %v3037
    %3039 = vmatmul.f32.gmra.mxu0 %v2201
    %v3040 = vpop.f32.mrf.mxu0
    %v3041 = vadd.f32 %v2832, %v3040
    %3042 = vmatmul.f32.gmra.mxu0 %v2204
    %v3043 = vpop.f32.mrf.mxu0
    %v3044 = vadd.f32 %v2835, %v3043
    %3045 = vdwg.mxu0
    %v3046 = vmax.f32 %v2855, 0.0
    %v3047 = vmax.f32 %v2858, 0.0
    %v3048 = vmax.f32 %v2861, 0.0
    %v3049 = vmax.f32 %v2864, 0.0
    %v3050 = vmax.f32 %v2867, 0.0
    %v3051 = vmax.f32 %v2870, 0.0
    %v3052 = vmax.f32 %v2873, 0.0
    %v3053 = vmax.f32 %v2876, 0.0
    %v3054 = vmax.f32 %v2879, 0.0
    %v3055 = vmax.f32 %v2882, 0.0
    %v3056 = vmax.f32 %v2885, 0.0
    %v3057 = vmax.f32 %v2888, 0.0
    %v3058 = vmax.f32 %v2891, 0.0
    %v3059 = vmax.f32 %v2894, 0.0
    %v3060 = vmax.f32 %v2897, 0.0
    %v3061 = vmax.f32 %v2900, 0.0
    %v3062 = vmax.f32 %v2903, 0.0
    %v3063 = vmax.f32 %v2906, 0.0
    %v3064 = vmax.f32 %v2909, 0.0
    %v3065 = vmax.f32 %v2912, 0.0
    %v3066 = vmax.f32 %v2915, 0.0
    %v3067 = vmax.f32 %v2918, 0.0
    %v3068 = vmax.f32 %v2921, 0.0
    %v3069 = vmax.f32 %v2924, 0.0
    %v3070 = vmax.f32 %v2927, 0.0
    %v3071 = vmax.f32 %v2930, 0.0
    %v3072 = vmax.f32 %v2933, 0.0
    %v3073 = vmax.f32 %v2936, 0.0
    %v3074 = vmax.f32 %v2939, 0.0
    %v3075 = vmax.f32 %v2942, 0.0
    %v3076 = vmax.f32 %v2945, 0.0
    %v3077 = vmax.f32 %v2948, 0.0
    %v3078 = vmax.f32 %v2951, 0.0
    %v3079 = vmax.f32 %v2954, 0.0
    %v3080 = vmax.f32 %v2957, 0.0
    %v3081 = vmax.f32 %v2960, 0.0
    %v3082 = vmax.f32 %v2963, 0.0
    %v3083 = vmax.f32 %v2966, 0.0
    %v3084 = vmax.f32 %v2969, 0.0
    %v3085 = vmax.f32 %v2972, 0.0
    %v3086 = vmax.f32 %v2975, 0.0
    %v3087 = vmax.f32 %v2978, 0.0
    %v3088 = vmax.f32 %v2981, 0.0
    %v3089 = vmax.f32 %v2984, 0.0
    %v3090 = vmax.f32 %v2987, 0.0
    %v3091 = vmax.f32 %v2990, 0.0
    %v3092 = vmax.f32 %v2993, 0.0
    %v3093 = vmax.f32 %v2996, 0.0
    %v3094 = vmax.f32 %v2999, 0.0
    %v3095 = vmax.f32 %v3002, 0.0
    %v3096 = vmax.f32 %v3005, 0.0
    %v3097 = vmax.f32 %v3008, 0.0
    %v3098 = vmax.f32 %v3011, 0.0
    %v3099 = vmax.f32 %v3014, 0.0
    %v3100 = vmax.f32 %v3017, 0.0
    %v3101 = vmax.f32 %v3020, 0.0
    %v3102 = vmax.f32 %v3023, 0.0
    %v3103 = vmax.f32 %v3026, 0.0
    %v3104 = vmax.f32 %v3029, 0.0
    %v3105 = vmax.f32 %v3032, 0.0
    %v3106 = vmax.f32 %v3035, 0.0
    %v3107 = vmax.f32 %v3038, 0.0
    %v3108 = vmax.f32 %v3041, 0.0
    %v3109 = vmax.f32 %v3044, 0.0
    %v3110 = vld [vmem:[%s3] sm:$0xff]
    %v3111 = vld [vmem:[%s3 + $0x8] sm:$0xff]
    %v3112 = vld [vmem:[%s3 + $0x10] sm:$0xff]
    %v3113 = vld [vmem:[%s3 + $0x18] sm:$0xff]
    %v3114 = vld [vmem:[%s3 + $0x20] sm:$0xff]
    %v3115 = vld [vmem:[%s3 + $0x28] sm:$0xff]
    %v3116 = vld [vmem:[%s3 + $0x30] sm:$0xff]
    %v3117 = vld [vmem:[%s3 + $0x38] sm:$0xff]
    %v3118 = vld [vmem:[%s3 + $0x40] sm:$0x1]
    %vm3119 = vcmask 531456
    %v3121 = vsel %vm3119, %v3046, 0
    %v3124 = vsel %vm3119, %v3047, 0
    %v3127 = vsel %vm3119, %v3048, 0
    %v3130 = vsel %vm3119, %v3049, 0
    %v3133 = vsel %vm3119, %v3050, 0
    %v3136 = vsel %vm3119, %v3051, 0
    %v3139 = vsel %vm3119, %v3052, 0
    %v3142 = vsel %vm3119, %v3053, 0
    %v3145 = vsel %vm3119, %v3054, 0
    %v3148 = vsel %vm3119, %v3055, 0
    %v3151 = vsel %vm3119, %v3056, 0
    %v3154 = vsel %vm3119, %v3057, 0
    %v3157 = vsel %vm3119, %v3058, 0
    %v3160 = vsel %vm3119, %v3059, 0
    %v3163 = vsel %vm3119, %v3060, 0
    %v3166 = vsel %vm3119, %v3061, 0
    %v3169 = vsel %vm3119, %v3062, 0
    %v3172 = vsel %vm3119, %v3063, 0
    %v3175 = vsel %vm3119, %v3064, 0
    %v3178 = vsel %vm3119, %v3065, 0
    %v3181 = vsel %vm3119, %v3066, 0
    %v3184 = vsel %vm3119, %v3067, 0
    %v3187 = vsel %vm3119, %v3068, 0
    %v3190 = vsel %vm3119, %v3069, 0
    %v3193 = vsel %vm3119, %v3070, 0
    %v3196 = vsel %vm3119, %v3071, 0
    %v3199 = vsel %vm3119, %v3072, 0
    %v3202 = vsel %vm3119, %v3073, 0
    %v3205 = vsel %vm3119, %v3074, 0
    %v3208 = vsel %vm3119, %v3075, 0
    %v3211 = vsel %vm3119, %v3076, 0
    %v3214 = vsel %vm3119, %v3077, 0
    %v3217 = vsel %vm3119, %v3078, 0
    %v3220 = vsel %vm3119, %v3079, 0
    %v3223 = vsel %vm3119, %v3080, 0
    %v3226 = vsel %vm3119, %v3081, 0
    %v3229 = vsel %vm3119, %v3082, 0
    %v3232 = vsel %vm3119, %v3083, 0
    %v3235 = vsel %vm3119, %v3084, 0
    %v3238 = vsel %vm3119, %v3085, 0
    %v3241 = vsel %vm3119, %v3086, 0
    %v3244 = vsel %vm3119, %v3087, 0
    %v3247 = vsel %vm3119, %v3088, 0
    %v3250 = vsel %vm3119, %v3089, 0
    %v3253 = vsel %vm3119, %v3090, 0
    %v3256 = vsel %vm3119, %v3091, 0
    %v3259 = vsel %vm3119, %v3092, 0
    %v3262 = vsel %vm3119, %v3093, 0
    %v3265 = vsel %vm3119, %v3094, 0
    %v3268 = vsel %vm3119, %v3095, 0
    %v3271 = vsel %vm3119, %v3096, 0
    %v3274 = vsel %vm3119, %v3097, 0
    %v3277 = vsel %vm3119, %v3098, 0
    %v3280 = vsel %vm3119, %v3099, 0
    %v3283 = vsel %vm3119, %v3100, 0
    %v3286 = vsel %vm3119, %v3101, 0
    %v3289 = vsel %vm3119, %v3102, 0
    %v3292 = vsel %vm3119, %v3103, 0
    %v3295 = vsel %vm3119, %v3104, 0
    %v3298 = vsel %vm3119, %v3105, 0
    %v3301 = vsel %vm3119, %v3106, 0
    %v3304 = vsel %vm3119, %v3107, 0
    %v3307 = vsel %vm3119, %v3108, 0
    %v3310 = vsel %vm3119, %v3109, 0
    %v3313 = vsel %vm2206, %v3118, 0
    %3315 = vmatpush.msra.mxu0 0.0
    %3316 = vmatpush.msra.mxu0 0.0
    %3317 = vmatpush.msra.mxu0 0.0
    %3318 = vmatpush.msra.mxu0 0.0
    %3319 = vmatpush.msra.mxu0 0.0
    %3320 = vmatpush.msra.mxu0 0.0
    %3321 = vmatpush.msra.mxu0 0.0
    %3322 = vmatpush.msra.mxu0 %v3313
    %3323 = vmatpush.msra.mxu0 %v3117
    %3324 = vmatpush.msra.mxu0 %v3116
    %3325 = vmatpush.msra.mxu0 %v3115
    %3326 = vmatpush.msra.mxu0 %v3114
    %3327 = vmatpush.msra.mxu0 %v3113
    %3328 = vmatpush.msra.mxu0 %v3112
    %3329 = vmatpush.msra.mxu0 %v3111
    %3330 = vmatpush.msra.mxu0 %v3110
    %3331 = vmatmul.f32.gmra.mxu0 %v3121
    %v3332 = vpop.f32.mrf.mxu0
    %v3333 = vadd.f32 0.0, %v3332
    %3334 = vmatmul.f32.gmra.mxu0 %v3124
    %v3335 = vpop.f32.mrf.mxu0
    %v3336 = vadd.f32 0.0, %v3335
    %3337 = vmatmul.f32.gmra.mxu0 %v3127
    %v3338 = vpop.f32.mrf.mxu0
    %v3339 = vadd.f32 0.0, %v3338
    %3340 = vmatmul.f32.gmra.mxu0 %v3130
    %v3341 = vpop.f32.mrf.mxu0
    %v3342 = vadd.f32 0.0, %v3341
    %3343 = vmatmul.f32.gmra.mxu0 %v3133
    %v3344 = vpop.f32.mrf.mxu0
    %v3345 = vadd.f32 0.0, %v3344
    %3346 = vmatmul.f32.gmra.mxu0 %v3136
    %v3347 = vpop.f32.mrf.mxu0
    %v3348 = vadd.f32 0.0, %v3347
    %3349 = vmatmul.f32.gmra.mxu0 %v3139
    %v3350 = vpop.f32.mrf.mxu0
    %v3351 = vadd.f32 0.0, %v3350
    %3352 = vmatmul.f32.gmra.mxu0 %v3142
    %v3353 = vpop.f32.mrf.mxu0
    %v3354 = vadd.f32 0.0, %v3353
    %3355 = vmatmul.f32.gmra.mxu0 %v3145
    %v3356 = vpop.f32.mrf.mxu0
    %v3357 = vadd.f32 0.0, %v3356
    %3358 = vmatmul.f32.gmra.mxu0 %v3148
    %v3359 = vpop.f32.mrf.mxu0
    %v3360 = vadd.f32 0.0, %v3359
    %3361 = vmatmul.f32.gmra.mxu0 %v3151
    %v3362 = vpop.f32.mrf.mxu0
    %v3363 = vadd.f32 0.0, %v3362
    %3364 = vmatmul.f32.gmra.mxu0 %v3154
    %v3365 = vpop.f32.mrf.mxu0
    %v3366 = vadd.f32 0.0, %v3365
    %3367 = vmatmul.f32.gmra.mxu0 %v3157
    %v3368 = vpop.f32.mrf.mxu0
    %v3369 = vadd.f32 0.0, %v3368
    %3370 = vmatmul.f32.gmra.mxu0 %v3160
    %v3371 = vpop.f32.mrf.mxu0
    %v3372 = vadd.f32 0.0, %v3371
    %3373 = vmatmul.f32.gmra.mxu0 %v3163
    %v3374 = vpop.f32.mrf.mxu0
    %v3375 = vadd.f32 0.0, %v3374
    %3376 = vmatmul.f32.gmra.mxu0 %v3166
    %v3377 = vpop.f32.mrf.mxu0
    %v3378 = vadd.f32 0.0, %v3377
    %3379 = vmatmul.f32.gmra.mxu0 %v3169
    %v3380 = vpop.f32.mrf.mxu0
    %v3381 = vadd.f32 0.0, %v3380
    %3382 = vmatmul.f32.gmra.mxu0 %v3172
    %v3383 = vpop.f32.mrf.mxu0
    %v3384 = vadd.f32 0.0, %v3383
    %3385 = vmatmul.f32.gmra.mxu0 %v3175
    %v3386 = vpop.f32.mrf.mxu0
    %v3387 = vadd.f32 0.0, %v3386
    %3388 = vmatmul.f32.gmra.mxu0 %v3178
    %v3389 = vpop.f32.mrf.mxu0
    %v3390 = vadd.f32 0.0, %v3389
    %3391 = vmatmul.f32.gmra.mxu0 %v3181
    %v3392 = vpop.f32.mrf.mxu0
    %v3393 = vadd.f32 0.0, %v3392
    %3394 = vmatmul.f32.gmra.mxu0 %v3184
    %v3395 = vpop.f32.mrf.mxu0
    %v3396 = vadd.f32 0.0, %v3395
    %3397 = vmatmul.f32.gmra.mxu0 %v3187
    %v3398 = vpop.f32.mrf.mxu0
    %v3399 = vadd.f32 0.0, %v3398
    %3400 = vmatmul.f32.gmra.mxu0 %v3190
    %v3401 = vpop.f32.mrf.mxu0
    %v3402 = vadd.f32 0.0, %v3401
    %3403 = vmatmul.f32.gmra.mxu0 %v3193
    %v3404 = vpop.f32.mrf.mxu0
    %v3405 = vadd.f32 0.0, %v3404
    %3406 = vmatmul.f32.gmra.mxu0 %v3196
    %v3407 = vpop.f32.mrf.mxu0
    %v3408 = vadd.f32 0.0, %v3407
    %3409 = vmatmul.f32.gmra.mxu0 %v3199
    %v3410 = vpop.f32.mrf.mxu0
    %v3411 = vadd.f32 0.0, %v3410
    %3412 = vmatmul.f32.gmra.mxu0 %v3202
    %v3413 = vpop.f32.mrf.mxu0
    %v3414 = vadd.f32 0.0, %v3413
    %3415 = vmatmul.f32.gmra.mxu0 %v3205
    %v3416 = vpop.f32.mrf.mxu0
    %v3417 = vadd.f32 0.0, %v3416
    %3418 = vmatmul.f32.gmra.mxu0 %v3208
    %v3419 = vpop.f32.mrf.mxu0
    %v3420 = vadd.f32 0.0, %v3419
    %3421 = vmatmul.f32.gmra.mxu0 %v3211
    %v3422 = vpop.f32.mrf.mxu0
    %v3423 = vadd.f32 0.0, %v3422
    %3424 = vmatmul.f32.gmra.mxu0 %v3214
    %v3425 = vpop.f32.mrf.mxu0
    %v3426 = vadd.f32 0.0, %v3425
    %3427 = vmatmul.f32.gmra.mxu0 %v3217
    %v3428 = vpop.f32.mrf.mxu0
    %v3429 = vadd.f32 0.0, %v3428
    %3430 = vmatmul.f32.gmra.mxu0 %v3220
    %v3431 = vpop.f32.mrf.mxu0
    %v3432 = vadd.f32 0.0, %v3431
    %3433 = vmatmul.f32.gmra.mxu0 %v3223
    %v3434 = vpop.f32.mrf.mxu0
    %v3435 = vadd.f32 0.0, %v3434
    %3436 = vmatmul.f32.gmra.mxu0 %v3226
    %v3437 = vpop.f32.mrf.mxu0
    %v3438 = vadd.f32 0.0, %v3437
    %3439 = vmatmul.f32.gmra.mxu0 %v3229
    %v3440 = vpop.f32.mrf.mxu0
    %v3441 = vadd.f32 0.0, %v3440
    %3442 = vmatmul.f32.gmra.mxu0 %v3232
    %v3443 = vpop.f32.mrf.mxu0
    %v3444 = vadd.f32 0.0, %v3443
    %3445 = vmatmul.f32.gmra.mxu0 %v3235
    %v3446 = vpop.f32.mrf.mxu0
    %v3447 = vadd.f32 0.0, %v3446
    %3448 = vmatmul.f32.gmra.mxu0 %v3238
    %v3449 = vpop.f32.mrf.mxu0
    %v3450 = vadd.f32 0.0, %v3449
    %3451 = vmatmul.f32.gmra.mxu0 %v3241
    %v3452 = vpop.f32.mrf.mxu0
    %v3453 = vadd.f32 0.0, %v3452
    %3454 = vmatmul.f32.gmra.mxu0 %v3244
    %v3455 = vpop.f32.mrf.mxu0
    %v3456 = vadd.f32 0.0, %v3455
    %3457 = vmatmul.f32.gmra.mxu0 %v3247
    %v3458 = vpop.f32.mrf.mxu0
    %v3459 = vadd.f32 0.0, %v3458
    %3460 = vmatmul.f32.gmra.mxu0 %v3250
    %v3461 = vpop.f32.mrf.mxu0
    %v3462 = vadd.f32 0.0, %v3461
    %3463 = vmatmul.f32.gmra.mxu0 %v3253
    %v3464 = vpop.f32.mrf.mxu0
    %v3465 = vadd.f32 0.0, %v3464
    %3466 = vmatmul.f32.gmra.mxu0 %v3256
    %v3467 = vpop.f32.mrf.mxu0
    %v3468 = vadd.f32 0.0, %v3467
    %3469 = vmatmul.f32.gmra.mxu0 %v3259
    %v3470 = vpop.f32.mrf.mxu0
    %v3471 = vadd.f32 0.0, %v3470
    %3472 = vmatmul.f32.gmra.mxu0 %v3262
    %v3473 = vpop.f32.mrf.mxu0
    %v3474 = vadd.f32 0.0, %v3473
    %3475 = vmatmul.f32.gmra.mxu0 %v3265
    %v3476 = vpop.f32.mrf.mxu0
    %v3477 = vadd.f32 0.0, %v3476
    %3478 = vmatmul.f32.gmra.mxu0 %v3268
    %v3479 = vpop.f32.mrf.mxu0
    %v3480 = vadd.f32 0.0, %v3479
    %3481 = vmatmul.f32.gmra.mxu0 %v3271
    %v3482 = vpop.f32.mrf.mxu0
    %v3483 = vadd.f32 0.0, %v3482
    %3484 = vmatmul.f32.gmra.mxu0 %v3274
    %v3485 = vpop.f32.mrf.mxu0
    %v3486 = vadd.f32 0.0, %v3485
    %3487 = vmatmul.f32.gmra.mxu0 %v3277
    %v3488 = vpop.f32.mrf.mxu0
    %v3489 = vadd.f32 0.0, %v3488
    %3490 = vmatmul.f32.gmra.mxu0 %v3280
    %v3491 = vpop.f32.mrf.mxu0
    %v3492 = vadd.f32 0.0, %v3491
    %3493 = vmatmul.f32.gmra.mxu0 %v3283
    %v3494 = vpop.f32.mrf.mxu0
    %v3495 = vadd.f32 0.0, %v3494
    %3496 = vmatmul.f32.gmra.mxu0 %v3286
    %v3497 = vpop.f32.mrf.mxu0
    %v3498 = vadd.f32 0.0, %v3497
    %3499 = vmatmul.f32.gmra.mxu0 %v3289
    %v3500 = vpop.f32.mrf.mxu0
    %v3501 = vadd.f32 0.0, %v3500
    %3502 = vmatmul.f32.gmra.mxu0 %v3292
    %v3503 = vpop.f32.mrf.mxu0
    %v3504 = vadd.f32 0.0, %v3503
    %3505 = vmatmul.f32.gmra.mxu0 %v3295
    %v3506 = vpop.f32.mrf.mxu0
    %v3507 = vadd.f32 0.0, %v3506
    %3508 = vmatmul.f32.gmra.mxu0 %v3298
    %v3509 = vpop.f32.mrf.mxu0
    %v3510 = vadd.f32 0.0, %v3509
    %3511 = vmatmul.f32.gmra.mxu0 %v3301
    %v3512 = vpop.f32.mrf.mxu0
    %v3513 = vadd.f32 0.0, %v3512
    %3514 = vmatmul.f32.gmra.mxu0 %v3304
    %v3515 = vpop.f32.mrf.mxu0
    %v3516 = vadd.f32 0.0, %v3515
    %3517 = vmatmul.f32.gmra.mxu0 %v3307
    %v3518 = vpop.f32.mrf.mxu0
    %v3519 = vadd.f32 0.0, %v3518
    %3520 = vmatmul.f32.gmra.mxu0 %v3310
    %v3521 = vpop.f32.mrf.mxu0
    %v3522 = vadd.f32 0.0, %v3521
    %3523 = vdwg.mxu0
    %v3524 = vmax.f32 %v3333, 0.0
    %v3525 = vmax.f32 %v3336, 0.0
    %v3526 = vmax.f32 %v3339, 0.0
    %v3527 = vmax.f32 %v3342, 0.0
    %v3528 = vmax.f32 %v3345, 0.0
    %v3529 = vmax.f32 %v3348, 0.0
    %v3530 = vmax.f32 %v3351, 0.0
    %v3531 = vmax.f32 %v3354, 0.0
    %v3532 = vmax.f32 %v3357, 0.0
    %v3533 = vmax.f32 %v3360, 0.0
    %v3534 = vmax.f32 %v3363, 0.0
    %v3535 = vmax.f32 %v3366, 0.0
    %v3536 = vmax.f32 %v3369, 0.0
    %v3537 = vmax.f32 %v3372, 0.0
    %v3538 = vmax.f32 %v3375, 0.0
    %v3539 = vmax.f32 %v3378, 0.0
    %v3540 = vmax.f32 %v3381, 0.0
    %v3541 = vmax.f32 %v3384, 0.0
    %v3542 = vmax.f32 %v3387, 0.0
    %v3543 = vmax.f32 %v3390, 0.0
    %v3544 = vmax.f32 %v3393, 0.0
    %v3545 = vmax.f32 %v3396, 0.0
    %v3546 = vmax.f32 %v3399, 0.0
    %v3547 = vmax.f32 %v3402, 0.0
    %v3548 = vmax.f32 %v3405, 0.0
    %v3549 = vmax.f32 %v3408, 0.0
    %v3550 = vmax.f32 %v3411, 0.0
    %v3551 = vmax.f32 %v3414, 0.0
    %v3552 = vmax.f32 %v3417, 0.0
    %v3553 = vmax.f32 %v3420, 0.0
    %v3554 = vmax.f32 %v3423, 0.0
    %v3555 = vmax.f32 %v3426, 0.0
    %v3556 = vmax.f32 %v3429, 0.0
    %v3557 = vmax.f32 %v3432, 0.0
    %v3558 = vmax.f32 %v3435, 0.0
    %v3559 = vmax.f32 %v3438, 0.0
    %v3560 = vmax.f32 %v3441, 0.0
    %v3561 = vmax.f32 %v3444, 0.0
    %v3562 = vmax.f32 %v3447, 0.0
    %v3563 = vmax.f32 %v3450, 0.0
    %v3564 = vmax.f32 %v3453, 0.0
    %v3565 = vmax.f32 %v3456, 0.0
    %v3566 = vmax.f32 %v3459, 0.0
    %v3567 = vmax.f32 %v3462, 0.0
    %v3568 = vmax.f32 %v3465, 0.0
    %v3569 = vmax.f32 %v3468, 0.0
    %v3570 = vmax.f32 %v3471, 0.0
    %v3571 = vmax.f32 %v3474, 0.0
    %v3572 = vmax.f32 %v3477, 0.0
    %v3573 = vmax.f32 %v3480, 0.0
    %v3574 = vmax.f32 %v3483, 0.0
    %v3575 = vmax.f32 %v3486, 0.0
    %v3576 = vmax.f32 %v3489, 0.0
    %v3577 = vmax.f32 %v3492, 0.0
    %v3578 = vmax.f32 %v3495, 0.0
    %v3579 = vmax.f32 %v3498, 0.0
    %v3580 = vmax.f32 %v3501, 0.0
    %v3581 = vmax.f32 %v3504, 0.0
    %v3582 = vmax.f32 %v3507, 0.0
    %v3583 = vmax.f32 %v3510, 0.0
    %v3584 = vmax.f32 %v3513, 0.0
    %v3585 = vmax.f32 %v3516, 0.0
    %v3586 = vmax.f32 %v3519, 0.0
    %v3587 = vmax.f32 %v3522, 0.0
    %v3588 = vld [vmem:[%s4] sm:$0xff]
    %v3589 = vld [vmem:[%s4 + $0x8] sm:$0xff]
    %v3590 = vld [vmem:[%s4 + $0x10] sm:$0xff]
    %v3591 = vld [vmem:[%s4 + $0x18] sm:$0xff]
    %v3592 = vld [vmem:[%s4 + $0x20] sm:$0xff]
    %v3593 = vld [vmem:[%s4 + $0x28] sm:$0xff]
    %v3594 = vld [vmem:[%s4 + $0x30] sm:$0xff]
    %v3595 = vld [vmem:[%s4 + $0x38] sm:$0xff]
    %v3596 = vld [vmem:[%s4 + $0x40] sm:$0x1]
    %v3598 = vsel %vm3119, %v3524, 0
    %v3601 = vsel %vm3119, %v3525, 0
    %v3604 = vsel %vm3119, %v3526, 0
    %v3607 = vsel %vm3119, %v3527, 0
    %v3610 = vsel %vm3119, %v3528, 0
    %v3613 = vsel %vm3119, %v3529, 0
    %v3616 = vsel %vm3119, %v3530, 0
    %v3619 = vsel %vm3119, %v3531, 0
    %v3622 = vsel %vm3119, %v3532, 0
    %v3625 = vsel %vm3119, %v3533, 0
    %v3628 = vsel %vm3119, %v3534, 0
    %v3631 = vsel %vm3119, %v3535, 0
    %v3634 = vsel %vm3119, %v3536, 0
    %v3637 = vsel %vm3119, %v3537, 0
    %v3640 = vsel %vm3119, %v3538, 0
    %v3643 = vsel %vm3119, %v3539, 0
    %v3646 = vsel %vm3119, %v3540, 0
    %v3649 = vsel %vm3119, %v3541, 0
    %v3652 = vsel %vm3119, %v3542, 0
    %v3655 = vsel %vm3119, %v3543, 0
    %v3658 = vsel %vm3119, %v3544, 0
    %v3661 = vsel %vm3119, %v3545, 0
    %v3664 = vsel %vm3119, %v3546, 0
    %v3667 = vsel %vm3119, %v3547, 0
    %v3670 = vsel %vm3119, %v3548, 0
    %v3673 = vsel %vm3119, %v3549, 0
    %v3676 = vsel %vm3119, %v3550, 0
    %v3679 = vsel %vm3119, %v3551, 0
    %v3682 = vsel %vm3119, %v3552, 0
    %v3685 = vsel %vm3119, %v3553, 0
    %v3688 = vsel %vm3119, %v3554, 0
    %v3691 = vsel %vm3119, %v3555, 0
    %v3694 = vsel %vm3119, %v3556, 0
    %v3697 = vsel %vm3119, %v3557, 0
    %v3700 = vsel %vm3119, %v3558, 0
    %v3703 = vsel %vm3119, %v3559, 0
    %v3706 = vsel %vm3119, %v3560, 0
    %v3709 = vsel %vm3119, %v3561, 0
    %v3712 = vsel %vm3119, %v3562, 0
    %v3715 = vsel %vm3119, %v3563, 0
    %v3718 = vsel %vm3119, %v3564, 0
    %v3721 = vsel %vm3119, %v3565, 0
    %v3724 = vsel %vm3119, %v3566, 0
    %v3727 = vsel %vm3119, %v3567, 0
    %v3730 = vsel %vm3119, %v3568, 0
    %v3733 = vsel %vm3119, %v3569, 0
    %v3736 = vsel %vm3119, %v3570, 0
    %v3739 = vsel %vm3119, %v3571, 0
    %v3742 = vsel %vm3119, %v3572, 0
    %v3745 = vsel %vm3119, %v3573, 0
    %v3748 = vsel %vm3119, %v3574, 0
    %v3751 = vsel %vm3119, %v3575, 0
    %v3754 = vsel %vm3119, %v3576, 0
    %v3757 = vsel %vm3119, %v3577, 0
    %v3760 = vsel %vm3119, %v3578, 0
    %v3763 = vsel %vm3119, %v3579, 0
    %v3766 = vsel %vm3119, %v3580, 0
    %v3769 = vsel %vm3119, %v3581, 0
    %v3772 = vsel %vm3119, %v3582, 0
    %v3775 = vsel %vm3119, %v3583, 0
    %v3778 = vsel %vm3119, %v3584, 0
    %v3781 = vsel %vm3119, %v3585, 0
    %v3784 = vsel %vm3119, %v3586, 0
    %v3787 = vsel %vm3119, %v3587, 0
    %v3790 = vsel %vm2206, %v3596, 0
    %3792 = vmatpush.msra.mxu0 0.0
    %3793 = vmatpush.msra.mxu0 0.0
    %3794 = vmatpush.msra.mxu0 0.0
    %3795 = vmatpush.msra.mxu0 0.0
    %3796 = vmatpush.msra.mxu0 0.0
    %3797 = vmatpush.msra.mxu0 0.0
    %3798 = vmatpush.msra.mxu0 0.0
    %3799 = vmatpush.msra.mxu0 %v3790
    %3800 = vmatpush.msra.mxu0 %v3595
    %3801 = vmatpush.msra.mxu0 %v3594
    %3802 = vmatpush.msra.mxu0 %v3593
    %3803 = vmatpush.msra.mxu0 %v3592
    %3804 = vmatpush.msra.mxu0 %v3591
    %3805 = vmatpush.msra.mxu0 %v3590
    %3806 = vmatpush.msra.mxu0 %v3589
    %3807 = vmatpush.msra.mxu0 %v3588
    %3808 = vmatmul.f32.gmra.mxu0 %v3598
    %v3809 = vpop.f32.mrf.mxu0
    %v3810 = vadd.f32 0.0, %v3809
    %3811 = vmatmul.f32.gmra.mxu0 %v3601
    %v3812 = vpop.f32.mrf.mxu0
    %v3813 = vadd.f32 0.0, %v3812
    %3814 = vmatmul.f32.gmra.mxu0 %v3604
    %v3815 = vpop.f32.mrf.mxu0
    %v3816 = vadd.f32 0.0, %v3815
    %3817 = vmatmul.f32.gmra.mxu0 %v3607
    %v3818 = vpop.f32.mrf.mxu0
    %v3819 = vadd.f32 0.0, %v3818
    %3820 = vmatmul.f32.gmra.mxu0 %v3610
    %v3821 = vpop.f32.mrf.mxu0
    %v3822 = vadd.f32 0.0, %v3821
    %3823 = vmatmul.f32.gmra.mxu0 %v3613
    %v3824 = vpop.f32.mrf.mxu0
    %v3825 = vadd.f32 0.0, %v3824
    %3826 = vmatmul.f32.gmra.mxu0 %v3616
    %v3827 = vpop.f32.mrf.mxu0
    %v3828 = vadd.f32 0.0, %v3827
    %3829 = vmatmul.f32.gmra.mxu0 %v3619
    %v3830 = vpop.f32.mrf.mxu0
    %v3831 = vadd.f32 0.0, %v3830
    %3832 = vmatmul.f32.gmra.mxu0 %v3622
    %v3833 = vpop.f32.mrf.mxu0
    %v3834 = vadd.f32 0.0, %v3833
    %3835 = vmatmul.f32.gmra.mxu0 %v3625
    %v3836 = vpop.f32.mrf.mxu0
    %v3837 = vadd.f32 0.0, %v3836
    %3838 = vmatmul.f32.gmra.mxu0 %v3628
    %v3839 = vpop.f32.mrf.mxu0
    %v3840 = vadd.f32 0.0, %v3839
    %3841 = vmatmul.f32.gmra.mxu0 %v3631
    %v3842 = vpop.f32.mrf.mxu0
    %v3843 = vadd.f32 0.0, %v3842
    %3844 = vmatmul.f32.gmra.mxu0 %v3634
    %v3845 = vpop.f32.mrf.mxu0
    %v3846 = vadd.f32 0.0, %v3845
    %3847 = vmatmul.f32.gmra.mxu0 %v3637
    %v3848 = vpop.f32.mrf.mxu0
    %v3849 = vadd.f32 0.0, %v3848
    %3850 = vmatmul.f32.gmra.mxu0 %v3640
    %v3851 = vpop.f32.mrf.mxu0
    %v3852 = vadd.f32 0.0, %v3851
    %3853 = vmatmul.f32.gmra.mxu0 %v3643
    %v3854 = vpop.f32.mrf.mxu0
    %v3855 = vadd.f32 0.0, %v3854
    %3856 = vmatmul.f32.gmra.mxu0 %v3646
    %v3857 = vpop.f32.mrf.mxu0
    %v3858 = vadd.f32 0.0, %v3857
    %3859 = vmatmul.f32.gmra.mxu0 %v3649
    %v3860 = vpop.f32.mrf.mxu0
    %v3861 = vadd.f32 0.0, %v3860
    %3862 = vmatmul.f32.gmra.mxu0 %v3652
    %v3863 = vpop.f32.mrf.mxu0
    %v3864 = vadd.f32 0.0, %v3863
    %3865 = vmatmul.f32.gmra.mxu0 %v3655
    %v3866 = vpop.f32.mrf.mxu0
    %v3867 = vadd.f32 0.0, %v3866
    %3868 = vmatmul.f32.gmra.mxu0 %v3658
    %v3869 = vpop.f32.mrf.mxu0
    %v3870 = vadd.f32 0.0, %v3869
    %3871 = vmatmul.f32.gmra.mxu0 %v3661
    %v3872 = vpop.f32.mrf.mxu0
    %v3873 = vadd.f32 0.0, %v3872
    %3874 = vmatmul.f32.gmra.mxu0 %v3664
    %v3875 = vpop.f32.mrf.mxu0
    %v3876 = vadd.f32 0.0, %v3875
    %3877 = vmatmul.f32.gmra.mxu0 %v3667
    %v3878 = vpop.f32.mrf.mxu0
    %v3879 = vadd.f32 0.0, %v3878
    %3880 = vmatmul.f32.gmra.mxu0 %v3670
    %v3881 = vpop.f32.mrf.mxu0
    %v3882 = vadd.f32 0.0, %v3881
    %3883 = vmatmul.f32.gmra.mxu0 %v3673
    %v3884 = vpop.f32.mrf.mxu0
    %v3885 = vadd.f32 0.0, %v3884
    %3886 = vmatmul.f32.gmra.mxu0 %v3676
    %v3887 = vpop.f32.mrf.mxu0
    %v3888 = vadd.f32 0.0, %v3887
    %3889 = vmatmul.f32.gmra.mxu0 %v3679
    %v3890 = vpop.f32.mrf.mxu0
    %v3891 = vadd.f32 0.0, %v3890
    %3892 = vmatmul.f32.gmra.mxu0 %v3682
    %v3893 = vpop.f32.mrf.mxu0
    %v3894 = vadd.f32 0.0, %v3893
    %3895 = vmatmul.f32.gmra.mxu0 %v3685
    %v3896 = vpop.f32.mrf.mxu0
    %v3897 = vadd.f32 0.0, %v3896
    %3898 = vmatmul.f32.gmra.mxu0 %v3688
    %v3899 = vpop.f32.mrf.mxu0
    %v3900 = vadd.f32 0.0, %v3899
    %3901 = vmatmul.f32.gmra.mxu0 %v3691
    %v3902 = vpop.f32.mrf.mxu0
    %v3903 = vadd.f32 0.0, %v3902
    %3904 = vmatmul.f32.gmra.mxu0 %v3694
    %v3905 = vpop.f32.mrf.mxu0
    %v3906 = vadd.f32 0.0, %v3905
    %3907 = vmatmul.f32.gmra.mxu0 %v3697
    %v3908 = vpop.f32.mrf.mxu0
    %v3909 = vadd.f32 0.0, %v3908
    %3910 = vmatmul.f32.gmra.mxu0 %v3700
    %v3911 = vpop.f32.mrf.mxu0
    %v3912 = vadd.f32 0.0, %v3911
    %3913 = vmatmul.f32.gmra.mxu0 %v3703
    %v3914 = vpop.f32.mrf.mxu0
    %v3915 = vadd.f32 0.0, %v3914
    %3916 = vmatmul.f32.gmra.mxu0 %v3706
    %v3917 = vpop.f32.mrf.mxu0
    %v3918 = vadd.f32 0.0, %v3917
    %3919 = vmatmul.f32.gmra.mxu0 %v3709
    %v3920 = vpop.f32.mrf.mxu0
    %v3921 = vadd.f32 0.0, %v3920
    %3922 = vmatmul.f32.gmra.mxu0 %v3712
    %v3923 = vpop.f32.mrf.mxu0
    %v3924 = vadd.f32 0.0, %v3923
    %3925 = vmatmul.f32.gmra.mxu0 %v3715
    %v3926 = vpop.f32.mrf.mxu0
    %v3927 = vadd.f32 0.0, %v3926
    %3928 = vmatmul.f32.gmra.mxu0 %v3718
    %v3929 = vpop.f32.mrf.mxu0
    %v3930 = vadd.f32 0.0, %v3929
    %3931 = vmatmul.f32.gmra.mxu0 %v3721
    %v3932 = vpop.f32.mrf.mxu0
    %v3933 = vadd.f32 0.0, %v3932
    %3934 = vmatmul.f32.gmra.mxu0 %v3724
    %v3935 = vpop.f32.mrf.mxu0
    %v3936 = vadd.f32 0.0, %v3935
    %3937 = vmatmul.f32.gmra.mxu0 %v3727
    %v3938 = vpop.f32.mrf.mxu0
    %v3939 = vadd.f32 0.0, %v3938
    %3940 = vmatmul.f32.gmra.mxu0 %v3730
    %v3941 = vpop.f32.mrf.mxu0
    %v3942 = vadd.f32 0.0, %v3941
    %3943 = vmatmul.f32.gmra.mxu0 %v3733
    %v3944 = vpop.f32.mrf.mxu0
    %v3945 = vadd.f32 0.0, %v3944
    %3946 = vmatmul.f32.gmra.mxu0 %v3736
    %v3947 = vpop.f32.mrf.mxu0
    %v3948 = vadd.f32 0.0, %v3947
    %3949 = vmatmul.f32.gmra.mxu0 %v3739
    %v3950 = vpop.f32.mrf.mxu0
    %v3951 = vadd.f32 0.0, %v3950
    %3952 = vmatmul.f32.gmra.mxu0 %v3742
    %v3953 = vpop.f32.mrf.mxu0
    %v3954 = vadd.f32 0.0, %v3953
    %3955 = vmatmul.f32.gmra.mxu0 %v3745
    %v3956 = vpop.f32.mrf.mxu0
    %v3957 = vadd.f32 0.0, %v3956
    %3958 = vmatmul.f32.gmra.mxu0 %v3748
    %v3959 = vpop.f32.mrf.mxu0
    %v3960 = vadd.f32 0.0, %v3959
    %3961 = vmatmul.f32.gmra.mxu0 %v3751
    %v3962 = vpop.f32.mrf.mxu0
    %v3963 = vadd.f32 0.0, %v3962
    %3964 = vmatmul.f32.gmra.mxu0 %v3754
    %v3965 = vpop.f32.mrf.mxu0
    %v3966 = vadd.f32 0.0, %v3965
    %3967 = vmatmul.f32.gmra.mxu0 %v3757
    %v3968 = vpop.f32.mrf.mxu0
    %v3969 = vadd.f32 0.0, %v3968
    %3970 = vmatmul.f32.gmra.mxu0 %v3760
    %v3971 = vpop.f32.mrf.mxu0
    %v3972 = vadd.f32 0.0, %v3971
    %3973 = vmatmul.f32.gmra.mxu0 %v3763
    %v3974 = vpop.f32.mrf.mxu0
    %v3975 = vadd.f32 0.0, %v3974
    %3976 = vmatmul.f32.gmra.mxu0 %v3766
    %v3977 = vpop.f32.mrf.mxu0
    %v3978 = vadd.f32 0.0, %v3977
    %3979 = vmatmul.f32.gmra.mxu0 %v3769
    %v3980 = vpop.f32.mrf.mxu0
    %v3981 = vadd.f32 0.0, %v3980
    %3982 = vmatmul.f32.gmra.mxu0 %v3772
    %v3983 = vpop.f32.mrf.mxu0
    %v3984 = vadd.f32 0.0, %v3983
    %3985 = vmatmul.f32.gmra.mxu0 %v3775
    %v3986 = vpop.f32.mrf.mxu0
    %v3987 = vadd.f32 0.0, %v3986
    %3988 = vmatmul.f32.gmra.mxu0 %v3778
    %v3989 = vpop.f32.mrf.mxu0
    %v3990 = vadd.f32 0.0, %v3989
    %3991 = vmatmul.f32.gmra.mxu0 %v3781
    %v3992 = vpop.f32.mrf.mxu0
    %v3993 = vadd.f32 0.0, %v3992
    %3994 = vmatmul.f32.gmra.mxu0 %v3784
    %v3995 = vpop.f32.mrf.mxu0
    %v3996 = vadd.f32 0.0, %v3995
    %3997 = vmatmul.f32.gmra.mxu0 %v3787
    %v3998 = vpop.f32.mrf.mxu0
    %v3999 = vadd.f32 0.0, %v3998
    %4000 = vdwg.mxu0
    %v4001 = vmax.f32 %v3810, 0.0
    %v4002 = vmax.f32 %v3813, 0.0
    %v4003 = vmax.f32 %v3816, 0.0
    %v4004 = vmax.f32 %v3819, 0.0
    %v4005 = vmax.f32 %v3822, 0.0
    %v4006 = vmax.f32 %v3825, 0.0
    %v4007 = vmax.f32 %v3828, 0.0
    %v4008 = vmax.f32 %v3831, 0.0
    %v4009 = vmax.f32 %v3834, 0.0
    %v4010 = vmax.f32 %v3837, 0.0
    %v4011 = vmax.f32 %v3840, 0.0
    %v4012 = vmax.f32 %v3843, 0.0
    %v4013 = vmax.f32 %v3846, 0.0
    %v4014 = vmax.f32 %v3849, 0.0
    %v4015 = vmax.f32 %v3852, 0.0
    %v4016 = vmax.f32 %v3855, 0.0
    %v4017 = vmax.f32 %v3858, 0.0
    %v4018 = vmax.f32 %v3861, 0.0
    %v4019 = vmax.f32 %v3864, 0.0
    %v4020 = vmax.f32 %v3867, 0.0
    %v4021 = vmax.f32 %v3870, 0.0
    %v4022 = vmax.f32 %v3873, 0.0
    %v4023 = vmax.f32 %v3876, 0.0
    %v4024 = vmax.f32 %v3879, 0.0
    %v4025 = vmax.f32 %v3882, 0.0
    %v4026 = vmax.f32 %v3885, 0.0
    %v4027 = vmax.f32 %v3888, 0.0
    %v4028 = vmax.f32 %v3891, 0.0
    %v4029 = vmax.f32 %v3894, 0.0
    %v4030 = vmax.f32 %v3897, 0.0
    %v4031 = vmax.f32 %v3900, 0.0
    %v4032 = vmax.f32 %v3903, 0.0
    %v4033 = vmax.f32 %v3906, 0.0
    %v4034 = vmax.f32 %v3909, 0.0
    %v4035 = vmax.f32 %v3912, 0.0
    %v4036 = vmax.f32 %v3915, 0.0
    %v4037 = vmax.f32 %v3918, 0.0
    %v4038 = vmax.f32 %v3921, 0.0
    %v4039 = vmax.f32 %v3924, 0.0
    %v4040 = vmax.f32 %v3927, 0.0
    %v4041 = vmax.f32 %v3930, 0.0
    %v4042 = vmax.f32 %v3933, 0.0
    %v4043 = vmax.f32 %v3936, 0.0
    %v4044 = vmax.f32 %v3939, 0.0
    %v4045 = vmax.f32 %v3942, 0.0
    %v4046 = vmax.f32 %v3945, 0.0
    %v4047 = vmax.f32 %v3948, 0.0
    %v4048 = vmax.f32 %v3951, 0.0
    %v4049 = vmax.f32 %v3954, 0.0
    %v4050 = vmax.f32 %v3957, 0.0
    %v4051 = vmax.f32 %v3960, 0.0
    %v4052 = vmax.f32 %v3963, 0.0
    %v4053 = vmax.f32 %v3966, 0.0
    %v4054 = vmax.f32 %v3969, 0.0
    %v4055 = vmax.f32 %v3972, 0.0
    %v4056 = vmax.f32 %v3975, 0.0
    %v4057 = vmax.f32 %v3978, 0.0
    %v4058 = vmax.f32 %v3981, 0.0
    %v4059 = vmax.f32 %v3984, 0.0
    %v4060 = vmax.f32 %v3987, 0.0
    %v4061 = vmax.f32 %v3990, 0.0
    %v4062 = vmax.f32 %v3993, 0.0
    %v4063 = vmax.f32 %v3996, 0.0
    %v4064 = vmax.f32 %v3999, 0.0
    %v4065 = vld [vmem:[%s5] sm:$0xff]
    %v4066 = vld [vmem:[%s5 + $0x8] sm:$0xff]
    %v4067 = vld [vmem:[%s5 + $0x10] sm:$0xff]
    %v4068 = vld [vmem:[%s5 + $0x18] sm:$0xff]
    %v4069 = vld [vmem:[%s5 + $0x20] sm:$0x1]
    %vm4070 = vcmask 269312
    %v4072 = vsel %vm4070, %v4001, 0
    %v4075 = vsel %vm4070, %v4002, 0
    %v4078 = vsel %vm4070, %v4003, 0
    %v4081 = vsel %vm4070, %v4004, 0
    %v4084 = vsel %vm4070, %v4005, 0
    %v4087 = vsel %vm4070, %v4006, 0
    %v4090 = vsel %vm4070, %v4007, 0
    %v4093 = vsel %vm4070, %v4008, 0
    %v4096 = vsel %vm4070, %v4009, 0
    %v4099 = vsel %vm4070, %v4010, 0
    %v4102 = vsel %vm4070, %v4011, 0
    %v4105 = vsel %vm4070, %v4012, 0
    %v4108 = vsel %vm4070, %v4013, 0
    %v4111 = vsel %vm4070, %v4014, 0
    %v4114 = vsel %vm4070, %v4015, 0
    %v4117 = vsel %vm4070, %v4016, 0
    %v4120 = vsel %vm4070, %v4017, 0
    %v4123 = vsel %vm4070, %v4018, 0
    %v4126 = vsel %vm4070, %v4019, 0
    %v4129 = vsel %vm4070, %v4020, 0
    %v4132 = vsel %vm4070, %v4021, 0
    %v4135 = vsel %vm4070, %v4022, 0
    %v4138 = vsel %vm4070, %v4023, 0
    %v4141 = vsel %vm4070, %v4024, 0
    %v4144 = vsel %vm4070, %v4025, 0
    %v4147 = vsel %vm4070, %v4026, 0
    %v4150 = vsel %vm4070, %v4027, 0
    %v4153 = vsel %vm4070, %v4028, 0
    %v4156 = vsel %vm4070, %v4029, 0
    %v4159 = vsel %vm4070, %v4030, 0
    %v4162 = vsel %vm4070, %v4031, 0
    %v4165 = vsel %vm4070, %v4032, 0
    %v4168 = vsel %vm4070, %v4033, 0
    %v4171 = vsel %vm4070, %v4034, 0
    %v4174 = vsel %vm4070, %v4035, 0
    %v4177 = vsel %vm4070, %v4036, 0
    %v4180 = vsel %vm4070, %v4037, 0
    %v4183 = vsel %vm4070, %v4038, 0
    %v4186 = vsel %vm4070, %v4039, 0
    %v4189 = vsel %vm4070, %v4040, 0
    %v4192 = vsel %vm4070, %v4041, 0
    %v4195 = vsel %vm4070, %v4042, 0
    %v4198 = vsel %vm4070, %v4043, 0
    %v4201 = vsel %vm4070, %v4044, 0
    %v4204 = vsel %vm4070, %v4045, 0
    %v4207 = vsel %vm4070, %v4046, 0
    %v4210 = vsel %vm4070, %v4047, 0
    %v4213 = vsel %vm4070, %v4048, 0
    %v4216 = vsel %vm4070, %v4049, 0
    %v4219 = vsel %vm4070, %v4050, 0
    %v4222 = vsel %vm4070, %v4051, 0
    %v4225 = vsel %vm4070, %v4052, 0
    %v4228 = vsel %vm4070, %v4053, 0
    %v4231 = vsel %vm4070, %v4054, 0
    %v4234 = vsel %vm4070, %v4055, 0
    %v4237 = vsel %vm4070, %v4056, 0
    %v4240 = vsel %vm4070, %v4057, 0
    %v4243 = vsel %vm4070, %v4058, 0
    %v4246 = vsel %vm4070, %v4059, 0
    %v4249 = vsel %vm4070, %v4060, 0
    %v4252 = vsel %vm4070, %v4061, 0
    %v4255 = vsel %vm4070, %v4062, 0
    %v4258 = vsel %vm4070, %v4063, 0
    %v4261 = vsel %vm4070, %v4064, 0
    %v4264 = vsel %vm2206, %v4069, 0
    %4266 = vmatpush.msra.mxu0 0.0
    %4267 = vmatpush.msra.mxu0 0.0
    %4268 = vmatpush.msra.mxu0 0.0
    %4269 = vmatpush.msra.mxu0 0.0
    %4270 = vmatpush.msra.mxu0 0.0
    %4271 = vmatpush.msra.mxu0 0.0
    %4272 = vmatpush.msra.mxu0 0.0
    %4273 = vmatpush.msra.mxu0 0.0
    %4274 = vmatpush.msra.mxu0 0.0
    %4275 = vmatpush.msra.mxu0 0.0
    %4276 = vmatpush.msra.mxu0 0.0
    %4277 = vmatpush.msra.mxu0 %v4264
    %4278 = vmatpush.msra.mxu0 %v4068
    %4279 = vmatpush.msra.mxu0 %v4067
    %4280 = vmatpush.msra.mxu0 %v4066
    %4281 = vmatpush.msra.mxu0 %v4065
    %4282 = vmatmul.f32.gmra.mxu0 %v4072
    %v4283 = vpop.f32.mrf.mxu0
    %v4284 = vadd.f32 0.0, %v4283
    %4285 = vmatmul.f32.gmra.mxu0 %v4075
    %v4286 = vpop.f32.mrf.mxu0
    %v4287 = vadd.f32 0.0, %v4286
    %4288 = vmatmul.f32.gmra.mxu0 %v4078
    %v4289 = vpop.f32.mrf.mxu0
    %v4290 = vadd.f32 0.0, %v4289
    %4291 = vmatmul.f32.gmra.mxu0 %v4081
    %v4292 = vpop.f32.mrf.mxu0
    %v4293 = vadd.f32 0.0, %v4292
    %4294 = vmatmul.f32.gmra.mxu0 %v4084
    %v4295 = vpop.f32.mrf.mxu0
    %v4296 = vadd.f32 0.0, %v4295
    %4297 = vmatmul.f32.gmra.mxu0 %v4087
    %v4298 = vpop.f32.mrf.mxu0
    %v4299 = vadd.f32 0.0, %v4298
    %4300 = vmatmul.f32.gmra.mxu0 %v4090
    %v4301 = vpop.f32.mrf.mxu0
    %v4302 = vadd.f32 0.0, %v4301
    %4303 = vmatmul.f32.gmra.mxu0 %v4093
    %v4304 = vpop.f32.mrf.mxu0
    %v4305 = vadd.f32 0.0, %v4304
    %4306 = vmatmul.f32.gmra.mxu0 %v4096
    %v4307 = vpop.f32.mrf.mxu0
    %v4308 = vadd.f32 0.0, %v4307
    %4309 = vmatmul.f32.gmra.mxu0 %v4099
    %v4310 = vpop.f32.mrf.mxu0
    %v4311 = vadd.f32 0.0, %v4310
    %4312 = vmatmul.f32.gmra.mxu0 %v4102
    %v4313 = vpop.f32.mrf.mxu0
    %v4314 = vadd.f32 0.0, %v4313
    %4315 = vmatmul.f32.gmra.mxu0 %v4105
    %v4316 = vpop.f32.mrf.mxu0
    %v4317 = vadd.f32 0.0, %v4316
    %4318 = vmatmul.f32.gmra.mxu0 %v4108
    %v4319 = vpop.f32.mrf.mxu0
    %v4320 = vadd.f32 0.0, %v4319
    %4321 = vmatmul.f32.gmra.mxu0 %v4111
    %v4322 = vpop.f32.mrf.mxu0
    %v4323 = vadd.f32 0.0, %v4322
    %4324 = vmatmul.f32.gmra.mxu0 %v4114
    %v4325 = vpop.f32.mrf.mxu0
    %v4326 = vadd.f32 0.0, %v4325
    %4327 = vmatmul.f32.gmra.mxu0 %v4117
    %v4328 = vpop.f32.mrf.mxu0
    %v4329 = vadd.f32 0.0, %v4328
    %4330 = vmatmul.f32.gmra.mxu0 %v4120
    %v4331 = vpop.f32.mrf.mxu0
    %v4332 = vadd.f32 0.0, %v4331
    %4333 = vmatmul.f32.gmra.mxu0 %v4123
    %v4334 = vpop.f32.mrf.mxu0
    %v4335 = vadd.f32 0.0, %v4334
    %4336 = vmatmul.f32.gmra.mxu0 %v4126
    %v4337 = vpop.f32.mrf.mxu0
    %v4338 = vadd.f32 0.0, %v4337
    %4339 = vmatmul.f32.gmra.mxu0 %v4129
    %v4340 = vpop.f32.mrf.mxu0
    %v4341 = vadd.f32 0.0, %v4340
    %4342 = vmatmul.f32.gmra.mxu0 %v4132
    %v4343 = vpop.f32.mrf.mxu0
    %v4344 = vadd.f32 0.0, %v4343
    %4345 = vmatmul.f32.gmra.mxu0 %v4135
    %v4346 = vpop.f32.mrf.mxu0
    %v4347 = vadd.f32 0.0, %v4346
    %4348 = vmatmul.f32.gmra.mxu0 %v4138
    %v4349 = vpop.f32.mrf.mxu0
    %v4350 = vadd.f32 0.0, %v4349
    %4351 = vmatmul.f32.gmra.mxu0 %v4141
    %v4352 = vpop.f32.mrf.mxu0
    %v4353 = vadd.f32 0.0, %v4352
    %4354 = vmatmul.f32.gmra.mxu0 %v4144
    %v4355 = vpop.f32.mrf.mxu0
    %v4356 = vadd.f32 0.0, %v4355
    %4357 = vmatmul.f32.gmra.mxu0 %v4147
    %v4358 = vpop.f32.mrf.mxu0
    %v4359 = vadd.f32 0.0, %v4358
    %4360 = vmatmul.f32.gmra.mxu0 %v4150
    %v4361 = vpop.f32.mrf.mxu0
    %v4362 = vadd.f32 0.0, %v4361
    %4363 = vmatmul.f32.gmra.mxu0 %v4153
    %v4364 = vpop.f32.mrf.mxu0
    %v4365 = vadd.f32 0.0, %v4364
    %4366 = vmatmul.f32.gmra.mxu0 %v4156
    %v4367 = vpop.f32.mrf.mxu0
    %v4368 = vadd.f32 0.0, %v4367
    %4369 = vmatmul.f32.gmra.mxu0 %v4159
    %v4370 = vpop.f32.mrf.mxu0
    %v4371 = vadd.f32 0.0, %v4370
    %4372 = vmatmul.f32.gmra.mxu0 %v4162
    %v4373 = vpop.f32.mrf.mxu0
    %v4374 = vadd.f32 0.0, %v4373
    %4375 = vmatmul.f32.gmra.mxu0 %v4165
    %v4376 = vpop.f32.mrf.mxu0
    %v4377 = vadd.f32 0.0, %v4376
    %4378 = vmatmul.f32.gmra.mxu0 %v4168
    %v4379 = vpop.f32.mrf.mxu0
    %v4380 = vadd.f32 0.0, %v4379
    %4381 = vmatmul.f32.gmra.mxu0 %v4171
    %v4382 = vpop.f32.mrf.mxu0
    %v4383 = vadd.f32 0.0, %v4382
    %4384 = vmatmul.f32.gmra.mxu0 %v4174
    %v4385 = vpop.f32.mrf.mxu0
    %v4386 = vadd.f32 0.0, %v4385
    %4387 = vmatmul.f32.gmra.mxu0 %v4177
    %v4388 = vpop.f32.mrf.mxu0
    %v4389 = vadd.f32 0.0, %v4388
    %4390 = vmatmul.f32.gmra.mxu0 %v4180
    %v4391 = vpop.f32.mrf.mxu0
    %v4392 = vadd.f32 0.0, %v4391
    %4393 = vmatmul.f32.gmra.mxu0 %v4183
    %v4394 = vpop.f32.mrf.mxu0
    %v4395 = vadd.f32 0.0, %v4394
    %4396 = vmatmul.f32.gmra.mxu0 %v4186
    %v4397 = vpop.f32.mrf.mxu0
    %v4398 = vadd.f32 0.0, %v4397
    %4399 = vmatmul.f32.gmra.mxu0 %v4189
    %v4400 = vpop.f32.mrf.mxu0
    %v4401 = vadd.f32 0.0, %v4400
    %4402 = vmatmul.f32.gmra.mxu0 %v4192
    %v4403 = vpop.f32.mrf.mxu0
    %v4404 = vadd.f32 0.0, %v4403
    %4405 = vmatmul.f32.gmra.mxu0 %v4195
    %v4406 = vpop.f32.mrf.mxu0
    %v4407 = vadd.f32 0.0, %v4406
    %4408 = vmatmul.f32.gmra.mxu0 %v4198
    %v4409 = vpop.f32.mrf.mxu0
    %v4410 = vadd.f32 0.0, %v4409
    %4411 = vmatmul.f32.gmra.mxu0 %v4201
    %v4412 = vpop.f32.mrf.mxu0
    %v4413 = vadd.f32 0.0, %v4412
    %4414 = vmatmul.f32.gmra.mxu0 %v4204
    %v4415 = vpop.f32.mrf.mxu0
    %v4416 = vadd.f32 0.0, %v4415
    %4417 = vmatmul.f32.gmra.mxu0 %v4207
    %v4418 = vpop.f32.mrf.mxu0
    %v4419 = vadd.f32 0.0, %v4418
    %4420 = vmatmul.f32.gmra.mxu0 %v4210
    %v4421 = vpop.f32.mrf.mxu0
    %v4422 = vadd.f32 0.0, %v4421
    %4423 = vmatmul.f32.gmra.mxu0 %v4213
    %v4424 = vpop.f32.mrf.mxu0
    %v4425 = vadd.f32 0.0, %v4424
    %4426 = vmatmul.f32.gmra.mxu0 %v4216
    %v4427 = vpop.f32.mrf.mxu0
    %v4428 = vadd.f32 0.0, %v4427
    %4429 = vmatmul.f32.gmra.mxu0 %v4219
    %v4430 = vpop.f32.mrf.mxu0
    %v4431 = vadd.f32 0.0, %v4430
    %4432 = vmatmul.f32.gmra.mxu0 %v4222
    %v4433 = vpop.f32.mrf.mxu0
    %v4434 = vadd.f32 0.0, %v4433
    %4435 = vmatmul.f32.gmra.mxu0 %v4225
    %v4436 = vpop.f32.mrf.mxu0
    %v4437 = vadd.f32 0.0, %v4436
    %4438 = vmatmul.f32.gmra.mxu0 %v4228
    %v4439 = vpop.f32.mrf.mxu0
    %v4440 = vadd.f32 0.0, %v4439
    %4441 = vmatmul.f32.gmra.mxu0 %v4231
    %v4442 = vpop.f32.mrf.mxu0
    %v4443 = vadd.f32 0.0, %v4442
    %4444 = vmatmul.f32.gmra.mxu0 %v4234
    %v4445 = vpop.f32.mrf.mxu0
    %v4446 = vadd.f32 0.0, %v4445
    %4447 = vmatmul.f32.gmra.mxu0 %v4237
    %v4448 = vpop.f32.mrf.mxu0
    %v4449 = vadd.f32 0.0, %v4448
    %4450 = vmatmul.f32.gmra.mxu0 %v4240
    %v4451 = vpop.f32.mrf.mxu0
    %v4452 = vadd.f32 0.0, %v4451
    %4453 = vmatmul.f32.gmra.mxu0 %v4243
    %v4454 = vpop.f32.mrf.mxu0
    %v4455 = vadd.f32 0.0, %v4454
    %4456 = vmatmul.f32.gmra.mxu0 %v4246
    %v4457 = vpop.f32.mrf.mxu0
    %v4458 = vadd.f32 0.0, %v4457
    %4459 = vmatmul.f32.gmra.mxu0 %v4249
    %v4460 = vpop.f32.mrf.mxu0
    %v4461 = vadd.f32 0.0, %v4460
    %4462 = vmatmul.f32.gmra.mxu0 %v4252
    %v4463 = vpop.f32.mrf.mxu0
    %v4464 = vadd.f32 0.0, %v4463
    %4465 = vmatmul.f32.gmra.mxu0 %v4255
    %v4466 = vpop.f32.mrf.mxu0
    %v4467 = vadd.f32 0.0, %v4466
    %4468 = vmatmul.f32.gmra.mxu0 %v4258
    %v4469 = vpop.f32.mrf.mxu0
    %v4470 = vadd.f32 0.0, %v4469
    %4471 = vmatmul.f32.gmra.mxu0 %v4261
    %v4472 = vpop.f32.mrf.mxu0
    %v4473 = vadd.f32 0.0, %v4472
    %4474 = vdwg.mxu0
    %vm4475 = vcmask 261120
    %v4476 = vsel %vm4475, %v4284, -inf
    %4477 = vmax.xlane.f32.xlu0 %v4476
    %v4478 = vpop.xlane.xlu0 %4477
    %v4479 = vsel %vm4475, %v4287, -inf
    %4480 = vmax.xlane.f32.xlu0 %v4479
    %v4481 = vpop.xlane.xlu0 %4480
    %v4482 = vsel %vm4475, %v4290, -inf
    %4483 = vmax.xlane.f32.xlu0 %v4482
    %v4484 = vpop.xlane.xlu0 %4483
    %v4485 = vsel %vm4475, %v4293, -inf
    %4486 = vmax.xlane.f32.xlu0 %v4485
    %v4487 = vpop.xlane.xlu0 %4486
    %v4488 = vsel %vm4475, %v4296, -inf
    %4489 = vmax.xlane.f32.xlu0 %v4488
    %v4490 = vpop.xlane.xlu0 %4489
    %v4491 = vsel %vm4475, %v4299, -inf
    %4492 = vmax.xlane.f32.xlu0 %v4491
    %v4493 = vpop.xlane.xlu0 %4492
    %v4494 = vsel %vm4475, %v4302, -inf
    %4495 = vmax.xlane.f32.xlu0 %v4494
    %v4496 = vpop.xlane.xlu0 %4495
    %v4497 = vsel %vm4475, %v4305, -inf
    %4498 = vmax.xlane.f32.xlu0 %v4497
    %v4499 = vpop.xlane.xlu0 %4498
    %v4500 = vsel %vm4475, %v4308, -inf
    %4501 = vmax.xlane.f32.xlu0 %v4500
    %v4502 = vpop.xlane.xlu0 %4501
    %v4503 = vsel %vm4475, %v4311, -inf
    %4504 = vmax.xlane.f32.xlu0 %v4503
    %v4505 = vpop.xlane.xlu0 %4504
    %v4506 = vsel %vm4475, %v4314, -inf
    %4507 = vmax.xlane.f32.xlu0 %v4506
    %v4508 = vpop.xlane.xlu0 %4507
    %v4509 = vsel %vm4475, %v4317, -inf
    %4510 = vmax.xlane.f32.xlu0 %v4509
    %v4511 = vpop.xlane.xlu0 %4510
    %v4512 = vsel %vm4475, %v4320, -inf
    %4513 = vmax.xlane.f32.xlu0 %v4512
    %v4514 = vpop.xlane.xlu0 %4513
    %v4515 = vsel %vm4475, %v4323, -inf
    %4516 = vmax.xlane.f32.xlu0 %v4515
    %v4517 = vpop.xlane.xlu0 %4516
    %v4518 = vsel %vm4475, %v4326, -inf
    %4519 = vmax.xlane.f32.xlu0 %v4518
    %v4520 = vpop.xlane.xlu0 %4519
    %v4521 = vsel %vm4475, %v4329, -inf
    %4522 = vmax.xlane.f32.xlu0 %v4521
    %v4523 = vpop.xlane.xlu0 %4522
    %v4524 = vsel %vm4475, %v4332, -inf
    %4525 = vmax.xlane.f32.xlu0 %v4524
    %v4526 = vpop.xlane.xlu0 %4525
    %v4527 = vsel %vm4475, %v4335, -inf
    %4528 = vmax.xlane.f32.xlu0 %v4527
    %v4529 = vpop.xlane.xlu0 %4528
    %v4530 = vsel %vm4475, %v4338, -inf
    %4531 = vmax.xlane.f32.xlu0 %v4530
    %v4532 = vpop.xlane.xlu0 %4531
    %v4533 = vsel %vm4475, %v4341, -inf
    %4534 = vmax.xlane.f32.xlu0 %v4533
    %v4535 = vpop.xlane.xlu0 %4534
    %v4536 = vsel %vm4475, %v4344, -inf
    %4537 = vmax.xlane.f32.xlu0 %v4536
    %v4538 = vpop.xlane.xlu0 %4537
    %v4539 = vsel %vm4475, %v4347, -inf
    %4540 = vmax.xlane.f32.xlu0 %v4539
    %v4541 = vpop.xlane.xlu0 %4540
    %v4542 = vsel %vm4475, %v4350, -inf
    %4543 = vmax.xlane.f32.xlu0 %v4542
    %v4544 = vpop.xlane.xlu0 %4543
    %v4545 = vsel %vm4475, %v4353, -inf
    %4546 = vmax.xlane.f32.xlu0 %v4545
    %v4547 = vpop.xlane.xlu0 %4546
    %v4548 = vsel %vm4475, %v4356, -inf
    %4549 = vmax.xlane.f32.xlu0 %v4548
    %v4550 = vpop.xlane.xlu0 %4549
    %v4551 = vsel %vm4475, %v4359, -inf
    %4552 = vmax.xlane.f32.xlu0 %v4551
    %v4553 = vpop.xlane.xlu0 %4552
    %v4554 = vsel %vm4475, %v4362, -inf
    %4555 = vmax.xlane.f32.xlu0 %v4554
    %v4556 = vpop.xlane.xlu0 %4555
    %v4557 = vsel %vm4475, %v4365, -inf
    %4558 = vmax.xlane.f32.xlu0 %v4557
    %v4559 = vpop.xlane.xlu0 %4558
    %v4560 = vsel %vm4475, %v4368, -inf
    %4561 = vmax.xlane.f32.xlu0 %v4560
    %v4562 = vpop.xlane.xlu0 %4561
    %v4563 = vsel %vm4475, %v4371, -inf
    %4564 = vmax.xlane.f32.xlu0 %v4563
    %v4565 = vpop.xlane.xlu0 %4564
    %v4566 = vsel %vm4475, %v4374, -inf
    %4567 = vmax.xlane.f32.xlu0 %v4566
    %v4568 = vpop.xlane.xlu0 %4567
    %v4569 = vsel %vm4475, %v4377, -inf
    %4570 = vmax.xlane.f32.xlu0 %v4569
    %v4571 = vpop.xlane.xlu0 %4570
    %v4572 = vsel %vm4475, %v4380, -inf
    %4573 = vmax.xlane.f32.xlu0 %v4572
    %v4574 = vpop.xlane.xlu0 %4573
    %v4575 = vsel %vm4475, %v4383, -inf
    %4576 = vmax.xlane.f32.xlu0 %v4575
    %v4577 = vpop.xlane.xlu0 %4576
    %v4578 = vsel %vm4475, %v4386, -inf
    %4579 = vmax.xlane.f32.xlu0 %v4578
    %v4580 = vpop.xlane.xlu0 %4579
    %v4581 = vsel %vm4475, %v4389, -inf
    %4582 = vmax.xlane.f32.xlu0 %v4581
    %v4583 = vpop.xlane.xlu0 %4582
    %v4584 = vsel %vm4475, %v4392, -inf
    %4585 = vmax.xlane.f32.xlu0 %v4584
    %v4586 = vpop.xlane.xlu0 %4585
    %v4587 = vsel %vm4475, %v4395, -inf
    %4588 = vmax.xlane.f32.xlu0 %v4587
    %v4589 = vpop.xlane.xlu0 %4588
    %v4590 = vsel %vm4475, %v4398, -inf
    %4591 = vmax.xlane.f32.xlu0 %v4590
    %v4592 = vpop.xlane.xlu0 %4591
    %v4593 = vsel %vm4475, %v4401, -inf
    %4594 = vmax.xlane.f32.xlu0 %v4593
    %v4595 = vpop.xlane.xlu0 %4594
    %v4596 = vsel %vm4475, %v4404, -inf
    %4597 = vmax.xlane.f32.xlu0 %v4596
    %v4598 = vpop.xlane.xlu0 %4597
    %v4599 = vsel %vm4475, %v4407, -inf
    %4600 = vmax.xlane.f32.xlu0 %v4599
    %v4601 = vpop.xlane.xlu0 %4600
    %v4602 = vsel %vm4475, %v4410, -inf
    %4603 = vmax.xlane.f32.xlu0 %v4602
    %v4604 = vpop.xlane.xlu0 %4603
    %v4605 = vsel %vm4475, %v4413, -inf
    %4606 = vmax.xlane.f32.xlu0 %v4605
    %v4607 = vpop.xlane.xlu0 %4606
    %v4608 = vsel %vm4475, %v4416, -inf
    %4609 = vmax.xlane.f32.xlu0 %v4608
    %v4610 = vpop.xlane.xlu0 %4609
    %v4611 = vsel %vm4475, %v4419, -inf
    %4612 = vmax.xlane.f32.xlu0 %v4611
    %v4613 = vpop.xlane.xlu0 %4612
    %v4614 = vsel %vm4475, %v4422, -inf
    %4615 = vmax.xlane.f32.xlu0 %v4614
    %v4616 = vpop.xlane.xlu0 %4615
    %v4617 = vsel %vm4475, %v4425, -inf
    %4618 = vmax.xlane.f32.xlu0 %v4617
    %v4619 = vpop.xlane.xlu0 %4618
    %v4620 = vsel %vm4475, %v4428, -inf
    %4621 = vmax.xlane.f32.xlu0 %v4620
    %v4622 = vpop.xlane.xlu0 %4621
    %v4623 = vsel %vm4475, %v4431, -inf
    %4624 = vmax.xlane.f32.xlu0 %v4623
    %v4625 = vpop.xlane.xlu0 %4624
    %v4626 = vsel %vm4475, %v4434, -inf
    %4627 = vmax.xlane.f32.xlu0 %v4626
    %v4628 = vpop.xlane.xlu0 %4627
    %v4629 = vsel %vm4475, %v4437, -inf
    %4630 = vmax.xlane.f32.xlu0 %v4629
    %v4631 = vpop.xlane.xlu0 %4630
    %v4632 = vsel %vm4475, %v4440, -inf
    %4633 = vmax.xlane.f32.xlu0 %v4632
    %v4634 = vpop.xlane.xlu0 %4633
    %v4635 = vsel %vm4475, %v4443, -inf
    %4636 = vmax.xlane.f32.xlu0 %v4635
    %v4637 = vpop.xlane.xlu0 %4636
    %v4638 = vsel %vm4475, %v4446, -inf
    %4639 = vmax.xlane.f32.xlu0 %v4638
    %v4640 = vpop.xlane.xlu0 %4639
    %v4641 = vsel %vm4475, %v4449, -inf
    %4642 = vmax.xlane.f32.xlu0 %v4641
    %v4643 = vpop.xlane.xlu0 %4642
    %v4644 = vsel %vm4475, %v4452, -inf
    %4645 = vmax.xlane.f32.xlu0 %v4644
    %v4646 = vpop.xlane.xlu0 %4645
    %v4647 = vsel %vm4475, %v4455, -inf
    %4648 = vmax.xlane.f32.xlu0 %v4647
    %v4649 = vpop.xlane.xlu0 %4648
    %v4650 = vsel %vm4475, %v4458, -inf
    %4651 = vmax.xlane.f32.xlu0 %v4650
    %v4652 = vpop.xlane.xlu0 %4651
    %v4653 = vsel %vm4475, %v4461, -inf
    %4654 = vmax.xlane.f32.xlu0 %v4653
    %v4655 = vpop.xlane.xlu0 %4654
    %v4656 = vsel %vm4475, %v4464, -inf
    %4657 = vmax.xlane.f32.xlu0 %v4656
    %v4658 = vpop.xlane.xlu0 %4657
    %v4659 = vsel %vm4475, %v4467, -inf
    %4660 = vmax.xlane.f32.xlu0 %v4659
    %v4661 = vpop.xlane.xlu0 %4660
    %v4662 = vsel %vm4475, %v4470, -inf
    %4663 = vmax.xlane.f32.xlu0 %v4662
    %v4664 = vpop.xlane.xlu0 %4663
    %v4665 = vsel %vm4475, %v4473, -inf
    %4666 = vmax.xlane.f32.xlu0 %v4665
    %v4667 = vpop.xlane.xlu0 %4666
    %v4668 = vsub.f32 %v4284, %v4478
    %v4669 = vsub.f32 %v4287, %v4481
    %v4670 = vsub.f32 %v4290, %v4484
    %v4671 = vsub.f32 %v4293, %v4487
    %v4672 = vsub.f32 %v4296, %v4490
    %v4673 = vsub.f32 %v4299, %v4493
    %v4674 = vsub.f32 %v4302, %v4496
    %v4675 = vsub.f32 %v4305, %v4499
    %v4676 = vsub.f32 %v4308, %v4502
    %v4677 = vsub.f32 %v4311, %v4505
    %v4678 = vsub.f32 %v4314, %v4508
    %v4679 = vsub.f32 %v4317, %v4511
    %v4680 = vsub.f32 %v4320, %v4514
    %v4681 = vsub.f32 %v4323, %v4517
    %v4682 = vsub.f32 %v4326, %v4520
    %v4683 = vsub.f32 %v4329, %v4523
    %v4684 = vsub.f32 %v4332, %v4526
    %v4685 = vsub.f32 %v4335, %v4529
    %v4686 = vsub.f32 %v4338, %v4532
    %v4687 = vsub.f32 %v4341, %v4535
    %v4688 = vsub.f32 %v4344, %v4538
    %v4689 = vsub.f32 %v4347, %v4541
    %v4690 = vsub.f32 %v4350, %v4544
    %v4691 = vsub.f32 %v4353, %v4547
    %v4692 = vsub.f32 %v4356, %v4550
    %v4693 = vsub.f32 %v4359, %v4553
    %v4694 = vsub.f32 %v4362, %v4556
    %v4695 = vsub.f32 %v4365, %v4559
    %v4696 = vsub.f32 %v4368, %v4562
    %v4697 = vsub.f32 %v4371, %v4565
    %v4698 = vsub.f32 %v4374, %v4568
    %v4699 = vsub.f32 %v4377, %v4571
    %v4700 = vsub.f32 %v4380, %v4574
    %v4701 = vsub.f32 %v4383, %v4577
    %v4702 = vsub.f32 %v4386, %v4580
    %v4703 = vsub.f32 %v4389, %v4583
    %v4704 = vsub.f32 %v4392, %v4586
    %v4705 = vsub.f32 %v4395, %v4589
    %v4706 = vsub.f32 %v4398, %v4592
    %v4707 = vsub.f32 %v4401, %v4595
    %v4708 = vsub.f32 %v4404, %v4598
    %v4709 = vsub.f32 %v4407, %v4601
    %v4710 = vsub.f32 %v4410, %v4604
    %v4711 = vsub.f32 %v4413, %v4607
    %v4712 = vsub.f32 %v4416, %v4610
    %v4713 = vsub.f32 %v4419, %v4613
    %v4714 = vsub.f32 %v4422, %v4616
    %v4715 = vsub.f32 %v4425, %v4619
    %v4716 = vsub.f32 %v4428, %v4622
    %v4717 = vsub.f32 %v4431, %v4625
    %v4718 = vsub.f32 %v4434, %v4628
    %v4719 = vsub.f32 %v4437, %v4631
    %v4720 = vsub.f32 %v4440, %v4634
    %v4721 = vsub.f32 %v4443, %v4637
    %v4722 = vsub.f32 %v4446, %v4640
    %v4723 = vsub.f32 %v4449, %v4643
    %v4724 = vsub.f32 %v4452, %v4646
    %v4725 = vsub.f32 %v4455, %v4649
    %v4726 = vsub.f32 %v4458, %v4652
    %v4727 = vsub.f32 %v4461, %v4655
    %v4728 = vsub.f32 %v4464, %v4658
    %v4729 = vsub.f32 %v4467, %v4661
    %v4730 = vsub.f32 %v4470, %v4664
    %v4731 = vsub.f32 %v4473, %v4667
    %v4732 = vmul.f32 %v4668, 1.442695
    %v4733 = vpow.pop %v4732
    %v4734 = vmul.f32 %v4669, 1.442695
    %v4735 = vpow.pop %v4734
    %v4736 = vmul.f32 %v4670, 1.442695
    %v4737 = vpow.pop %v4736
    %v4738 = vmul.f32 %v4671, 1.442695
    %v4739 = vpow.pop %v4738
    %v4740 = vmul.f32 %v4672, 1.442695
    %v4741 = vpow.pop %v4740
    %v4742 = vmul.f32 %v4673, 1.442695
    %v4743 = vpow.pop %v4742
    %v4744 = vmul.f32 %v4674, 1.442695
    %v4745 = vpow.pop %v4744
    %v4746 = vmul.f32 %v4675, 1.442695
    %v4747 = vpow.pop %v4746
    %v4748 = vmul.f32 %v4676, 1.442695
    %v4749 = vpow.pop %v4748
    %v4750 = vmul.f32 %v4677, 1.442695
    %v4751 = vpow.pop %v4750
    %v4752 = vmul.f32 %v4678, 1.442695
    %v4753 = vpow.pop %v4752
    %v4754 = vmul.f32 %v4679, 1.442695
    %v4755 = vpow.pop %v4754
    %v4756 = vmul.f32 %v4680, 1.442695
    %v4757 = vpow.pop %v4756
    %v4758 = vmul.f32 %v4681, 1.442695
    %v4759 = vpow.pop %v4758
    %v4760 = vmul.f32 %v4682, 1.442695
    %v4761 = vpow.pop %v4760
    %v4762 = vmul.f32 %v4683, 1.442695
    %v4763 = vpow.pop %v4762
    %v4764 = vmul.f32 %v4684, 1.442695
    %v4765 = vpow.pop %v4764
    %v4766 = vmul.f32 %v4685, 1.442695
    %v4767 = vpow.pop %v4766
    %v4768 = vmul.f32 %v4686, 1.442695
    %v4769 = vpow.pop %v4768
    %v4770 = vmul.f32 %v4687, 1.442695
    %v4771 = vpow.pop %v4770
    %v4772 = vmul.f32 %v4688, 1.442695
    %v4773 = vpow.pop %v4772
    %v4774 = vmul.f32 %v4689, 1.442695
    %v4775 = vpow.pop %v4774
    %v4776 = vmul.f32 %v4690, 1.442695
    %v4777 = vpow.pop %v4776
    %v4778 = vmul.f32 %v4691, 1.442695
    %v4779 = vpow.pop %v4778
    %v4780 = vmul.f32 %v4692, 1.442695
    %v4781 = vpow.pop %v4780
    %v4782 = vmul.f32 %v4693, 1.442695
    %v4783 = vpow.pop %v4782
    %v4784 = vmul.f32 %v4694, 1.442695
    %v4785 = vpow.pop %v4784
    %v4786 = vmul.f32 %v4695, 1.442695
    %v4787 = vpow.pop %v4786
    %v4788 = vmul.f32 %v4696, 1.442695
    %v4789 = vpow.pop %v4788
    %v4790 = vmul.f32 %v4697, 1.442695
    %v4791 = vpow.pop %v4790
    %v4792 = vmul.f32 %v4698, 1.442695
    %v4793 = vpow.pop %v4792
    %v4794 = vmul.f32 %v4699, 1.442695
    %v4795 = vpow.pop %v4794
    %v4796 = vmul.f32 %v4700, 1.442695
    %v4797 = vpow.pop %v4796
    %v4798 = vmul.f32 %v4701, 1.442695
    %v4799 = vpow.pop %v4798
    %v4800 = vmul.f32 %v4702, 1.442695
    %v4801 = vpow.pop %v4800
    %v4802 = vmul.f32 %v4703, 1.442695
    %v4803 = vpow.pop %v4802
    %v4804 = vmul.f32 %v4704, 1.442695
    %v4805 = vpow.pop %v4804
    %v4806 = vmul.f32 %v4705, 1.442695
    %v4807 = vpow.pop %v4806
    %v4808 = vmul.f32 %v4706, 1.442695
    %v4809 = vpow.pop %v4808
    %v4810 = vmul.f32 %v4707, 1.442695
    %v4811 = vpow.pop %v4810
    %v4812 = vmul.f32 %v4708, 1.442695
    %v4813 = vpow.pop %v4812
    %v4814 = vmul.f32 %v4709, 1.442695
    %v4815 = vpow.pop %v4814
    %v4816 = vmul.f32 %v4710, 1.442695
    %v4817 = vpow.pop %v4816
    %v4818 = vmul.f32 %v4711, 1.442695
    %v4819 = vpow.pop %v4818
    %v4820 = vmul.f32 %v4712, 1.442695
    %v4821 = vpow.pop %v4820
    %v4822 = vmul.f32 %v4713, 1.442695
    %v4823 = vpow.pop %v4822
    %v4824 = vmul.f32 %v4714, 1.442695
    %v4825 = vpow.pop %v4824
    %v4826 = vmul.f32 %v4715, 1.442695
    %v4827 = vpow.pop %v4826
    %v4828 = vmul.f32 %v4716, 1.442695
    %v4829 = vpow.pop %v4828
    %v4830 = vmul.f32 %v4717, 1.442695
    %v4831 = vpow.pop %v4830
    %v4832 = vmul.f32 %v4718, 1.442695
    %v4833 = vpow.pop %v4832
    %v4834 = vmul.f32 %v4719, 1.442695
    %v4835 = vpow.pop %v4834
    %v4836 = vmul.f32 %v4720, 1.442695
    %v4837 = vpow.pop %v4836
    %v4838 = vmul.f32 %v4721, 1.442695
    %v4839 = vpow.pop %v4838
    %v4840 = vmul.f32 %v4722, 1.442695
    %v4841 = vpow.pop %v4840
    %v4842 = vmul.f32 %v4723, 1.442695
    %v4843 = vpow.pop %v4842
    %v4844 = vmul.f32 %v4724, 1.442695
    %v4845 = vpow.pop %v4844
    %v4846 = vmul.f32 %v4725, 1.442695
    %v4847 = vpow.pop %v4846
    %v4848 = vmul.f32 %v4726, 1.442695
    %v4849 = vpow.pop %v4848
    %v4850 = vmul.f32 %v4727, 1.442695
    %v4851 = vpow.pop %v4850
    %v4852 = vmul.f32 %v4728, 1.442695
    %v4853 = vpow.pop %v4852
    %v4854 = vmul.f32 %v4729, 1.442695
    %v4855 = vpow.pop %v4854
    %v4856 = vmul.f32 %v4730, 1.442695
    %v4857 = vpow.pop %v4856
    %v4858 = vmul.f32 %v4731, 1.442695
    %v4859 = vpow.pop %v4858
    %v4860 = vsel %vm4475, %v4733, 0.0
    %4861 = vadd.xlane.f32.xlu0 %v4860
    %v4862 = vpop.xlane.xlu0 %4861
    %v4863 = vsel %vm4475, %v4735, 0.0
    %4864 = vadd.xlane.f32.xlu0 %v4863
    %v4865 = vpop.xlane.xlu0 %4864
    %v4866 = vsel %vm4475, %v4737, 0.0
    %4867 = vadd.xlane.f32.xlu0 %v4866
    %v4868 = vpop.xlane.xlu0 %4867
    %v4869 = vsel %vm4475, %v4739, 0.0
    %4870 = vadd.xlane.f32.xlu0 %v4869
    %v4871 = vpop.xlane.xlu0 %4870
    %v4872 = vsel %vm4475, %v4741, 0.0
    %4873 = vadd.xlane.f32.xlu0 %v4872
    %v4874 = vpop.xlane.xlu0 %4873
    %v4875 = vsel %vm4475, %v4743, 0.0
    %4876 = vadd.xlane.f32.xlu0 %v4875
    %v4877 = vpop.xlane.xlu0 %4876
    %v4878 = vsel %vm4475, %v4745, 0.0
    %4879 = vadd.xlane.f32.xlu0 %v4878
    %v4880 = vpop.xlane.xlu0 %4879
    %v4881 = vsel %vm4475, %v4747, 0.0
    %4882 = vadd.xlane.f32.xlu0 %v4881
    %v4883 = vpop.xlane.xlu0 %4882
    %v4884 = vsel %vm4475, %v4749, 0.0
    %4885 = vadd.xlane.f32.xlu0 %v4884
    %v4886 = vpop.xlane.xlu0 %4885
    %v4887 = vsel %vm4475, %v4751, 0.0
    %4888 = vadd.xlane.f32.xlu0 %v4887
    %v4889 = vpop.xlane.xlu0 %4888
    %v4890 = vsel %vm4475, %v4753, 0.0
    %4891 = vadd.xlane.f32.xlu0 %v4890
    %v4892 = vpop.xlane.xlu0 %4891
    %v4893 = vsel %vm4475, %v4755, 0.0
    %4894 = vadd.xlane.f32.xlu0 %v4893
    %v4895 = vpop.xlane.xlu0 %4894
    %v4896 = vsel %vm4475, %v4757, 0.0
    %4897 = vadd.xlane.f32.xlu0 %v4896
    %v4898 = vpop.xlane.xlu0 %4897
    %v4899 = vsel %vm4475, %v4759, 0.0
    %4900 = vadd.xlane.f32.xlu0 %v4899
    %v4901 = vpop.xlane.xlu0 %4900
    %v4902 = vsel %vm4475, %v4761, 0.0
    %4903 = vadd.xlane.f32.xlu0 %v4902
    %v4904 = vpop.xlane.xlu0 %4903
    %v4905 = vsel %vm4475, %v4763, 0.0
    %4906 = vadd.xlane.f32.xlu0 %v4905
    %v4907 = vpop.xlane.xlu0 %4906
    %v4908 = vsel %vm4475, %v4765, 0.0
    %4909 = vadd.xlane.f32.xlu0 %v4908
    %v4910 = vpop.xlane.xlu0 %4909
    %v4911 = vsel %vm4475, %v4767, 0.0
    %4912 = vadd.xlane.f32.xlu0 %v4911
    %v4913 = vpop.xlane.xlu0 %4912
    %v4914 = vsel %vm4475, %v4769, 0.0
    %4915 = vadd.xlane.f32.xlu0 %v4914
    %v4916 = vpop.xlane.xlu0 %4915
    %v4917 = vsel %vm4475, %v4771, 0.0
    %4918 = vadd.xlane.f32.xlu0 %v4917
    %v4919 = vpop.xlane.xlu0 %4918
    %v4920 = vsel %vm4475, %v4773, 0.0
    %4921 = vadd.xlane.f32.xlu0 %v4920
    %v4922 = vpop.xlane.xlu0 %4921
    %v4923 = vsel %vm4475, %v4775, 0.0
    %4924 = vadd.xlane.f32.xlu0 %v4923
    %v4925 = vpop.xlane.xlu0 %4924
    %v4926 = vsel %vm4475, %v4777, 0.0
    %4927 = vadd.xlane.f32.xlu0 %v4926
    %v4928 = vpop.xlane.xlu0 %4927
    %v4929 = vsel %vm4475, %v4779, 0.0
    %4930 = vadd.xlane.f32.xlu0 %v4929
    %v4931 = vpop.xlane.xlu0 %4930
    %v4932 = vsel %vm4475, %v4781, 0.0
    %4933 = vadd.xlane.f32.xlu0 %v4932
    %v4934 = vpop.xlane.xlu0 %4933
    %v4935 = vsel %vm4475, %v4783, 0.0
    %4936 = vadd.xlane.f32.xlu0 %v4935
    %v4937 = vpop.xlane.xlu0 %4936
    %v4938 = vsel %vm4475, %v4785, 0.0
    %4939 = vadd.xlane.f32.xlu0 %v4938
    %v4940 = vpop.xlane.xlu0 %4939
    %v4941 = vsel %vm4475, %v4787, 0.0
    %4942 = vadd.xlane.f32.xlu0 %v4941
    %v4943 = vpop.xlane.xlu0 %4942
    %v4944 = vsel %vm4475, %v4789, 0.0
    %4945 = vadd.xlane.f32.xlu0 %v4944
    %v4946 = vpop.xlane.xlu0 %4945
    %v4947 = vsel %vm4475, %v4791, 0.0
    %4948 = vadd.xlane.f32.xlu0 %v4947
    %v4949 = vpop.xlane.xlu0 %4948
    %v4950 = vsel %vm4475, %v4793, 0.0
    %4951 = vadd.xlane.f32.xlu0 %v4950
    %v4952 = vpop.xlane.xlu0 %4951
    %v4953 = vsel %vm4475, %v4795, 0.0
    %4954 = vadd.xlane.f32.xlu0 %v4953
    %v4955 = vpop.xlane.xlu0 %4954
    %v4956 = vsel %vm4475, %v4797, 0.0
    %4957 = vadd.xlane.f32.xlu0 %v4956
    %v4958 = vpop.xlane.xlu0 %4957
    %v4959 = vsel %vm4475, %v4799, 0.0
    %4960 = vadd.xlane.f32.xlu0 %v4959
    %v4961 = vpop.xlane.xlu0 %4960
    %v4962 = vsel %vm4475, %v4801, 0.0
    %4963 = vadd.xlane.f32.xlu0 %v4962
    %v4964 = vpop.xlane.xlu0 %4963
    %v4965 = vsel %vm4475, %v4803, 0.0
    %4966 = vadd.xlane.f32.xlu0 %v4965
    %v4967 = vpop.xlane.xlu0 %4966
    %v4968 = vsel %vm4475, %v4805, 0.0
    %4969 = vadd.xlane.f32.xlu0 %v4968
    %v4970 = vpop.xlane.xlu0 %4969
    %v4971 = vsel %vm4475, %v4807, 0.0
    %4972 = vadd.xlane.f32.xlu0 %v4971
    %v4973 = vpop.xlane.xlu0 %4972
    %v4974 = vsel %vm4475, %v4809, 0.0
    %4975 = vadd.xlane.f32.xlu0 %v4974
    %v4976 = vpop.xlane.xlu0 %4975
    %v4977 = vsel %vm4475, %v4811, 0.0
    %4978 = vadd.xlane.f32.xlu0 %v4977
    %v4979 = vpop.xlane.xlu0 %4978
    %v4980 = vsel %vm4475, %v4813, 0.0
    %4981 = vadd.xlane.f32.xlu0 %v4980
    %v4982 = vpop.xlane.xlu0 %4981
    %v4983 = vsel %vm4475, %v4815, 0.0
    %4984 = vadd.xlane.f32.xlu0 %v4983
    %v4985 = vpop.xlane.xlu0 %4984
    %v4986 = vsel %vm4475, %v4817, 0.0
    %4987 = vadd.xlane.f32.xlu0 %v4986
    %v4988 = vpop.xlane.xlu0 %4987
    %v4989 = vsel %vm4475, %v4819, 0.0
    %4990 = vadd.xlane.f32.xlu0 %v4989
    %v4991 = vpop.xlane.xlu0 %4990
    %v4992 = vsel %vm4475, %v4821, 0.0
    %4993 = vadd.xlane.f32.xlu0 %v4992
    %v4994 = vpop.xlane.xlu0 %4993
    %v4995 = vsel %vm4475, %v4823, 0.0
    %4996 = vadd.xlane.f32.xlu0 %v4995
    %v4997 = vpop.xlane.xlu0 %4996
    %v4998 = vsel %vm4475, %v4825, 0.0
    %4999 = vadd.xlane.f32.xlu0 %v4998
    %v5000 = vpop.xlane.xlu0 %4999
    %v5001 = vsel %vm4475, %v4827, 0.0
    %5002 = vadd.xlane.f32.xlu0 %v5001
    %v5003 = vpop.xlane.xlu0 %5002
    %v5004 = vsel %vm4475, %v4829, 0.0
    %5005 = vadd.xlane.f32.xlu0 %v5004
    %v5006 = vpop.xlane.xlu0 %5005
    %v5007 = vsel %vm4475, %v4831, 0.0
    %5008 = vadd.xlane.f32.xlu0 %v5007
    %v5009 = vpop.xlane.xlu0 %5008
    %v5010 = vsel %vm4475, %v4833, 0.0
    %5011 = vadd.xlane.f32.xlu0 %v5010
    %v5012 = vpop.xlane.xlu0 %5011
    %v5013 = vsel %vm4475, %v4835, 0.0
    %5014 = vadd.xlane.f32.xlu0 %v5013
    %v5015 = vpop.xlane.xlu0 %5014
    %v5016 = vsel %vm4475, %v4837, 0.0
    %5017 = vadd.xlane.f32.xlu0 %v5016
    %v5018 = vpop.xlane.xlu0 %5017
    %v5019 = vsel %vm4475, %v4839, 0.0
    %5020 = vadd.xlane.f32.xlu0 %v5019
    %v5021 = vpop.xlane.xlu0 %5020
    %v5022 = vsel %vm4475, %v4841, 0.0
    %5023 = vadd.xlane.f32.xlu0 %v5022
    %v5024 = vpop.xlane.xlu0 %5023
    %v5025 = vsel %vm4475, %v4843, 0.0
    %5026 = vadd.xlane.f32.xlu0 %v5025
    %v5027 = vpop.xlane.xlu0 %5026
    %v5028 = vsel %vm4475, %v4845, 0.0
    %5029 = vadd.xlane.f32.xlu0 %v5028
    %v5030 = vpop.xlane.xlu0 %5029
    %v5031 = vsel %vm4475, %v4847, 0.0
    %5032 = vadd.xlane.f32.xlu0 %v5031
    %v5033 = vpop.xlane.xlu0 %5032
    %v5034 = vsel %vm4475, %v4849, 0.0
    %5035 = vadd.xlane.f32.xlu0 %v5034
    %v5036 = vpop.xlane.xlu0 %5035
    %v5037 = vsel %vm4475, %v4851, 0.0
    %5038 = vadd.xlane.f32.xlu0 %v5037
    %v5039 = vpop.xlane.xlu0 %5038
    %v5040 = vsel %vm4475, %v4853, 0.0
    %5041 = vadd.xlane.f32.xlu0 %v5040
    %v5042 = vpop.xlane.xlu0 %5041
    %v5043 = vsel %vm4475, %v4855, 0.0
    %5044 = vadd.xlane.f32.xlu0 %v5043
    %v5045 = vpop.xlane.xlu0 %5044
    %v5046 = vsel %vm4475, %v4857, 0.0
    %5047 = vadd.xlane.f32.xlu0 %v5046
    %v5048 = vpop.xlane.xlu0 %5047
    %v5049 = vsel %vm4475, %v4859, 0.0
    %5050 = vadd.xlane.f32.xlu0 %v5049
    %v5051 = vpop.xlane.xlu0 %5050
    %v5052 = vlog2.pop %v4862
    %v5053 = vmul.f32 %v5052, 0.6931472
    %v5054 = vlog2.pop %v4865
    %v5055 = vmul.f32 %v5054, 0.6931472
    %v5056 = vlog2.pop %v4868
    %v5057 = vmul.f32 %v5056, 0.6931472
    %v5058 = vlog2.pop %v4871
    %v5059 = vmul.f32 %v5058, 0.6931472
    %v5060 = vlog2.pop %v4874
    %v5061 = vmul.f32 %v5060, 0.6931472
    %v5062 = vlog2.pop %v4877
    %v5063 = vmul.f32 %v5062, 0.6931472
    %v5064 = vlog2.pop %v4880
    %v5065 = vmul.f32 %v5064, 0.6931472
    %v5066 = vlog2.pop %v4883
    %v5067 = vmul.f32 %v5066, 0.6931472
    %v5068 = vlog2.pop %v4886
    %v5069 = vmul.f32 %v5068, 0.6931472
    %v5070 = vlog2.pop %v4889
    %v5071 = vmul.f32 %v5070, 0.6931472
    %v5072 = vlog2.pop %v4892
    %v5073 = vmul.f32 %v5072, 0.6931472
    %v5074 = vlog2.pop %v4895
    %v5075 = vmul.f32 %v5074, 0.6931472
    %v5076 = vlog2.pop %v4898
    %v5077 = vmul.f32 %v5076, 0.6931472
    %v5078 = vlog2.pop %v4901
    %v5079 = vmul.f32 %v5078, 0.6931472
    %v5080 = vlog2.pop %v4904
    %v5081 = vmul.f32 %v5080, 0.6931472
    %v5082 = vlog2.pop %v4907
    %v5083 = vmul.f32 %v5082, 0.6931472
    %v5084 = vlog2.pop %v4910
    %v5085 = vmul.f32 %v5084, 0.6931472
    %v5086 = vlog2.pop %v4913
    %v5087 = vmul.f32 %v5086, 0.6931472
    %v5088 = vlog2.pop %v4916
    %v5089 = vmul.f32 %v5088, 0.6931472
    %v5090 = vlog2.pop %v4919
    %v5091 = vmul.f32 %v5090, 0.6931472
    %v5092 = vlog2.pop %v4922
    %v5093 = vmul.f32 %v5092, 0.6931472
    %v5094 = vlog2.pop %v4925
    %v5095 = vmul.f32 %v5094, 0.6931472
    %v5096 = vlog2.pop %v4928
    %v5097 = vmul.f32 %v5096, 0.6931472
    %v5098 = vlog2.pop %v4931
    %v5099 = vmul.f32 %v5098, 0.6931472
    %v5100 = vlog2.pop %v4934
    %v5101 = vmul.f32 %v5100, 0.6931472
    %v5102 = vlog2.pop %v4937
    %v5103 = vmul.f32 %v5102, 0.6931472
    %v5104 = vlog2.pop %v4940
    %v5105 = vmul.f32 %v5104, 0.6931472
    %v5106 = vlog2.pop %v4943
    %v5107 = vmul.f32 %v5106, 0.6931472
    %v5108 = vlog2.pop %v4946
    %v5109 = vmul.f32 %v5108, 0.6931472
    %v5110 = vlog2.pop %v4949
    %v5111 = vmul.f32 %v5110, 0.6931472
    %v5112 = vlog2.pop %v4952
    %v5113 = vmul.f32 %v5112, 0.6931472
    %v5114 = vlog2.pop %v4955
    %v5115 = vmul.f32 %v5114, 0.6931472
    %v5116 = vlog2.pop %v4958
    %v5117 = vmul.f32 %v5116, 0.6931472
    %v5118 = vlog2.pop %v4961
    %v5119 = vmul.f32 %v5118, 0.6931472
    %v5120 = vlog2.pop %v4964
    %v5121 = vmul.f32 %v5120, 0.6931472
    %v5122 = vlog2.pop %v4967
    %v5123 = vmul.f32 %v5122, 0.6931472
    %v5124 = vlog2.pop %v4970
    %v5125 = vmul.f32 %v5124, 0.6931472
    %v5126 = vlog2.pop %v4973
    %v5127 = vmul.f32 %v5126, 0.6931472
    %v5128 = vlog2.pop %v4976
    %v5129 = vmul.f32 %v5128, 0.6931472
    %v5130 = vlog2.pop %v4979
    %v5131 = vmul.f32 %v5130, 0.6931472
    %v5132 = vlog2.pop %v4982
    %v5133 = vmul.f32 %v5132, 0.6931472
    %v5134 = vlog2.pop %v4985
    %v5135 = vmul.f32 %v5134, 0.6931472
    %v5136 = vlog2.pop %v4988
    %v5137 = vmul.f32 %v5136, 0.6931472
    %v5138 = vlog2.pop %v4991
    %v5139 = vmul.f32 %v5138, 0.6931472
    %v5140 = vlog2.pop %v4994
    %v5141 = vmul.f32 %v5140, 0.6931472
    %v5142 = vlog2.pop %v4997
    %v5143 = vmul.f32 %v5142, 0.6931472
    %v5144 = vlog2.pop %v5000
    %v5145 = vmul.f32 %v5144, 0.6931472
    %v5146 = vlog2.pop %v5003
    %v5147 = vmul.f32 %v5146, 0.6931472
    %v5148 = vlog2.pop %v5006
    %v5149 = vmul.f32 %v5148, 0.6931472
    %v5150 = vlog2.pop %v5009
    %v5151 = vmul.f32 %v5150, 0.6931472
    %v5152 = vlog2.pop %v5012
    %v5153 = vmul.f32 %v5152, 0.6931472
    %v5154 = vlog2.pop %v5015
    %v5155 = vmul.f32 %v5154, 0.6931472
    %v5156 = vlog2.pop %v5018
    %v5157 = vmul.f32 %v5156, 0.6931472
    %v5158 = vlog2.pop %v5021
    %v5159 = vmul.f32 %v5158, 0.6931472
    %v5160 = vlog2.pop %v5024
    %v5161 = vmul.f32 %v5160, 0.6931472
    %v5162 = vlog2.pop %v5027
    %v5163 = vmul.f32 %v5162, 0.6931472
    %v5164 = vlog2.pop %v5030
    %v5165 = vmul.f32 %v5164, 0.6931472
    %v5166 = vlog2.pop %v5033
    %v5167 = vmul.f32 %v5166, 0.6931472
    %v5168 = vlog2.pop %v5036
    %v5169 = vmul.f32 %v5168, 0.6931472
    %v5170 = vlog2.pop %v5039
    %v5171 = vmul.f32 %v5170, 0.6931472
    %v5172 = vlog2.pop %v5042
    %v5173 = vmul.f32 %v5172, 0.6931472
    %v5174 = vlog2.pop %v5045
    %v5175 = vmul.f32 %v5174, 0.6931472
    %v5176 = vlog2.pop %v5048
    %v5177 = vmul.f32 %v5176, 0.6931472
    %v5178 = vlog2.pop %v5051
    %v5179 = vmul.f32 %v5178, 0.6931472
    %v5180 = vadd.f32 %v4478, %v5053
    %v5181 = vadd.f32 %v4481, %v5055
    %v5182 = vadd.f32 %v4484, %v5057
    %v5183 = vadd.f32 %v4487, %v5059
    %v5184 = vadd.f32 %v4490, %v5061
    %v5185 = vadd.f32 %v4493, %v5063
    %v5186 = vadd.f32 %v4496, %v5065
    %v5187 = vadd.f32 %v4499, %v5067
    %v5188 = vadd.f32 %v4502, %v5069
    %v5189 = vadd.f32 %v4505, %v5071
    %v5190 = vadd.f32 %v4508, %v5073
    %v5191 = vadd.f32 %v4511, %v5075
    %v5192 = vadd.f32 %v4514, %v5077
    %v5193 = vadd.f32 %v4517, %v5079
    %v5194 = vadd.f32 %v4520, %v5081
    %v5195 = vadd.f32 %v4523, %v5083
    %v5196 = vadd.f32 %v4526, %v5085
    %v5197 = vadd.f32 %v4529, %v5087
    %v5198 = vadd.f32 %v4532, %v5089
    %v5199 = vadd.f32 %v4535, %v5091
    %v5200 = vadd.f32 %v4538, %v5093
    %v5201 = vadd.f32 %v4541, %v5095
    %v5202 = vadd.f32 %v4544, %v5097
    %v5203 = vadd.f32 %v4547, %v5099
    %v5204 = vadd.f32 %v4550, %v5101
    %v5205 = vadd.f32 %v4553, %v5103
    %v5206 = vadd.f32 %v4556, %v5105
    %v5207 = vadd.f32 %v4559, %v5107
    %v5208 = vadd.f32 %v4562, %v5109
    %v5209 = vadd.f32 %v4565, %v5111
    %v5210 = vadd.f32 %v4568, %v5113
    %v5211 = vadd.f32 %v4571, %v5115
    %v5212 = vadd.f32 %v4574, %v5117
    %v5213 = vadd.f32 %v4577, %v5119
    %v5214 = vadd.f32 %v4580, %v5121
    %v5215 = vadd.f32 %v4583, %v5123
    %v5216 = vadd.f32 %v4586, %v5125
    %v5217 = vadd.f32 %v4589, %v5127
    %v5218 = vadd.f32 %v4592, %v5129
    %v5219 = vadd.f32 %v4595, %v5131
    %v5220 = vadd.f32 %v4598, %v5133
    %v5221 = vadd.f32 %v4601, %v5135
    %v5222 = vadd.f32 %v4604, %v5137
    %v5223 = vadd.f32 %v4607, %v5139
    %v5224 = vadd.f32 %v4610, %v5141
    %v5225 = vadd.f32 %v4613, %v5143
    %v5226 = vadd.f32 %v4616, %v5145
    %v5227 = vadd.f32 %v4619, %v5147
    %v5228 = vadd.f32 %v4622, %v5149
    %v5229 = vadd.f32 %v4625, %v5151
    %v5230 = vadd.f32 %v4628, %v5153
    %v5231 = vadd.f32 %v4631, %v5155
    %v5232 = vadd.f32 %v4634, %v5157
    %v5233 = vadd.f32 %v4637, %v5159
    %v5234 = vadd.f32 %v4640, %v5161
    %v5235 = vadd.f32 %v4643, %v5163
    %v5236 = vadd.f32 %v4646, %v5165
    %v5237 = vadd.f32 %v4649, %v5167
    %v5238 = vadd.f32 %v4652, %v5169
    %v5239 = vadd.f32 %v4655, %v5171
    %v5240 = vadd.f32 %v4658, %v5173
    %v5241 = vadd.f32 %v4661, %v5175
    %v5242 = vadd.f32 %v4664, %v5177
    %v5243 = vadd.f32 %v4667, %v5179
    %v5244 = vsub.f32 %v4284, %v5180
    %v5245 = vsub.f32 %v4287, %v5181
    %v5246 = vsub.f32 %v4290, %v5182
    %v5247 = vsub.f32 %v4293, %v5183
    %v5248 = vsub.f32 %v4296, %v5184
    %v5249 = vsub.f32 %v4299, %v5185
    %v5250 = vsub.f32 %v4302, %v5186
    %v5251 = vsub.f32 %v4305, %v5187
    %v5252 = vsub.f32 %v4308, %v5188
    %v5253 = vsub.f32 %v4311, %v5189
    %v5254 = vsub.f32 %v4314, %v5190
    %v5255 = vsub.f32 %v4317, %v5191
    %v5256 = vsub.f32 %v4320, %v5192
    %v5257 = vsub.f32 %v4323, %v5193
    %v5258 = vsub.f32 %v4326, %v5194
    %v5259 = vsub.f32 %v4329, %v5195
    %v5260 = vsub.f32 %v4332, %v5196
    %v5261 = vsub.f32 %v4335, %v5197
    %v5262 = vsub.f32 %v4338, %v5198
    %v5263 = vsub.f32 %v4341, %v5199
    %v5264 = vsub.f32 %v4344, %v5200
    %v5265 = vsub.f32 %v4347, %v5201
    %v5266 = vsub.f32 %v4350, %v5202
    %v5267 = vsub.f32 %v4353, %v5203
    %v5268 = vsub.f32 %v4356, %v5204
    %v5269 = vsub.f32 %v4359, %v5205
    %v5270 = vsub.f32 %v4362, %v5206
    %v5271 = vsub.f32 %v4365, %v5207
    %v5272 = vsub.f32 %v4368, %v5208
    %v5273 = vsub.f32 %v4371, %v5209
    %v5274 = vsub.f32 %v4374, %v5210
    %v5275 = vsub.f32 %v4377, %v5211
    %v5276 = vsub.f32 %v4380, %v5212
    %v5277 = vsub.f32 %v4383, %v5213
    %v5278 = vsub.f32 %v4386, %v5214
    %v5279 = vsub.f32 %v4389, %v5215
    %v5280 = vsub.f32 %v4392, %v5216
    %v5281 = vsub.f32 %v4395, %v5217
    %v5282 = vsub.f32 %v4398, %v5218
    %v5283 = vsub.f32 %v4401, %v5219
    %v5284 = vsub.f32 %v4404, %v5220
    %v5285 = vsub.f32 %v4407, %v5221
    %v5286 = vsub.f32 %v4410, %v5222
    %v5287 = vsub.f32 %v4413, %v5223
    %v5288 = vsub.f32 %v4416, %v5224
    %v5289 = vsub.f32 %v4419, %v5225
    %v5290 = vsub.f32 %v4422, %v5226
    %v5291 = vsub.f32 %v4425, %v5227
    %v5292 = vsub.f32 %v4428, %v5228
    %v5293 = vsub.f32 %v4431, %v5229
    %v5294 = vsub.f32 %v4434, %v5230
    %v5295 = vsub.f32 %v4437, %v5231
    %v5296 = vsub.f32 %v4440, %v5232
    %v5297 = vsub.f32 %v4443, %v5233
    %v5298 = vsub.f32 %v4446, %v5234
    %v5299 = vsub.f32 %v4449, %v5235
    %v5300 = vsub.f32 %v4452, %v5236
    %v5301 = vsub.f32 %v4455, %v5237
    %v5302 = vsub.f32 %v4458, %v5238
    %v5303 = vsub.f32 %v4461, %v5239
    %v5304 = vsub.f32 %v4464, %v5240
    %v5305 = vsub.f32 %v4467, %v5241
    %v5306 = vsub.f32 %v4470, %v5242
    %v5307 = vsub.f32 %v4473, %v5243
    %5308 = vst [vmem:[#allocation2] sm:$0xff] %v5244
    %5309 = vst [vmem:[#allocation2 + $0x8] sm:$0xff] %v5245
    %5310 = vst [vmem:[#allocation2 + $0x10] sm:$0xff] %v5246
    %5311 = vst [vmem:[#allocation2 + $0x18] sm:$0xff] %v5247
    %5312 = vst [vmem:[#allocation2 + $0x20] sm:$0xff] %v5248
    %5313 = vst [vmem:[#allocation2 + $0x28] sm:$0xff] %v5249
    %5314 = vst [vmem:[#allocation2 + $0x30] sm:$0xff] %v5250
    %5315 = vst [vmem:[#allocation2 + $0x38] sm:$0xff] %v5251
    %5316 = vst [vmem:[#allocation2 + $0x40] sm:$0xff] %v5252
    %5317 = vst [vmem:[#allocation2 + $0x48] sm:$0xff] %v5253
    %5318 = vst [vmem:[#allocation2 + $0x50] sm:$0xff] %v5254
    %5319 = vst [vmem:[#allocation2 + $0x58] sm:$0xff] %v5255
    %5320 = vst [vmem:[#allocation2 + $0x60] sm:$0xff] %v5256
    %5321 = vst [vmem:[#allocation2 + $0x68] sm:$0xff] %v5257
    %5322 = vst [vmem:[#allocation2 + $0x70] sm:$0xff] %v5258
    %5323 = vst [vmem:[#allocation2 + $0x78] sm:$0xff] %v5259
    %5324 = vst [vmem:[#allocation2 + $0x80] sm:$0xff] %v5260
    %5325 = vst [vmem:[#allocation2 + $0x88] sm:$0xff] %v5261
    %5326 = vst [vmem:[#allocation2 + $0x90] sm:$0xff] %v5262
    %5327 = vst [vmem:[#allocation2 + $0x98] sm:$0xff] %v5263
    %5328 = vst [vmem:[#allocation2 + $0xa0] sm:$0xff] %v5264
    %5329 = vst [vmem:[#allocation2 + $0xa8] sm:$0xff] %v5265
    %5330 = vst [vmem:[#allocation2 + $0xb0] sm:$0xff] %v5266
    %5331 = vst [vmem:[#allocation2 + $0xb8] sm:$0xff] %v5267
    %5332 = vst [vmem:[#allocation2 + $0xc0] sm:$0xff] %v5268
    %5333 = vst [vmem:[#allocation2 + $0xc8] sm:$0xff] %v5269
    %5334 = vst [vmem:[#allocation2 + $0xd0] sm:$0xff] %v5270
    %5335 = vst [vmem:[#allocation2 + $0xd8] sm:$0xff] %v5271
    %5336 = vst [vmem:[#allocation2 + $0xe0] sm:$0xff] %v5272
    %5337 = vst [vmem:[#allocation2 + $0xe8] sm:$0xff] %v5273
    %5338 = vst [vmem:[#allocation2 + $0xf0] sm:$0xff] %v5274
    %5339 = vst [vmem:[#allocation2 + $0xf8] sm:$0xff] %v5275
    %5340 = vst [vmem:[#allocation2 + $0x100] sm:$0xff] %v5276
    %5341 = vst [vmem:[#allocation2 + $0x108] sm:$0xff] %v5277
    %5342 = vst [vmem:[#allocation2 + $0x110] sm:$0xff] %v5278
    %5343 = vst [vmem:[#allocation2 + $0x118] sm:$0xff] %v5279
    %5344 = vst [vmem:[#allocation2 + $0x120] sm:$0xff] %v5280
    %5345 = vst [vmem:[#allocation2 + $0x128] sm:$0xff] %v5281
    %5346 = vst [vmem:[#allocation2 + $0x130] sm:$0xff] %v5282
    %5347 = vst [vmem:[#allocation2 + $0x138] sm:$0xff] %v5283
    %5348 = vst [vmem:[#allocation2 + $0x140] sm:$0xff] %v5284
    %5349 = vst [vmem:[#allocation2 + $0x148] sm:$0xff] %v5285
    %5350 = vst [vmem:[#allocation2 + $0x150] sm:$0xff] %v5286
    %5351 = vst [vmem:[#allocation2 + $0x158] sm:$0xff] %v5287
    %5352 = vst [vmem:[#allocation2 + $0x160] sm:$0xff] %v5288
    %5353 = vst [vmem:[#allocation2 + $0x168] sm:$0xff] %v5289
    %5354 = vst [vmem:[#allocation2 + $0x170] sm:$0xff] %v5290
    %5355 = vst [vmem:[#allocation2 + $0x178] sm:$0xff] %v5291
    %5356 = vst [vmem:[#allocation2 + $0x180] sm:$0xff] %v5292
    %5357 = vst [vmem:[#allocation2 + $0x188] sm:$0xff] %v5293
    %5358 = vst [vmem:[#allocation2 + $0x190] sm:$0xff] %v5294
    %5359 = vst [vmem:[#allocation2 + $0x198] sm:$0xff] %v5295
    %5360 = vst [vmem:[#allocation2 + $0x1a0] sm:$0xff] %v5296
    %5361 = vst [vmem:[#allocation2 + $0x1a8] sm:$0xff] %v5297
    %5362 = vst [vmem:[#allocation2 + $0x1b0] sm:$0xff] %v5298
    %5363 = vst [vmem:[#allocation2 + $0x1b8] sm:$0xff] %v5299
    %5364 = vst [vmem:[#allocation2 + $0x1c0] sm:$0xff] %v5300
    %5365 = vst [vmem:[#allocation2 + $0x1c8] sm:$0xff] %v5301
    %5366 = vst [vmem:[#allocation2 + $0x1d0] sm:$0xff] %v5302
    %5367 = vst [vmem:[#allocation2 + $0x1d8] sm:$0xff] %v5303
    %5368 = vst [vmem:[#allocation2 + $0x1e0] sm:$0xff] %v5304
    %5369 = vst [vmem:[#allocation2 + $0x1e8] sm:$0xff] %v5305
    %5370 = vst [vmem:[#allocation2 + $0x1f0] sm:$0xff] %v5306
    %5371 = vst [vmem:[#allocation2 + $0x1f8] sm:$0xff] %v5307
    // Predicated region
    $region26: #{tpu_custom_call.1} parent=1 // pred_check
      _
    $region27: #{tpu_custom_call.1} parent=1 // pred_check_branch
      %5373 = sbr.rel (0) target = $region29
    $region28: #{tpu_custom_call.1} parent=1 // pred_region
      %5375 = vsyncadd [#allocation3], 0
      %s5376 = sshll.u32 [#allocation2], 4
      %s5377 = int_to_ptr.vmem [resolvable:$true] %s5376
      %s5378 = sshll.u32 %s6, 4
      %s5379 = int_to_ptr.hbm [resolvable:$true] %s5378
      %5384 = dma.vmem_to_hbm [thread:$0]  %s5377, 8192, %s5379, [#allocation3], 128, 128, 8
    $region29: #{tpu_custom_call.1} parent=1 // pred_fallthru
      _
    // Predicated region
    $region30: #{tpu_custom_call.1} parent=1 // pred_check
      _
    $region31: #{tpu_custom_call.1} parent=1 // pred_check_branch
      %5386 = sbr.rel (0) target = $region33
    $region32: #{tpu_custom_call.1} parent=1 // pred_region
      %5388 = dma.done [#allocation3], 8192
    $region33: #{tpu_custom_call.1} parent=1 // pred_fallthru
      _
    %5389 = vsyncpa [#allocation3], 1

</llo_original>
